<compile_context>
chip_gen: v6e
topology: v6e:2x2x1
jax: 0.10.0
libtpu: 0.0.40
codegen_flags: <defaults>
</compile_context>

<pallas_src>
import functools

import jax
import jax.numpy as jnp
from jax import lax
from jax.experimental import pallas as pl
from jax.experimental.pallas import tpu as pltpu


# -----------------------------------------------------------------------------
# Fused kernel: one batch element per grid step.
#   x_ref    : [1, TN, E]   (rows ordered as r = t*N + n)
#   bias_ref : [TN, TN]     0.0 where attention is allowed (same site, and
#                           s >= t if masked), -2^15+1 elsewhere (additive)
#   wqkv_ref : [E, 3D], bqkv_ref: [1, 3D]
#   w1_ref/w2_ref : [D, D], b1_ref/b2_ref : [1, D]
#   o_ref    : [1, TN, D]
# -----------------------------------------------------------------------------
def _fused_kernel(x_ref, bias_ref, wqkv_ref, bqkv_ref, w1_ref, b1_ref,
                  w2_ref, b2_ref, o_ref, *, K, d, scale):
    D = K * d
    x2d = x_ref[0]                                           # [TN, E]

    # Fused Q/K/V projection (+ ReLU): one wide MXU matmul.
    qkv = jnp.dot(x2d, wqkv_ref[...], preferred_element_type=jnp.float32)
    qkv = jnp.maximum(qkv + bqkv_ref[...], 0.0)              # [TN, 3D]

    bias = bias_ref[...]                                     # [TN, TN] additive
    w1 = w1_ref[...]                                         # [D, D]

    # Per-head attention; heads accumulate directly into the first FC layer,
    # so no concat/merge of head outputs is needed.
    h1 = None
    for h in range(K):
        qh = qkv[:, h * d:(h + 1) * d]                       # [TN, d]
        kh = qkv[:, D + h * d:D + (h + 1) * d]               # [TN, d]
        vh = qkv[:, 2 * D + h * d:2 * D + (h + 1) * d]       # [TN, d]

        # Scores over all (row, col) pairs; disallowed terms pushed to -inf-ish
        # by the additive bias (cross-site + future steps when masked).
        s = lax.dot_general(qh, kh, (((1,), (1,)), ((), ())),
                            preferred_element_type=jnp.float32)
        s = s * scale + bias                                  # [TN, TN]

        m = jnp.max(s, axis=-1, keepdims=True)
        p = jnp.exp(s - m)                                    # masked terms -> 0
        p = p / jnp.sum(p, axis=-1, keepdims=True)

        oh = jnp.dot(p, vh, preferred_element_type=jnp.float32)          # [TN, d]
        t = jnp.dot(oh, w1[h * d:(h + 1) * d, :],
                    preferred_element_type=jnp.float32)                  # [TN, D]
        h1 = t if h1 is None else h1 + t

    h1 = jnp.maximum(h1 + b1_ref[...], 0.0)
    y = jnp.dot(h1, w2_ref[...], preferred_element_type=jnp.float32) + b2_ref[...]
    o_ref[0] = y.astype(o_ref.dtype)


def temporal_attention(X, STE, params, *, K, d, mask=True):
    """Forward pass.  STE is accepted (as in the PyTorch signature) but unused."""
    del STE
    B, T, N, E = X.shape
    D = K * d
    TN = T * N
    neg_fill = float(-2 ** 15 + 1)

    # Fused QKV weights / biases.
    Wqkv = jnp.concatenate([params["Wq"], params["Wk"], params["Wv"]], axis=1)
    bqkv = jnp.concatenate([params["bq"], params["bk"], params["bv"]]).reshape(1, 3 * D)

    # Precomputed ADDITIVE attention bias on the flattened (t*N + n) axes
    # (hoisted out of the kernel).  row r=(t,n), col c=(s,m): allowed iff m==n
    # (same site) and, when masked, s>=t (torch.triu keeps present + future).
    r = jnp.arange(TN)
    keep = (r[:, None] % N) == (r[None, :] % N)
    if mask:
        keep = jnp.logical_and(keep, (r[None, :] // N) >= (r[:, None] // N))
    bias = jnp.where(keep, 0.0, neg_fill).astype(jnp.float32)

    X2 = X.reshape(B, TN, E)                                  # free reshape

    kernel = functools.partial(
        _fused_kernel, K=K, d=d, scale=float(d) ** -0.5)

    out = pl.pallas_call(
        kernel,
        out_shape=jax.ShapeDtypeStruct((B, TN, D), jnp.float32),
        grid_spec=pltpu.PrefetchScalarGridSpec(
            num_scalar_prefetch=0,
            grid=(B,),
            in_specs=[
                pl.BlockSpec((1, TN, E), lambda b: (b, 0, 0)),
                pl.BlockSpec((TN, TN), lambda b: (0, 0)),
                pl.BlockSpec((E, 3 * D), lambda b: (0, 0)),
                pl.BlockSpec((1, 3 * D), lambda b: (0, 0)),
                pl.BlockSpec((D, D), lambda b: (0, 0)),
                pl.BlockSpec((1, D), lambda b: (0, 0)),
                pl.BlockSpec((D, D), lambda b: (0, 0)),
                pl.BlockSpec((1, D), lambda b: (0, 0)),
            ],
            out_specs=pl.BlockSpec((1, TN, D), lambda b: (b, 0, 0)),
        ),
        compiler_params=pltpu.CompilerParams(
            dimension_semantics=("parallel",)),
    )(X2, bias, Wqkv, bqkv,
      params["Wf1"], params["bf1"].reshape(1, D),
      params["Wf2"], params["bf2"].reshape(1, D))

    return out.reshape(B, T, N, D)


# -----------------------------------------------------------------------------
# Pure-JAX reference (mirrors the PyTorch module) for a correctness check.
# -----------------------------------------------------------------------------
def _split_heads(x, K):
    # torch.cat(torch.chunk(x, K, dim=-1), dim=0): [B,T,N,D] -> [K*B,T,N,D//K]
    B, T, N, D = x.shape
    d = D // K
    x = x.reshape(B, T, N, K, d)
    return jnp.transpose(x, (3, 0, 1, 2, 4)).reshape(K * B, T, N, d)


def _merge_heads(x, K):
    # torch.cat(torch.chunk(x, K, dim=0), dim=-1): [K*B,T,N,d] -> [B,T,N,K*d]
    KB, T, N, d = x.shape
    B = KB // K
    x = x.reshape(K, B, T, N, d)
    return jnp.transpose(x, (1, 2, 3, 0, 4)).reshape(B, T, N, K * d)


def reference(X, params, *, K, d, mask=True):
    B, T, N, E = X.shape
    relu = lambda z: jnp.maximum(z, 0.0)
    q = relu(X @ params["Wq"] + params["bq"])
    k = relu(X @ params["Wk"] + params["bk"])
    v = relu(X @ params["Wv"] + params["bv"])
    q = jnp.transpose(_split_heads(q, K), (0, 2, 1, 3))
    k = jnp.transpose(_split_heads(k, K), (0, 2, 1, 3))
    v = jnp.transpose(_split_heads(v, K), (0, 2, 1, 3))
    s = jnp.einsum("bntd,bnsd->bnts", q, k) / (d ** 0.5)
    if mask:
        keep = jnp.triu(jnp.ones((T, T), dtype=bool))[None, None]
        s = jnp.where(keep, s, float(-2 ** 15 + 1))
    p = jax.nn.softmax(s, axis=-1)
    o = jnp.einsum("bnts,bnsd->bntd", p, v)
    o = _merge_heads(jnp.transpose(o, (0, 2, 1, 3)), K)
    h = relu(o @ params["Wf1"] + params["bf1"])
    return h @ params["Wf2"] + params["bf2"]


if __name__ == "__main__":
    # conf: emb_size=32, num_heads=4, batch_size=2, input_length=8, site_num=16, D=32
    B, T, N, E = 2, 8, 16, 32
    D, K = 32, 4
    d = D // K

    key = jax.random.PRNGKey(0)
    ks = jax.random.split(key, 10)
    X = jax.random.normal(ks[0], (B, T, N, E), jnp.float32)
    STE = jax.random.normal(ks[1], (B, T, N, E), jnp.float32)  # unused in forward

    init = lambda k, shape: (jax.random.normal(k, shape, jnp.float32)
                             * (1.0 / jnp.sqrt(shape[0])))
    params = {
        "Wq": init(ks[2], (E, D)), "bq": jnp.zeros((D,), jnp.float32),
        "Wk": init(ks[3], (E, D)), "bk": jnp.zeros((D,), jnp.float32),
        "Wv": init(ks[4], (E, D)), "bv": jnp.zeros((D,), jnp.float32),
        "Wf1": init(ks[5], (D, D)), "bf1": 0.01 * jnp.ones((D,), jnp.float32),
        "Wf2": init(ks[6], (D, D)), "bf2": 0.01 * jnp.ones((D,), jnp.float32),
    }

    for use_mask in (True, False):
        out = temporal_attention(X, STE, params, K=K, d=d, mask=use_mask)
        out = jax.block_until_ready(out)
        assert out.shape == (B, T, N, D), out.shape
        ref = reference(X, params, K=K, d=d, mask=use_mask)
        err = float(jnp.max(jnp.abs(out - ref)))
        assert jnp.allclose(out, ref, atol=1e-3, rtol=1e-3), (use_mask, err)

    print("KERNEL_OK")
</pallas_src>

<mosaic_0001>
module attributes {stable_mosaic.version = 11 : i64} {
  func.func @_fused_kernel(%arg0: i32, %arg1: memref<1x128x32xf32, #tpu.memory_space<vmem>>, %arg2: memref<128x128xf32, #tpu.memory_space<vmem>>, %arg3: memref<32x96xf32, #tpu.memory_space<vmem>>, %arg4: memref<1x96xf32, #tpu.memory_space<vmem>>, %arg5: memref<32x32xf32, #tpu.memory_space<vmem>>, %arg6: memref<1x32xf32, #tpu.memory_space<vmem>>, %arg7: memref<32x32xf32, #tpu.memory_space<vmem>>, %arg8: memref<1x32xf32, #tpu.memory_space<vmem>>, %arg9: memref<1x128x32xf32, #tpu.memory_space<vmem>>) attributes {dimension_semantics = [#tpu.dimension_semantics<parallel>], iteration_bounds = array<i64: 2>, scalar_prefetch = 0 : i64, scratch_operands = 0 : i64, tpu.core_type = #tpu.core_type<tc>, window_params = [{transform_indices = @transform_0, window_bounds = array<i64: 1, 128, 32>}, {pipeline_mode = #tpu.pipeline_mode<synchronous>, transform_indices = @transform_1, window_bounds = array<i64: 128, 128>}, {pipeline_mode = #tpu.pipeline_mode<synchronous>, transform_indices = @transform_2, window_bounds = array<i64: 32, 96>}, {pipeline_mode = #tpu.pipeline_mode<synchronous>, transform_indices = @transform_3, window_bounds = array<i64: 1, 96>}, {pipeline_mode = #tpu.pipeline_mode<synchronous>, transform_indices = @transform_4, window_bounds = array<i64: 32, 32>}, {pipeline_mode = #tpu.pipeline_mode<synchronous>, transform_indices = @transform_5, window_bounds = array<i64: 1, 32>}, {pipeline_mode = #tpu.pipeline_mode<synchronous>, transform_indices = @transform_6, window_bounds = array<i64: 32, 32>}, {pipeline_mode = #tpu.pipeline_mode<synchronous>, transform_indices = @transform_7, window_bounds = array<i64: 1, 32>}, {transform_indices = @transform_8, window_bounds = array<i64: 1, 128, 32>}]} {
    %c0 = arith.constant 0 : index
    %c0_0 = arith.constant 0 : index
    %c0_1 = arith.constant 0 : index
    %0 = vector.load %arg1[%c0, %c0_0, %c0_1] : memref<1x128x32xf32, #tpu.memory_space<vmem>>, vector<1x128x32xf32>
    %1 = vector.shape_cast %0 : vector<1x128x32xf32> to vector<128x32xf32>
    %c0_2 = arith.constant 0 : index
    %c0_3 = arith.constant 0 : index
    %2 = vector.load %arg3[%c0_2, %c0_3] : memref<32x96xf32, #tpu.memory_space<vmem>>, vector<32x96xf32>
    %cst = arith.constant dense<0.000000e+00> : vector<128x96xf32>
    %3 = tpu.matmul %1, %2, %cst {dimension_numbers = #tpu.dot_dimension_numbers<[1], [0], [0], [1], [0, 0, 1, 1], [], []>} : vector<128x32xf32>, vector<32x96xf32>, vector<128x96xf32> -> vector<128x96xf32>
    %c0_4 = arith.constant 0 : index
    %c0_5 = arith.constant 0 : index
    %4 = vector.load %arg4[%c0_4, %c0_5] : memref<1x96xf32, #tpu.memory_space<vmem>>, vector<1x96xf32>
    %5 = vector.broadcast %4 : vector<1x96xf32> to vector<128x96xf32>
    %6 = arith.addf %3, %5 : vector<128x96xf32>
    %cst_6 = arith.constant 0.000000e+00 : f32
    %7 = vector.broadcast %cst_6 : f32 to vector<128x96xf32>
    %8 = arith.maximumf %6, %7 : vector<128x96xf32>
    %c0_7 = arith.constant 0 : index
    %c0_8 = arith.constant 0 : index
    %9 = vector.load %arg2[%c0_7, %c0_8] : memref<128x128xf32, #tpu.memory_space<vmem>>, vector<128x128xf32>
    %c0_9 = arith.constant 0 : index
    %c0_10 = arith.constant 0 : index
    %10 = vector.load %arg5[%c0_9, %c0_10] : memref<32x32xf32, #tpu.memory_space<vmem>>, vector<32x32xf32>
    %11 = vector.extract_strided_slice %8 {offsets = [0, 0], sizes = [128, 8], strides = [1, 1]} : vector<128x96xf32> to vector<128x8xf32>
    %12 = vector.extract_strided_slice %8 {offsets = [0, 32], sizes = [128, 8], strides = [1, 1]} : vector<128x96xf32> to vector<128x8xf32>
    %13 = vector.extract_strided_slice %8 {offsets = [0, 64], sizes = [128, 8], strides = [1, 1]} : vector<128x96xf32> to vector<128x8xf32>
    %cst_11 = arith.constant dense<0.000000e+00> : vector<128x128xf32>
    %14 = tpu.matmul %11, %12, %cst_11 {dimension_numbers = #tpu.dot_dimension_numbers<[1], [1], [0], [0], [0, 0, 1, 0], [], []>} : vector<128x8xf32>, vector<128x8xf32>, vector<128x128xf32> -> vector<128x128xf32>
    %cst_12 = arith.constant 0.353553385 : f32
    %15 = vector.broadcast %cst_12 : f32 to vector<128x128xf32>
    %16 = arith.mulf %14, %15 : vector<128x128xf32>
    %17 = arith.addf %16, %9 : vector<128x128xf32>
    %cst_13 = arith.constant dense<0xFF800000> : vector<128xf32>
    %18 = vector.multi_reduction <maximumf>, %17, %cst_13 [1] : vector<128x128xf32> to vector<128xf32>
    %19 = vector.shape_cast %18 : vector<128xf32> to vector<128x1xf32>
    %20 = vector.broadcast %19 : vector<128x1xf32> to vector<128x128xf32>
    %21 = arith.subf %17, %20 : vector<128x128xf32>
    %22 = math.exp %21 : vector<128x128xf32>
    %cst_14 = arith.constant dense<0.000000e+00> : vector<128xf32>
    %23 = vector.multi_reduction <add>, %22, %cst_14 [1] : vector<128x128xf32> to vector<128xf32>
    %24 = vector.shape_cast %23 : vector<128xf32> to vector<128x1xf32>
    %25 = vector.broadcast %24 : vector<128x1xf32> to vector<128x128xf32>
    %26 = arith.divf %22, %25 : vector<128x128xf32>
    %cst_15 = arith.constant dense<0.000000e+00> : vector<128x8xf32>
    %27 = tpu.matmul %26, %13, %cst_15 {dimension_numbers = #tpu.dot_dimension_numbers<[1], [0], [0], [1], [0, 0, 1, 1], [], []>} : vector<128x128xf32>, vector<128x8xf32>, vector<128x8xf32> -> vector<128x8xf32>
    %28 = vector.extract_strided_slice %10 {offsets = [0, 0], sizes = [8, 32], strides = [1, 1]} : vector<32x32xf32> to vector<8x32xf32>
    %cst_16 = arith.constant dense<0.000000e+00> : vector<128x32xf32>
    %29 = tpu.matmul %27, %28, %cst_16 {dimension_numbers = #tpu.dot_dimension_numbers<[1], [0], [0], [1], [0, 0, 1, 1], [], []>} : vector<128x8xf32>, vector<8x32xf32>, vector<128x32xf32> -> vector<128x32xf32>
    %30 = vector.extract_strided_slice %8 {offsets = [0, 8], sizes = [128, 8], strides = [1, 1]} : vector<128x96xf32> to vector<128x8xf32>
    %31 = vector.extract_strided_slice %8 {offsets = [0, 40], sizes = [128, 8], strides = [1, 1]} : vector<128x96xf32> to vector<128x8xf32>
    %32 = vector.extract_strided_slice %8 {offsets = [0, 72], sizes = [128, 8], strides = [1, 1]} : vector<128x96xf32> to vector<128x8xf32>
    %cst_17 = arith.constant dense<0.000000e+00> : vector<128x128xf32>
    %33 = tpu.matmul %30, %31, %cst_17 {dimension_numbers = #tpu.dot_dimension_numbers<[1], [1], [0], [0], [0, 0, 1, 0], [], []>} : vector<128x8xf32>, vector<128x8xf32>, vector<128x128xf32> -> vector<128x128xf32>
    %cst_18 = arith.constant 0.353553385 : f32
    %34 = vector.broadcast %cst_18 : f32 to vector<128x128xf32>
    %35 = arith.mulf %33, %34 : vector<128x128xf32>
    %36 = arith.addf %35, %9 : vector<128x128xf32>
    %cst_19 = arith.constant dense<0xFF800000> : vector<128xf32>
    %37 = vector.multi_reduction <maximumf>, %36, %cst_19 [1] : vector<128x128xf32> to vector<128xf32>
    %38 = vector.shape_cast %37 : vector<128xf32> to vector<128x1xf32>
    %39 = vector.broadcast %38 : vector<128x1xf32> to vector<128x128xf32>
    %40 = arith.subf %36, %39 : vector<128x128xf32>
    %41 = math.exp %40 : vector<128x128xf32>
    %cst_20 = arith.constant dense<0.000000e+00> : vector<128xf32>
    %42 = vector.multi_reduction <add>, %41, %cst_20 [1] : vector<128x128xf32> to vector<128xf32>
    %43 = vector.shape_cast %42 : vector<128xf32> to vector<128x1xf32>
    %44 = vector.broadcast %43 : vector<128x1xf32> to vector<128x128xf32>
    %45 = arith.divf %41, %44 : vector<128x128xf32>
    %cst_21 = arith.constant dense<0.000000e+00> : vector<128x8xf32>
    %46 = tpu.matmul %45, %32, %cst_21 {dimension_numbers = #tpu.dot_dimension_numbers<[1], [0], [0], [1], [0, 0, 1, 1], [], []>} : vector<128x128xf32>, vector<128x8xf32>, vector<128x8xf32> -> vector<128x8xf32>
    %47 = vector.extract_strided_slice %10 {offsets = [8, 0], sizes = [8, 32], strides = [1, 1]} : vector<32x32xf32> to vector<8x32xf32>
    %cst_22 = arith.constant dense<0.000000e+00> : vector<128x32xf32>
    %48 = tpu.matmul %46, %47, %cst_22 {dimension_numbers = #tpu.dot_dimension_numbers<[1], [0], [0], [1], [0, 0, 1, 1], [], []>} : vector<128x8xf32>, vector<8x32xf32>, vector<128x32xf32> -> vector<128x32xf32>
    %49 = arith.addf %29, %48 : vector<128x32xf32>
    %50 = vector.extract_strided_slice %8 {offsets = [0, 16], sizes = [128, 8], strides = [1, 1]} : vector<128x96xf32> to vector<128x8xf32>
    %51 = vector.extract_strided_slice %8 {offsets = [0, 48], sizes = [128, 8], strides = [1, 1]} : vector<128x96xf32> to vector<128x8xf32>
    %52 = vector.extract_strided_slice %8 {offsets = [0, 80], sizes = [128, 8], strides = [1, 1]} : vector<128x96xf32> to vector<128x8xf32>
    %cst_23 = arith.constant dense<0.000000e+00> : vector<128x128xf32>
    %53 = tpu.matmul %50, %51, %cst_23 {dimension_numbers = #tpu.dot_dimension_numbers<[1], [1], [0], [0], [0, 0, 1, 0], [], []>} : vector<128x8xf32>, vector<128x8xf32>, vector<128x128xf32> -> vector<128x128xf32>
    %cst_24 = arith.constant 0.353553385 : f32
    %54 = vector.broadcast %cst_24 : f32 to vector<128x128xf32>
    %55 = arith.mulf %53, %54 : vector<128x128xf32>
    %56 = arith.addf %55, %9 : vector<128x128xf32>
    %cst_25 = arith.constant dense<0xFF800000> : vector<128xf32>
    %57 = vector.multi_reduction <maximumf>, %56, %cst_25 [1] : vector<128x128xf32> to vector<128xf32>
    %58 = vector.shape_cast %57 : vector<128xf32> to vector<128x1xf32>
    %59 = vector.broadcast %58 : vector<128x1xf32> to vector<128x128xf32>
    %60 = arith.subf %56, %59 : vector<128x128xf32>
    %61 = math.exp %60 : vector<128x128xf32>
    %cst_26 = arith.constant dense<0.000000e+00> : vector<128xf32>
    %62 = vector.multi_reduction <add>, %61, %cst_26 [1] : vector<128x128xf32> to vector<128xf32>
    %63 = vector.shape_cast %62 : vector<128xf32> to vector<128x1xf32>
    %64 = vector.broadcast %63 : vector<128x1xf32> to vector<128x128xf32>
    %65 = arith.divf %61, %64 : vector<128x128xf32>
    %cst_27 = arith.constant dense<0.000000e+00> : vector<128x8xf32>
    %66 = tpu.matmul %65, %52, %cst_27 {dimension_numbers = #tpu.dot_dimension_numbers<[1], [0], [0], [1], [0, 0, 1, 1], [], []>} : vector<128x128xf32>, vector<128x8xf32>, vector<128x8xf32> -> vector<128x8xf32>
    %67 = vector.extract_strided_slice %10 {offsets = [16, 0], sizes = [8, 32], strides = [1, 1]} : vector<32x32xf32> to vector<8x32xf32>
    %cst_28 = arith.constant dense<0.000000e+00> : vector<128x32xf32>
    %68 = tpu.matmul %66, %67, %cst_28 {dimension_numbers = #tpu.dot_dimension_numbers<[1], [0], [0], [1], [0, 0, 1, 1], [], []>} : vector<128x8xf32>, vector<8x32xf32>, vector<128x32xf32> -> vector<128x32xf32>
    %69 = arith.addf %49, %68 : vector<128x32xf32>
    %70 = vector.extract_strided_slice %8 {offsets = [0, 24], sizes = [128, 8], strides = [1, 1]} : vector<128x96xf32> to vector<128x8xf32>
    %71 = vector.extract_strided_slice %8 {offsets = [0, 56], sizes = [128, 8], strides = [1, 1]} : vector<128x96xf32> to vector<128x8xf32>
    %72 = vector.extract_strided_slice %8 {offsets = [0, 88], sizes = [128, 8], strides = [1, 1]} : vector<128x96xf32> to vector<128x8xf32>
    %cst_29 = arith.constant dense<0.000000e+00> : vector<128x128xf32>
    %73 = tpu.matmul %70, %71, %cst_29 {dimension_numbers = #tpu.dot_dimension_numbers<[1], [1], [0], [0], [0, 0, 1, 0], [], []>} : vector<128x8xf32>, vector<128x8xf32>, vector<128x128xf32> -> vector<128x128xf32>
    %cst_30 = arith.constant 0.353553385 : f32
    %74 = vector.broadcast %cst_30 : f32 to vector<128x128xf32>
    %75 = arith.mulf %73, %74 : vector<128x128xf32>
    %76 = arith.addf %75, %9 : vector<128x128xf32>
    %cst_31 = arith.constant dense<0xFF800000> : vector<128xf32>
    %77 = vector.multi_reduction <maximumf>, %76, %cst_31 [1] : vector<128x128xf32> to vector<128xf32>
    %78 = vector.shape_cast %77 : vector<128xf32> to vector<128x1xf32>
    %79 = vector.broadcast %78 : vector<128x1xf32> to vector<128x128xf32>
    %80 = arith.subf %76, %79 : vector<128x128xf32>
    %81 = math.exp %80 : vector<128x128xf32>
    %cst_32 = arith.constant dense<0.000000e+00> : vector<128xf32>
    %82 = vector.multi_reduction <add>, %81, %cst_32 [1] : vector<128x128xf32> to vector<128xf32>
    %83 = vector.shape_cast %82 : vector<128xf32> to vector<128x1xf32>
    %84 = vector.broadcast %83 : vector<128x1xf32> to vector<128x128xf32>
    %85 = arith.divf %81, %84 : vector<128x128xf32>
    %cst_33 = arith.constant dense<0.000000e+00> : vector<128x8xf32>
    %86 = tpu.matmul %85, %72, %cst_33 {dimension_numbers = #tpu.dot_dimension_numbers<[1], [0], [0], [1], [0, 0, 1, 1], [], []>} : vector<128x128xf32>, vector<128x8xf32>, vector<128x8xf32> -> vector<128x8xf32>
    %87 = vector.extract_strided_slice %10 {offsets = [24, 0], sizes = [8, 32], strides = [1, 1]} : vector<32x32xf32> to vector<8x32xf32>
    %cst_34 = arith.constant dense<0.000000e+00> : vector<128x32xf32>
    %88 = tpu.matmul %86, %87, %cst_34 {dimension_numbers = #tpu.dot_dimension_numbers<[1], [0], [0], [1], [0, 0, 1, 1], [], []>} : vector<128x8xf32>, vector<8x32xf32>, vector<128x32xf32> -> vector<128x32xf32>
    %89 = arith.addf %69, %88 : vector<128x32xf32>
    %c0_35 = arith.constant 0 : index
    %c0_36 = arith.constant 0 : index
    %90 = vector.load %arg6[%c0_35, %c0_36] : memref<1x32xf32, #tpu.memory_space<vmem>>, vector<1x32xf32>
    %91 = vector.broadcast %90 : vector<1x32xf32> to vector<128x32xf32>
    %92 = arith.addf %89, %91 : vector<128x32xf32>
    %cst_37 = arith.constant 0.000000e+00 : f32
    %93 = vector.broadcast %cst_37 : f32 to vector<128x32xf32>
    %94 = arith.maximumf %92, %93 : vector<128x32xf32>
    %c0_38 = arith.constant 0 : index
    %c0_39 = arith.constant 0 : index
    %95 = vector.load %arg7[%c0_38, %c0_39] : memref<32x32xf32, #tpu.memory_space<vmem>>, vector<32x32xf32>
    %cst_40 = arith.constant dense<0.000000e+00> : vector<128x32xf32>
    %96 = tpu.matmul %94, %95, %cst_40 {dimension_numbers = #tpu.dot_dimension_numbers<[1], [0], [0], [1], [0, 0, 1, 1], [], []>} : vector<128x32xf32>, vector<32x32xf32>, vector<128x32xf32> -> vector<128x32xf32>
    %c0_41 = arith.constant 0 : index
    %c0_42 = arith.constant 0 : index
    %97 = vector.load %arg8[%c0_41, %c0_42] : memref<1x32xf32, #tpu.memory_space<vmem>>, vector<1x32xf32>
    %98 = vector.broadcast %97 : vector<1x32xf32> to vector<128x32xf32>
    %99 = arith.addf %96, %98 : vector<128x32xf32>
    %c0_43 = arith.constant 0 : index
    %c0_44 = arith.constant 0 : index
    %c0_45 = arith.constant 0 : index
    %100 = vector.load %arg9[%c0_43, %c0_44, %c0_45] : memref<1x128x32xf32, #tpu.memory_space<vmem>>, vector<1x128x32xf32>
    %101 = vector.shape_cast %100 : vector<1x128x32xf32> to vector<128x32xf32>
    %102 = vector.shape_cast %99 : vector<128x32xf32> to vector<1x128x32xf32>
    tpu.vector_store %arg9[%c0_43, %c0_44, %c0_45], %102 {strides = array<i32>} : memref<1x128x32xf32, #tpu.memory_space<vmem>>, vector<1x128x32xf32>,
    return
  }
  func.func @transform_0(%arg0: i32) -> (i32, i32, i32) {
    %c0_i32 = arith.constant 0 : i32
    %c0_i32_0 = arith.constant 0 : i32
    %c0_i32_1 = arith.constant 0 : i32
    return %arg0, %c0_i32, %c0_i32_0 : i32, i32, i32
  }
  func.func @transform_1(%arg0: i32) -> (i32, i32) {
    %c0_i32 = arith.constant 0 : i32
    %c0_i32_0 = arith.constant 0 : i32
    %c0_i32_1 = arith.constant 0 : i32
    return %c0_i32, %c0_i32_0 : i32, i32
  }
  func.func @transform_2(%arg0: i32) -> (i32, i32) {
    %c0_i32 = arith.constant 0 : i32
    %c0_i32_0 = arith.constant 0 : i32
    %c0_i32_1 = arith.constant 0 : i32
    return %c0_i32, %c0_i32_0 : i32, i32
  }
  func.func @transform_3(%arg0: i32) -> (i32, i32) {
    %c0_i32 = arith.constant 0 : i32
    %c0_i32_0 = arith.constant 0 : i32
    %c0_i32_1 = arith.constant 0 : i32
    return %c0_i32, %c0_i32_0 : i32, i32
  }
  func.func @transform_4(%arg0: i32) -> (i32, i32) {
    %c0_i32 = arith.constant 0 : i32
    %c0_i32_0 = arith.constant 0 : i32
    %c0_i32_1 = arith.constant 0 : i32
    return %c0_i32, %c0_i32_0 : i32, i32
  }
  func.func @transform_5(%arg0: i32) -> (i32, i32) {
    %c0_i32 = arith.constant 0 : i32
    %c0_i32_0 = arith.constant 0 : i32
    %c0_i32_1 = arith.constant 0 : i32
    return %c0_i32, %c0_i32_0 : i32, i32
  }
  func.func @transform_6(%arg0: i32) -> (i32, i32) {
    %c0_i32 = arith.constant 0 : i32
    %c0_i32_0 = arith.constant 0 : i32
    %c0_i32_1 = arith.constant 0 : i32
    return %c0_i32, %c0_i32_0 : i32, i32
  }
  func.func @transform_7(%arg0: i32) -> (i32, i32) {
    %c0_i32 = arith.constant 0 : i32
    %c0_i32_0 = arith.constant 0 : i32
    %c0_i32_1 = arith.constant 0 : i32
    return %c0_i32, %c0_i32_0 : i32, i32
  }
  func.func @transform_8(%arg0: i32) -> (i32, i32, i32) {
    %c0_i32 = arith.constant 0 : i32
    %c0_i32_0 = arith.constant 0 : i32
    %c0_i32_1 = arith.constant 0 : i32
    return %arg0, %c0_i32, %c0_i32_0 : i32, i32, i32
  }
}

</mosaic_0001>

<llo_original>
// kernel: tpu_custom_call.1
$region0: #{tpu_custom_call.1}
  #allocation0 [shape = 'u32[]', space=smem, size = 0x4, offset = 0x4, fixed_abs, tag = 'smem constant byte address 0x4 - core index']
  #allocation1 [shape = 'u32[144,128]{1,0:T(1,128)}', space=vmem, size = 0x12000, scoped, tag = 'internal scratch']
  %s0 = inlined_call_operand.vmem [shape: f32[2,128,32], index: 0, kind: input, shape index: {}]
  %s1 = inlined_call_operand.vmem [shape: f32[128,128], index: 1, kind: input, shape index: {}]
  %s2 = inlined_call_operand.vmem [shape: f32[32,96], index: 2, kind: input, shape index: {}]
  %s3 = inlined_call_operand.vmem [shape: f32[1,96], index: 3, kind: input, shape index: {}]
  %s4 = inlined_call_operand.vmem [shape: f32[32,32], index: 4, kind: input, shape index: {}]
  %s5 = inlined_call_operand.vmem [shape: f32[1,32], index: 5, kind: input, shape index: {}]
  %s6 = inlined_call_operand.vmem [shape: f32[32,32], index: 6, kind: input, shape index: {}]
  %s7 = inlined_call_operand.vmem [shape: f32[1,32], index: 7, kind: input, shape index: {}]
  %s8 = inlined_call_operand.vmem [shape: f32[2,128,32], index: 8, kind: output, shape index: {}]
  %s9 = sld [smem:[#allocation0]]
  $region65: #{tpu_custom_call.1} parent=0
    _
  %s11 = ssub.s32 1, %s9
  %s12 = scalar_select 0, %s11, %s9
  loop: start=0, step=1, limit=4
  $region2: #{tpu_custom_call.1} parent=0 // loop_pre_header
    _
  $region3: #{tpu_custom_call.1} parent=0 // loop_header
    %s14 = sphi 0, %s18
    %p15 = scmp.ge.s32.totalorder %s14, 4
    %s24 = sphi 0, %s26
    %s27 = sphi 0, %s24
    %s28 = sphi 0, %s27
    %s44 = sphi 0, %s28
    %s48 = sphi 0, %s48
    %s50 = sphi 0, %s48
    %s51 = sphi 0, %s50
    %s65 = sphi 0, %s51
    %s69 = sphi 0, %s69
    %s71 = sphi 0, %s69
    %s72 = sphi 0, %s71
    %s86 = sphi 0, %s72
    %s90 = sphi 0, %s90
    %s92 = sphi 0, %s90
    %s93 = sphi 0, %s92
    %s107 = sphi 0, %s93
    %s111 = sphi 0, %s111
    %s113 = sphi 0, %s111
    %s114 = sphi 0, %s113
    %s128 = sphi 0, %s114
    %s132 = sphi 0, %s132
    %s134 = sphi 0, %s132
    %s135 = sphi 0, %s134
    %s149 = sphi 0, %s135
    %s153 = sphi 0, %s153
    %s155 = sphi 0, %s153
    %s156 = sphi 0, %s155
    %s170 = sphi 0, %s156
    %s174 = sphi 0, %s174
    %s176 = sphi 0, %s174
    %s177 = sphi 0, %s176
    %s191 = sphi 0, %s177
    %s197 = sphi 0, %s199
    %s200 = sphi 0, %s197
    %s201 = sphi 0, %s200
    %s217 = sphi 0, %s201
  $region4: #{tpu_custom_call.1} parent=0 // loop_header_branch
    %17 = sbr.rel (%p15) target = $region8
  $region5: #{tpu_custom_call.1} parent=0 // loop_body
    %s19 = ssub.s32 %s14, 1
    %s20 = ssub.s32 %s14, 2
    %s21 = sadd.s32 %s14, 1
    %s22 = ssub.s32 %s14, %s21
    %p23 = scmp.eq.s32.totalorder %s22, 0
    %s25 = sadd.s32 %s24, 1
    %s26 = scalar_select %p23, %s24, %s25
    %p29 = pneg %p23
    %p30 = scmp.eq.s32.totalorder %s14, 1
    %p31 = por %p29, %p30
    %p32 = scmp.ne.s32.totalorder %s24, %s27
    %p33 = scmp.eq.s32.totalorder %s14, 0
    %p34 = por %p32, %p33
    %p35 = scmp.ne.s32.totalorder %s24, %s27
    %p36 = scmp.eq.s32.totalorder %s19, 1
    %p37 = por %p35, %p36
    %p38 = scmp.ne.s32.totalorder %s27, %s28
    %p39 = scmp.eq.s32.totalorder %s19, 0
    %p40 = por %p38, %p39
    %p41 = scmp.ne.s32.totalorder %s27, %s28
    %p42 = scmp.eq.s32.totalorder %s20, 1
    %p43 = por %p41, %p42
    %p45 = scmp.ne.s32.totalorder %s28, %s44
    %p46 = scmp.eq.s32.totalorder %s20, 0
    %p47 = por %p45, %p46
    %s49 = sadd.s32 %s48, 1
    %p52 = scmp.eq.s32.totalorder %s14, 1
    %p53 = scmp.ne.s32.totalorder %s48, %s50
    %p54 = scmp.eq.s32.totalorder %s14, 0
    %p55 = por %p53, %p54
    %p56 = scmp.ne.s32.totalorder %s48, %s50
    %p57 = scmp.eq.s32.totalorder %s19, 1
    %p58 = por %p56, %p57
    %p59 = scmp.ne.s32.totalorder %s50, %s51
    %p60 = scmp.eq.s32.totalorder %s19, 0
    %p61 = por %p59, %p60
    %p62 = scmp.ne.s32.totalorder %s50, %s51
    %p63 = scmp.eq.s32.totalorder %s20, 1
    %p64 = por %p62, %p63
    %p66 = scmp.ne.s32.totalorder %s51, %s65
    %p67 = scmp.eq.s32.totalorder %s20, 0
    %p68 = por %p66, %p67
    %s70 = sadd.s32 %s69, 1
    %p73 = scmp.eq.s32.totalorder %s14, 1
    %p74 = scmp.ne.s32.totalorder %s69, %s71
    %p75 = scmp.eq.s32.totalorder %s14, 0
    %p76 = por %p74, %p75
    %p77 = scmp.ne.s32.totalorder %s69, %s71
    %p78 = scmp.eq.s32.totalorder %s19, 1
    %p79 = por %p77, %p78
    %p80 = scmp.ne.s32.totalorder %s71, %s72
    %p81 = scmp.eq.s32.totalorder %s19, 0
    %p82 = por %p80, %p81
    %p83 = scmp.ne.s32.totalorder %s71, %s72
    %p84 = scmp.eq.s32.totalorder %s20, 1
    %p85 = por %p83, %p84
    %p87 = scmp.ne.s32.totalorder %s72, %s86
    %p88 = scmp.eq.s32.totalorder %s20, 0
    %p89 = por %p87, %p88
    %s91 = sadd.s32 %s90, 1
    %p94 = scmp.eq.s32.totalorder %s14, 1
    %p95 = scmp.ne.s32.totalorder %s90, %s92
    %p96 = scmp.eq.s32.totalorder %s14, 0
    %p97 = por %p95, %p96
    %p98 = scmp.ne.s32.totalorder %s90, %s92
    %p99 = scmp.eq.s32.totalorder %s19, 1
    %p100 = por %p98, %p99
    %p101 = scmp.ne.s32.totalorder %s92, %s93
    %p102 = scmp.eq.s32.totalorder %s19, 0
    %p103 = por %p101, %p102
    %p104 = scmp.ne.s32.totalorder %s92, %s93
    %p105 = scmp.eq.s32.totalorder %s20, 1
    %p106 = por %p104, %p105
    %p108 = scmp.ne.s32.totalorder %s93, %s107
    %p109 = scmp.eq.s32.totalorder %s20, 0
    %p110 = por %p108, %p109
    %s112 = sadd.s32 %s111, 1
    %p115 = scmp.eq.s32.totalorder %s14, 1
    %p116 = scmp.ne.s32.totalorder %s111, %s113
    %p117 = scmp.eq.s32.totalorder %s14, 0
    %p118 = por %p116, %p117
    %p119 = scmp.ne.s32.totalorder %s111, %s113
    %p120 = scmp.eq.s32.totalorder %s19, 1
    %p121 = por %p119, %p120
    %p122 = scmp.ne.s32.totalorder %s113, %s114
    %p123 = scmp.eq.s32.totalorder %s19, 0
    %p124 = por %p122, %p123
    %p125 = scmp.ne.s32.totalorder %s113, %s114
    %p126 = scmp.eq.s32.totalorder %s20, 1
    %p127 = por %p125, %p126
    %p129 = scmp.ne.s32.totalorder %s114, %s128
    %p130 = scmp.eq.s32.totalorder %s20, 0
    %p131 = por %p129, %p130
    %s133 = sadd.s32 %s132, 1
    %p136 = scmp.eq.s32.totalorder %s14, 1
    %p137 = scmp.ne.s32.totalorder %s132, %s134
    %p138 = scmp.eq.s32.totalorder %s14, 0
    %p139 = por %p137, %p138
    %p140 = scmp.ne.s32.totalorder %s132, %s134
    %p141 = scmp.eq.s32.totalorder %s19, 1
    %p142 = por %p140, %p141
    %p143 = scmp.ne.s32.totalorder %s134, %s135
    %p144 = scmp.eq.s32.totalorder %s19, 0
    %p145 = por %p143, %p144
    %p146 = scmp.ne.s32.totalorder %s134, %s135
    %p147 = scmp.eq.s32.totalorder %s20, 1
    %p148 = por %p146, %p147
    %p150 = scmp.ne.s32.totalorder %s135, %s149
    %p151 = scmp.eq.s32.totalorder %s20, 0
    %p152 = por %p150, %p151
    %s154 = sadd.s32 %s153, 1
    %p157 = scmp.eq.s32.totalorder %s14, 1
    %p158 = scmp.ne.s32.totalorder %s153, %s155
    %p159 = scmp.eq.s32.totalorder %s14, 0
    %p160 = por %p158, %p159
    %p161 = scmp.ne.s32.totalorder %s153, %s155
    %p162 = scmp.eq.s32.totalorder %s19, 1
    %p163 = por %p161, %p162
    %p164 = scmp.ne.s32.totalorder %s155, %s156
    %p165 = scmp.eq.s32.totalorder %s19, 0
    %p166 = por %p164, %p165
    %p167 = scmp.ne.s32.totalorder %s155, %s156
    %p168 = scmp.eq.s32.totalorder %s20, 1
    %p169 = por %p167, %p168
    %p171 = scmp.ne.s32.totalorder %s156, %s170
    %p172 = scmp.eq.s32.totalorder %s20, 0
    %p173 = por %p171, %p172
    %s175 = sadd.s32 %s174, 1
    %p178 = scmp.eq.s32.totalorder %s14, 1
    %p179 = scmp.ne.s32.totalorder %s174, %s176
    %p180 = scmp.eq.s32.totalorder %s14, 0
    %p181 = por %p179, %p180
    %p182 = scmp.ne.s32.totalorder %s174, %s176
    %p183 = scmp.eq.s32.totalorder %s19, 1
    %p184 = por %p182, %p183
    %p185 = scmp.ne.s32.totalorder %s176, %s177
    %p186 = scmp.eq.s32.totalorder %s19, 0
    %p187 = por %p185, %p186
    %p188 = scmp.ne.s32.totalorder %s176, %s177
    %p189 = scmp.eq.s32.totalorder %s20, 1
    %p190 = por %p188, %p189
    %p192 = scmp.ne.s32.totalorder %s177, %s191
    %p193 = scmp.eq.s32.totalorder %s20, 0
    %p194 = por %p192, %p193
    %s195 = ssub.s32 %s14, %s21
    %p196 = scmp.eq.s32.totalorder %s195, 0
    %s198 = sadd.s32 %s197, 1
    %s199 = scalar_select %p196, %s197, %s198
    %p202 = pneg %p196
    %p203 = scmp.eq.s32.totalorder %s14, 1
    %p204 = por %p202, %p203
    %p205 = scmp.ne.s32.totalorder %s197, %s200
    %p206 = scmp.eq.s32.totalorder %s14, 0
    %p207 = por %p205, %p206
    %p208 = scmp.ne.s32.totalorder %s197, %s200
    %p209 = scmp.eq.s32.totalorder %s19, 1
    %p210 = por %p208, %p209
    %p211 = scmp.ne.s32.totalorder %s200, %s201
    %p212 = scmp.eq.s32.totalorder %s19, 0
    %p213 = por %p211, %p212
    %p214 = scmp.ne.s32.totalorder %s200, %s201
    %p215 = scmp.eq.s32.totalorder %s20, 1
    %p216 = por %p214, %p215
    %p218 = scmp.ne.s32.totalorder %s201, %s217
    %p219 = scmp.eq.s32.totalorder %s20, 0
    %p220 = por %p218, %p219
    %p221 = scmp.le.s32.totalorder 1, %s14
    %p222 = scmp.lt.s32.totalorder %s14, 3
    %p223 = pnand %p221, %p222
    %p224 = pneg %p223
    // Predicated region
    $region9: #{tpu_custom_call.1} parent=5 // pred_check
      _
    $region10: #{tpu_custom_call.1} parent=5 // pred_check_branch
      %226 = sbr.rel (%p223) target = $region12
    $region11: #{tpu_custom_call.1} parent=5 // pred_region
      %s227 = ssub.s32 %s14, 1
      // Predicated region
      $region13: #{tpu_custom_call.1} parent=11 // pred_check
        %p228 = pneg %p61
      $region14: #{tpu_custom_call.1} parent=11 // pred_check_branch
        %230 = sbr.rel (%p228) target = $region16
      $region15: #{tpu_custom_call.1} parent=11 // pred_region
        _
      $region16: #{tpu_custom_call.1} parent=11 // pred_fallthru
        _
      // Predicated region
      $region17: #{tpu_custom_call.1} parent=11 // pred_check
        %p231 = pneg %p82
      $region18: #{tpu_custom_call.1} parent=11 // pred_check_branch
        %233 = sbr.rel (%p231) target = $region20
      $region19: #{tpu_custom_call.1} parent=11 // pred_region
        _
      $region20: #{tpu_custom_call.1} parent=11 // pred_fallthru
        _
      // Predicated region
      $region21: #{tpu_custom_call.1} parent=11 // pred_check
        %p234 = pneg %p103
      $region22: #{tpu_custom_call.1} parent=11 // pred_check_branch
        %236 = sbr.rel (%p234) target = $region24
      $region23: #{tpu_custom_call.1} parent=11 // pred_region
        _
      $region24: #{tpu_custom_call.1} parent=11 // pred_fallthru
        _
      // Predicated region
      $region25: #{tpu_custom_call.1} parent=11 // pred_check
        %p237 = pneg %p124
      $region26: #{tpu_custom_call.1} parent=11 // pred_check_branch
        %239 = sbr.rel (%p237) target = $region28
      $region27: #{tpu_custom_call.1} parent=11 // pred_region
        _
      $region28: #{tpu_custom_call.1} parent=11 // pred_fallthru
        _
      // Predicated region
      $region29: #{tpu_custom_call.1} parent=11 // pred_check
        %p240 = pneg %p145
      $region30: #{tpu_custom_call.1} parent=11 // pred_check_branch
        %242 = sbr.rel (%p240) target = $region32
      $region31: #{tpu_custom_call.1} parent=11 // pred_region
        _
      $region32: #{tpu_custom_call.1} parent=11 // pred_fallthru
        _
      // Predicated region
      $region33: #{tpu_custom_call.1} parent=11 // pred_check
        %p243 = pneg %p166
      $region34: #{tpu_custom_call.1} parent=11 // pred_check_branch
        %245 = sbr.rel (%p243) target = $region36
      $region35: #{tpu_custom_call.1} parent=11 // pred_region
        _
      $region36: #{tpu_custom_call.1} parent=11 // pred_fallthru
        _
      // Predicated region
      $region37: #{tpu_custom_call.1} parent=11 // pred_check
        %p246 = pneg %p187
      $region38: #{tpu_custom_call.1} parent=11 // pred_check_branch
        %248 = sbr.rel (%p246) target = $region40
      $region39: #{tpu_custom_call.1} parent=11 // pred_region
        _
      $region40: #{tpu_custom_call.1} parent=11 // pred_fallthru
        _
    $region12: #{tpu_custom_call.1} parent=5 // pred_fallthru
      _
    %p249 = scmp.lt.s32.totalorder %s14, 2
    // Predicated region
    $region41: #{tpu_custom_call.1} parent=5 // pred_check
      %p250 = pneg %p249
    $region42: #{tpu_custom_call.1} parent=5 // pred_check_branch
      %252 = sbr.rel (%p250) target = $region44
    $region43: #{tpu_custom_call.1} parent=5 // pred_region
      // Predicated region
      $region45: #{tpu_custom_call.1} parent=43 // pred_check
        %p253 = pneg %p34
      $region46: #{tpu_custom_call.1} parent=43 // pred_check_branch
        %255 = sbr.rel (%p253) target = $region48
      $region47: #{tpu_custom_call.1} parent=43 // pred_region
        %p256 = scmp.lt.s32.totalorder %s14, 1
        %s257 = scalar_select %p256, %s14, 1
        %s258 = smul.addr %s257, 16
        %s259 = smul.addr %s258, 8
        %s260 = scalar_lea.vmem %s0, %s259
      $region48: #{tpu_custom_call.1} parent=43 // pred_fallthru
        _
    $region44: #{tpu_custom_call.1} parent=5 // pred_fallthru
      _
    %p261 = scmp.le.s32.totalorder 1, %s14
    %p262 = scmp.lt.s32.totalorder %s14, 3
    %p263 = pnand %p261, %p262
    %p264 = pneg %p263
    // Predicated region
    $region49: #{tpu_custom_call.1} parent=5 // pred_check
      _
    $region50: #{tpu_custom_call.1} parent=5 // pred_check_branch
      %266 = sbr.rel (%p263) target = $region52
    $region51: #{tpu_custom_call.1} parent=5 // pred_region
      %s267 = ssub.s32 %s14, 1
      %p268 = scmp.lt.s32.totalorder %s19, 1
      %s269 = scalar_select %p268, %s19, 1
      %s270 = smul.addr %s269, 16
      %s271 = smul.addr %s270, 8
      %s272 = scalar_lea.vmem %s0, %s271
      %p273 = pneg %p40
      %p274 = pneg %p37
      %p275 = pneg %p61
      %p276 = pneg %p58
      %p277 = pneg %p82
      %p278 = pneg %p79
      %p279 = pneg %p103
      %p280 = pneg %p100
      %p281 = pneg %p124
      %p282 = pneg %p121
      %p283 = pneg %p145
      %p284 = pneg %p142
      %p285 = pneg %p166
      %p286 = pneg %p163
      %p287 = pneg %p187
      %p288 = pneg %p184
      %p289 = pneg %p213
      %p290 = pneg %p210
      %p291 = scmp.lt.s32.totalorder %s19, 1
      %s292 = scalar_select %p291, %s19, 1
      %s293 = smul.addr %s292, 16
      %s294 = smul.addr %s293, 8
      %s295 = scalar_lea.vmem %s8, %s294
      %p296 = scmp.lt.s32.totalorder %s19, 1
      %s297 = scalar_select %p296, %s19, 1
      %s298 = smul.addr %s297, 16
      %s299 = smul.addr %s298, 8
      %s300 = scalar_lea.vmem %s0, %s299
      %p301 = scmp.lt.s32.totalorder %s19, 1
      %s302 = scalar_select %p301, %s19, 1
      %s303 = smul.addr %s302, 16
      %s304 = smul.addr %s303, 8
      %s305 = scalar_lea.vmem %s8, %s304
      %v306 = vld [vmem:[%s300] sm:$0xff]
      %v307 = vld [vmem:[%s300 + $0x8] sm:$0xff]
      %v308 = vld [vmem:[%s300 + $0x10] sm:$0xff]
      %v309 = vld [vmem:[%s300 + $0x18] sm:$0xff]
      %v310 = vld [vmem:[%s300 + $0x20] sm:$0xff]
      %v311 = vld [vmem:[%s300 + $0x28] sm:$0xff]
      %v312 = vld [vmem:[%s300 + $0x30] sm:$0xff]
      %v313 = vld [vmem:[%s300 + $0x38] sm:$0xff]
      %v314 = vld [vmem:[%s300 + $0x40] sm:$0xff]
      %v315 = vld [vmem:[%s300 + $0x48] sm:$0xff]
      %v316 = vld [vmem:[%s300 + $0x50] sm:$0xff]
      %v317 = vld [vmem:[%s300 + $0x58] sm:$0xff]
      %v318 = vld [vmem:[%s300 + $0x60] sm:$0xff]
      %v319 = vld [vmem:[%s300 + $0x68] sm:$0xff]
      %v320 = vld [vmem:[%s300 + $0x70] sm:$0xff]
      %v321 = vld [vmem:[%s300 + $0x78] sm:$0xff]
      %v322 = vld [vmem:[%s2] sm:$0xff]
      %v323 = vld [vmem:[%s2 + $0x8] sm:$0xff]
      %v324 = vld [vmem:[%s2 + $0x10] sm:$0xff]
      %v325 = vld [vmem:[%s2 + $0x18] sm:$0xff]
      %v326 = vld [vmem:[%s3] sm:$0x1]
      %v328 = vlaneseq
      %v329 = vshrl.u32 %v328, 7
      %v330 = vsub.s32 0, %v329
      %v331 = vrot.slane %v326, %v330
      %vm333 = vcmask 261120
      %v335 = vsel %vm333, %v306, 0
      %v338 = vsel %vm333, %v307, 0
      %v341 = vsel %vm333, %v308, 0
      %v344 = vsel %vm333, %v309, 0
      %v347 = vsel %vm333, %v310, 0
      %v350 = vsel %vm333, %v311, 0
      %v353 = vsel %vm333, %v312, 0
      %v356 = vsel %vm333, %v313, 0
      %v359 = vsel %vm333, %v314, 0
      %v362 = vsel %vm333, %v315, 0
      %v365 = vsel %vm333, %v316, 0
      %v368 = vsel %vm333, %v317, 0
      %v371 = vsel %vm333, %v318, 0
      %v374 = vsel %vm333, %v319, 0
      %v377 = vsel %vm333, %v320, 0
      %v380 = vsel %vm333, %v321, 0
      %382 = vmatprep.subr.mxu0 0.0
      %383 = vmatpush1.msra.mxu0 0.0
      %384 = vmatprep.subr.mxu0 0.0
      %385 = vmatpush1.msra.mxu0 0.0
      %386 = vmatprep.subr.mxu0 0.0
      %387 = vmatpush1.msra.mxu0 0.0
      %388 = vmatprep.subr.mxu0 0.0
      %389 = vmatpush1.msra.mxu0 0.0
      %390 = vmatprep.subr.mxu0 0.0
      %391 = vmatpush1.msra.mxu0 0.0
      %392 = vmatprep.subr.mxu0 0.0
      %393 = vmatpush1.msra.mxu0 0.0
      %394 = vmatprep.subr.mxu0 0.0
      %395 = vmatpush1.msra.mxu0 0.0
      %396 = vmatprep.subr.mxu0 0.0
      %397 = vmatpush1.msra.mxu0 0.0
      %398 = vmatprep.subr.mxu0 0.0
      %399 = vmatpush1.msra.mxu0 0.0
      %400 = vmatprep.subr.mxu0 0.0
      %401 = vmatpush1.msra.mxu0 0.0
      %402 = vmatprep.subr.mxu0 0.0
      %403 = vmatpush1.msra.mxu0 0.0
      %404 = vmatprep.subr.mxu0 0.0
      %405 = vmatpush1.msra.mxu0 0.0
      %406 = vmatprep.subr.mxu0 0.0
      %407 = vmatpush1.msra.mxu0 %v325
      %408 = vmatprep.subr.mxu0 0.0
      %409 = vmatpush1.msra.mxu0 %v324
      %410 = vmatprep.subr.mxu0 0.0
      %411 = vmatpush1.msra.mxu0 %v323
      %412 = vmatprep.subr.mxu0 0.0
      %413 = vmatpush1.msra.mxu0 %v322
      %414 = vmatprep.subr.mxu0 0.0
      %415 = vmatpush2.msra.mxu0 0.0
      %416 = vmatprep.subr.mxu0 0.0
      %417 = vmatpush2.msra.mxu0 0.0
      %418 = vmatprep.subr.mxu0 0.0
      %419 = vmatpush2.msra.mxu0 0.0
      %420 = vmatprep.subr.mxu0 0.0
      %421 = vmatpush2.msra.mxu0 0.0
      %422 = vmatprep.subr.mxu0 0.0
      %423 = vmatpush2.msra.mxu0 0.0
      %424 = vmatprep.subr.mxu0 0.0
      %425 = vmatpush2.msra.mxu0 0.0
      %426 = vmatprep.subr.mxu0 0.0
      %427 = vmatpush2.msra.mxu0 0.0
      %428 = vmatprep.subr.mxu0 0.0
      %429 = vmatpush2.msra.mxu0 0.0
      %430 = vmatprep.subr.mxu0 0.0
      %431 = vmatpush2.msra.mxu0 0.0
      %432 = vmatprep.subr.mxu0 0.0
      %433 = vmatpush2.msra.mxu0 0.0
      %434 = vmatprep.subr.mxu0 0.0
      %435 = vmatpush2.msra.mxu0 0.0
      %436 = vmatprep.subr.mxu0 0.0
      %437 = vmatpush2.msra.mxu0 0.0
      %438 = vmatprep.subr.mxu0 0.0
      %439 = vmatpush2.msra.mxu0 0.0
      %440 = vmatprep.subr.mxu0 0.0
      %441 = vmatpush2.msra.mxu0 0.0
      %442 = vmatprep.subr.mxu0 0.0
      %443 = vmatpush2.msra.mxu0 0.0
      %444 = vmatprep.subr.mxu0 0.0
      %445 = vmatpush2.msra.mxu0 0.0
      %446 = vmatprep.mubr.f32.mxu0 0.0
      %447 = vmatmul.mubr.f32.gmra.mxu0 %v335
      %v448 = vpop.f32.mrf.mxu0
      %v449 = vadd.f32 %v331, %v448
      %v450 = vpop.f32.mrf.mxu0
      %451 = vmatprep.mubr.f32.mxu0 0.0
      %452 = vmatmul.mubr.f32.gmra.mxu0 %v338
      %v453 = vpop.f32.mrf.mxu0
      %v454 = vadd.f32 %v331, %v453
      %v455 = vpop.f32.mrf.mxu0
      %456 = vmatprep.mubr.f32.mxu0 0.0
      %457 = vmatmul.mubr.f32.gmra.mxu0 %v341
      %v458 = vpop.f32.mrf.mxu0
      %v459 = vadd.f32 %v331, %v458
      %v460 = vpop.f32.mrf.mxu0
      %461 = vmatprep.mubr.f32.mxu0 0.0
      %462 = vmatmul.mubr.f32.gmra.mxu0 %v344
      %v463 = vpop.f32.mrf.mxu0
      %v464 = vadd.f32 %v331, %v463
      %v465 = vpop.f32.mrf.mxu0
      %466 = vmatprep.mubr.f32.mxu0 0.0
      %467 = vmatmul.mubr.f32.gmra.mxu0 %v347
      %v468 = vpop.f32.mrf.mxu0
      %v469 = vadd.f32 %v331, %v468
      %v470 = vpop.f32.mrf.mxu0
      %471 = vmatprep.mubr.f32.mxu0 0.0
      %472 = vmatmul.mubr.f32.gmra.mxu0 %v350
      %v473 = vpop.f32.mrf.mxu0
      %v474 = vadd.f32 %v331, %v473
      %v475 = vpop.f32.mrf.mxu0
      %476 = vmatprep.mubr.f32.mxu0 0.0
      %477 = vmatmul.mubr.f32.gmra.mxu0 %v353
      %v478 = vpop.f32.mrf.mxu0
      %v479 = vadd.f32 %v331, %v478
      %v480 = vpop.f32.mrf.mxu0
      %481 = vmatprep.mubr.f32.mxu0 0.0
      %482 = vmatmul.mubr.f32.gmra.mxu0 %v356
      %v483 = vpop.f32.mrf.mxu0
      %v484 = vadd.f32 %v331, %v483
      %v485 = vpop.f32.mrf.mxu0
      %486 = vmatprep.mubr.f32.mxu0 0.0
      %487 = vmatmul.mubr.f32.gmra.mxu0 %v359
      %v488 = vpop.f32.mrf.mxu0
      %v489 = vadd.f32 %v331, %v488
      %v490 = vpop.f32.mrf.mxu0
      %491 = vmatprep.mubr.f32.mxu0 0.0
      %492 = vmatmul.mubr.f32.gmra.mxu0 %v362
      %v493 = vpop.f32.mrf.mxu0
      %v494 = vadd.f32 %v331, %v493
      %v495 = vpop.f32.mrf.mxu0
      %496 = vmatprep.mubr.f32.mxu0 0.0
      %497 = vmatmul.mubr.f32.gmra.mxu0 %v365
      %v498 = vpop.f32.mrf.mxu0
      %v499 = vadd.f32 %v331, %v498
      %v500 = vpop.f32.mrf.mxu0
      %501 = vmatprep.mubr.f32.mxu0 0.0
      %502 = vmatmul.mubr.f32.gmra.mxu0 %v368
      %v503 = vpop.f32.mrf.mxu0
      %v504 = vadd.f32 %v331, %v503
      %v505 = vpop.f32.mrf.mxu0
      %506 = vmatprep.mubr.f32.mxu0 0.0
      %507 = vmatmul.mubr.f32.gmra.mxu0 %v371
      %v508 = vpop.f32.mrf.mxu0
      %v509 = vadd.f32 %v331, %v508
      %v510 = vpop.f32.mrf.mxu0
      %511 = vmatprep.mubr.f32.mxu0 0.0
      %512 = vmatmul.mubr.f32.gmra.mxu0 %v374
      %v513 = vpop.f32.mrf.mxu0
      %v514 = vadd.f32 %v331, %v513
      %v515 = vpop.f32.mrf.mxu0
      %516 = vmatprep.mubr.f32.mxu0 0.0
      %517 = vmatmul.mubr.f32.gmra.mxu0 %v377
      %v518 = vpop.f32.mrf.mxu0
      %v519 = vadd.f32 %v331, %v518
      %v520 = vpop.f32.mrf.mxu0
      %521 = vmatprep.mubr.f32.mxu0 0.0
      %522 = vmatmul.mubr.f32.gmra.mxu0 %v380
      %v523 = vpop.f32.mrf.mxu0
      %v524 = vadd.f32 %v331, %v523
      %v525 = vpop.f32.mrf.mxu0
      %526 = vdwg.mxu0
      %v527 = vmax.f32 %v449, 0.0
      %v528 = vmax.f32 %v454, 0.0
      %v529 = vmax.f32 %v459, 0.0
      %v530 = vmax.f32 %v464, 0.0
      %v531 = vmax.f32 %v469, 0.0
      %v532 = vmax.f32 %v474, 0.0
      %v533 = vmax.f32 %v479, 0.0
      %v534 = vmax.f32 %v484, 0.0
      %v535 = vmax.f32 %v489, 0.0
      %v536 = vmax.f32 %v494, 0.0
      %v537 = vmax.f32 %v499, 0.0
      %v538 = vmax.f32 %v504, 0.0
      %v539 = vmax.f32 %v509, 0.0
      %v540 = vmax.f32 %v514, 0.0
      %v541 = vmax.f32 %v519, 0.0
      %v542 = vmax.f32 %v524, 0.0
      %v543 = vld [vmem:[%s1] sm:$0xff]
      %v544 = vld [vmem:[%s1 + $0x8] sm:$0xff]
      %v545 = vld [vmem:[%s1 + $0x10] sm:$0xff]
      %v546 = vld [vmem:[%s1 + $0x18] sm:$0xff]
      %v547 = vld [vmem:[%s1 + $0x20] sm:$0xff]
      %v548 = vld [vmem:[%s1 + $0x28] sm:$0xff]
      %v549 = vld [vmem:[%s1 + $0x30] sm:$0xff]
      %v550 = vld [vmem:[%s1 + $0x38] sm:$0xff]
      %v551 = vld [vmem:[%s1 + $0x40] sm:$0xff]
      %v552 = vld [vmem:[%s1 + $0x48] sm:$0xff]
      %v553 = vld [vmem:[%s1 + $0x50] sm:$0xff]
      %v554 = vld [vmem:[%s1 + $0x58] sm:$0xff]
      %v555 = vld [vmem:[%s1 + $0x60] sm:$0xff]
      %v556 = vld [vmem:[%s1 + $0x68] sm:$0xff]
      %v557 = vld [vmem:[%s1 + $0x70] sm:$0xff]
      %v558 = vld [vmem:[%s1 + $0x78] sm:$0xff]
      %v559 = vld [vmem:[%s4] sm:$0xff]
      %v560 = vld [vmem:[%s4 + $0x8] sm:$0xff]
      %v561 = vld [vmem:[%s4 + $0x10] sm:$0xff]
      %v562 = vld [vmem:[%s4 + $0x18] sm:$0xff]
      %579 = vrot.lane.b32.xlu0 %v527, 96
      %v580 = vpop.permute.xlu0 %579
      %581 = vrot.lane.b32.xlu0 %v528, 96
      %v582 = vpop.permute.xlu0 %581
      %583 = vrot.lane.b32.xlu0 %v529, 96
      %v584 = vpop.permute.xlu0 %583
      %585 = vrot.lane.b32.xlu0 %v530, 96
      %v586 = vpop.permute.xlu0 %585
      %587 = vrot.lane.b32.xlu0 %v531, 96
      %v588 = vpop.permute.xlu0 %587
      %589 = vrot.lane.b32.xlu0 %v532, 96
      %v590 = vpop.permute.xlu0 %589
      %591 = vrot.lane.b32.xlu0 %v533, 96
      %v592 = vpop.permute.xlu0 %591
      %593 = vrot.lane.b32.xlu0 %v534, 96
      %v594 = vpop.permute.xlu0 %593
      %595 = vrot.lane.b32.xlu0 %v535, 96
      %v596 = vpop.permute.xlu0 %595
      %597 = vrot.lane.b32.xlu0 %v536, 96
      %v598 = vpop.permute.xlu0 %597
      %599 = vrot.lane.b32.xlu0 %v537, 96
      %v600 = vpop.permute.xlu0 %599
      %601 = vrot.lane.b32.xlu0 %v538, 96
      %v602 = vpop.permute.xlu0 %601
      %603 = vrot.lane.b32.xlu0 %v539, 96
      %v604 = vpop.permute.xlu0 %603
      %605 = vrot.lane.b32.xlu0 %v540, 96
      %v606 = vpop.permute.xlu0 %605
      %607 = vrot.lane.b32.xlu0 %v541, 96
      %v608 = vpop.permute.xlu0 %607
      %609 = vrot.lane.b32.xlu0 %v542, 96
      %v610 = vpop.permute.xlu0 %609
      %vm611 = vcmask 64512
      %v612 = vsel %vm611, %v527, 0
      %v614 = vsel %vm611, %v528, 0
      %v616 = vsel %vm611, %v529, 0
      %v618 = vsel %vm611, %v530, 0
      %v620 = vsel %vm611, %v531, 0
      %v622 = vsel %vm611, %v532, 0
      %v624 = vsel %vm611, %v533, 0
      %v626 = vsel %vm611, %v534, 0
      %v628 = vsel %vm611, %v535, 0
      %v630 = vsel %vm611, %v536, 0
      %v632 = vsel %vm611, %v537, 0
      %v634 = vsel %vm611, %v538, 0
      %v636 = vsel %vm611, %v539, 0
      %v638 = vsel %vm611, %v540, 0
      %v640 = vsel %vm611, %v541, 0
      %v642 = vsel %vm611, %v542, 0
      %v644 = vsel %vm611, %v580, 0
      %v646 = vsel %vm611, %v582, 0
      %v648 = vsel %vm611, %v584, 0
      %v650 = vsel %vm611, %v586, 0
      %v652 = vsel %vm611, %v588, 0
      %v654 = vsel %vm611, %v590, 0
      %v656 = vsel %vm611, %v592, 0
      %v658 = vsel %vm611, %v594, 0
      %v660 = vsel %vm611, %v596, 0
      %v662 = vsel %vm611, %v598, 0
      %v664 = vsel %vm611, %v600, 0
      %v666 = vsel %vm611, %v602, 0
      %v668 = vsel %vm611, %v604, 0
      %v670 = vsel %vm611, %v606, 0
      %v672 = vsel %vm611, %v608, 0
      %v674 = vsel %vm611, %v610, 0
      %676 = vmatprep.subr.mxu0 0.0
      %677 = vmatpush1.xpose.msra.mxu0 %v674
      %678 = vmatprep.subr.mxu0 0.0
      %679 = vmatpush1.xpose.msra.mxu0 %v672
      %680 = vmatprep.subr.mxu0 0.0
      %681 = vmatpush1.xpose.msra.mxu0 %v670
      %682 = vmatprep.subr.mxu0 0.0
      %683 = vmatpush1.xpose.msra.mxu0 %v668
      %684 = vmatprep.subr.mxu0 0.0
      %685 = vmatpush1.xpose.msra.mxu0 %v666
      %686 = vmatprep.subr.mxu0 0.0
      %687 = vmatpush1.xpose.msra.mxu0 %v664
      %688 = vmatprep.subr.mxu0 0.0
      %689 = vmatpush1.xpose.msra.mxu0 %v662
      %690 = vmatprep.subr.mxu0 0.0
      %691 = vmatpush1.xpose.msra.mxu0 %v660
      %692 = vmatprep.subr.mxu0 0.0
      %693 = vmatpush1.xpose.msra.mxu0 %v658
      %694 = vmatprep.subr.mxu0 0.0
      %695 = vmatpush1.xpose.msra.mxu0 %v656
      %696 = vmatprep.subr.mxu0 0.0
      %697 = vmatpush1.xpose.msra.mxu0 %v654
      %698 = vmatprep.subr.mxu0 0.0
      %699 = vmatpush1.xpose.msra.mxu0 %v652
      %700 = vmatprep.subr.mxu0 0.0
      %701 = vmatpush1.xpose.msra.mxu0 %v650
      %702 = vmatprep.subr.mxu0 0.0
      %703 = vmatpush1.xpose.msra.mxu0 %v648
      %704 = vmatprep.subr.mxu0 0.0
      %705 = vmatpush1.xpose.msra.mxu0 %v646
      %706 = vmatprep.subr.mxu0 0.0
      %707 = vmatpush1.xpose.msra.mxu0 %v644
      %708 = vmatprep.subr.mxu0 0.0
      %709 = vmatpush2.xpose.msra.mxu0 0.0
      %710 = vmatprep.subr.mxu0 0.0
      %711 = vmatpush2.xpose.msra.mxu0 0.0
      %712 = vmatprep.subr.mxu0 0.0
      %713 = vmatpush2.xpose.msra.mxu0 0.0
      %714 = vmatprep.subr.mxu0 0.0
      %715 = vmatpush2.xpose.msra.mxu0 0.0
      %716 = vmatprep.subr.mxu0 0.0
      %717 = vmatpush2.xpose.msra.mxu0 0.0
      %718 = vmatprep.subr.mxu0 0.0
      %719 = vmatpush2.xpose.msra.mxu0 0.0
      %720 = vmatprep.subr.mxu0 0.0
      %721 = vmatpush2.xpose.msra.mxu0 0.0
      %722 = vmatprep.subr.mxu0 0.0
      %723 = vmatpush2.xpose.msra.mxu0 0.0
      %724 = vmatprep.subr.mxu0 0.0
      %725 = vmatpush2.xpose.msra.mxu0 0.0
      %726 = vmatprep.subr.mxu0 0.0
      %727 = vmatpush2.xpose.msra.mxu0 0.0
      %728 = vmatprep.subr.mxu0 0.0
      %729 = vmatpush2.xpose.msra.mxu0 0.0
      %730 = vmatprep.subr.mxu0 0.0
      %731 = vmatpush2.xpose.msra.mxu0 0.0
      %732 = vmatprep.subr.mxu0 0.0
      %733 = vmatpush2.xpose.msra.mxu0 0.0
      %734 = vmatprep.subr.mxu0 0.0
      %735 = vmatpush2.xpose.msra.mxu0 0.0
      %736 = vmatprep.subr.mxu0 0.0
      %737 = vmatpush2.xpose.msra.mxu0 0.0
      %738 = vmatprep.subr.mxu0 0.0
      %739 = vmatpush2.xpose.msra.mxu0 0.0
      %740 = vmatprep.mubr.f32.mxu0 0.0
      %741 = vmatmul.mubr.f32.gmra.mxu0 %v612
      %v742 = vpop.f32.mrf.mxu0
      %v743 = vadd.f32 0.0, %v742
      %v744 = vpop.f32.mrf.mxu0
      %745 = vmatprep.mubr.f32.mxu0 0.0
      %746 = vmatmul.mubr.f32.gmra.mxu0 %v614
      %v747 = vpop.f32.mrf.mxu0
      %v748 = vadd.f32 0.0, %v747
      %v749 = vpop.f32.mrf.mxu0
      %750 = vmatprep.mubr.f32.mxu0 0.0
      %751 = vmatmul.mubr.f32.gmra.mxu0 %v616
      %v752 = vpop.f32.mrf.mxu0
      %v753 = vadd.f32 0.0, %v752
      %v754 = vpop.f32.mrf.mxu0
      %755 = vmatprep.mubr.f32.mxu0 0.0
      %756 = vmatmul.mubr.f32.gmra.mxu0 %v618
      %v757 = vpop.f32.mrf.mxu0
      %v758 = vadd.f32 0.0, %v757
      %v759 = vpop.f32.mrf.mxu0
      %760 = vmatprep.mubr.f32.mxu0 0.0
      %761 = vmatmul.mubr.f32.gmra.mxu0 %v620
      %v762 = vpop.f32.mrf.mxu0
      %v763 = vadd.f32 0.0, %v762
      %v764 = vpop.f32.mrf.mxu0
      %765 = vmatprep.mubr.f32.mxu0 0.0
      %766 = vmatmul.mubr.f32.gmra.mxu0 %v622
      %v767 = vpop.f32.mrf.mxu0
      %v768 = vadd.f32 0.0, %v767
      %v769 = vpop.f32.mrf.mxu0
      %770 = vmatprep.mubr.f32.mxu0 0.0
      %771 = vmatmul.mubr.f32.gmra.mxu0 %v624
      %v772 = vpop.f32.mrf.mxu0
      %v773 = vadd.f32 0.0, %v772
      %v774 = vpop.f32.mrf.mxu0
      %775 = vmatprep.mubr.f32.mxu0 0.0
      %776 = vmatmul.mubr.f32.gmra.mxu0 %v626
      %v777 = vpop.f32.mrf.mxu0
      %v778 = vadd.f32 0.0, %v777
      %v779 = vpop.f32.mrf.mxu0
      %780 = vmatprep.mubr.f32.mxu0 0.0
      %781 = vmatmul.mubr.f32.gmra.mxu0 %v628
      %v782 = vpop.f32.mrf.mxu0
      %v783 = vadd.f32 0.0, %v782
      %v784 = vpop.f32.mrf.mxu0
      %785 = vmatprep.mubr.f32.mxu0 0.0
      %786 = vmatmul.mubr.f32.gmra.mxu0 %v630
      %v787 = vpop.f32.mrf.mxu0
      %v788 = vadd.f32 0.0, %v787
      %v789 = vpop.f32.mrf.mxu0
      %790 = vmatprep.mubr.f32.mxu0 0.0
      %791 = vmatmul.mubr.f32.gmra.mxu0 %v632
      %v792 = vpop.f32.mrf.mxu0
      %v793 = vadd.f32 0.0, %v792
      %v794 = vpop.f32.mrf.mxu0
      %795 = vmatprep.mubr.f32.mxu0 0.0
      %796 = vmatmul.mubr.f32.gmra.mxu0 %v634
      %v797 = vpop.f32.mrf.mxu0
      %v798 = vadd.f32 0.0, %v797
      %v799 = vpop.f32.mrf.mxu0
      %800 = vmatprep.mubr.f32.mxu0 0.0
      %801 = vmatmul.mubr.f32.gmra.mxu0 %v636
      %v802 = vpop.f32.mrf.mxu0
      %v803 = vadd.f32 0.0, %v802
      %v804 = vpop.f32.mrf.mxu0
      %805 = vmatprep.mubr.f32.mxu0 0.0
      %806 = vmatmul.mubr.f32.gmra.mxu0 %v638
      %v807 = vpop.f32.mrf.mxu0
      %v808 = vadd.f32 0.0, %v807
      %v809 = vpop.f32.mrf.mxu0
      %810 = vmatprep.mubr.f32.mxu0 0.0
      %811 = vmatmul.mubr.f32.gmra.mxu0 %v640
      %v812 = vpop.f32.mrf.mxu0
      %v813 = vadd.f32 0.0, %v812
      %v814 = vpop.f32.mrf.mxu0
      %815 = vmatprep.mubr.f32.mxu0 0.0
      %816 = vmatmul.mubr.f32.gmra.mxu0 %v642
      %v817 = vpop.f32.mrf.mxu0
      %v818 = vadd.f32 0.0, %v817
      %v819 = vpop.f32.mrf.mxu0
      %820 = vdwg.mxu0
      %v821 = vmul.f32 %v743, 0.35355338
      %v822 = vmul.f32 %v748, 0.35355338
      %v823 = vmul.f32 %v753, 0.35355338
      %v824 = vmul.f32 %v758, 0.35355338
      %v825 = vmul.f32 %v763, 0.35355338
      %v826 = vmul.f32 %v768, 0.35355338
      %v827 = vmul.f32 %v773, 0.35355338
      %v828 = vmul.f32 %v778, 0.35355338
      %v829 = vmul.f32 %v783, 0.35355338
      %v830 = vmul.f32 %v788, 0.35355338
      %v831 = vmul.f32 %v793, 0.35355338
      %v832 = vmul.f32 %v798, 0.35355338
      %v833 = vmul.f32 %v803, 0.35355338
      %v834 = vmul.f32 %v808, 0.35355338
      %v835 = vmul.f32 %v813, 0.35355338
      %v836 = vmul.f32 %v818, 0.35355338
      %v837 = vadd.f32 %v821, %v543
      %v838 = vadd.f32 %v822, %v544
      %v839 = vadd.f32 %v823, %v545
      %v840 = vadd.f32 %v824, %v546
      %v841 = vadd.f32 %v825, %v547
      %v842 = vadd.f32 %v826, %v548
      %v843 = vadd.f32 %v827, %v549
      %v844 = vadd.f32 %v828, %v550
      %v845 = vadd.f32 %v829, %v551
      %v846 = vadd.f32 %v830, %v552
      %v847 = vadd.f32 %v831, %v553
      %v848 = vadd.f32 %v832, %v554
      %v849 = vadd.f32 %v833, %v555
      %v850 = vadd.f32 %v834, %v556
      %v851 = vadd.f32 %v835, %v557
      %v852 = vadd.f32 %v836, %v558
      %853 = vmax.xlane.f32.xlu0 %v837
      %v854 = vpop.xlane.xlu0 %853
      %855 = vmax.xlane.f32.xlu0 %v838
      %v856 = vpop.xlane.xlu0 %855
      %857 = vmax.xlane.f32.xlu0 %v839
      %v858 = vpop.xlane.xlu0 %857
      %859 = vmax.xlane.f32.xlu0 %v840
      %v860 = vpop.xlane.xlu0 %859
      %861 = vmax.xlane.f32.xlu0 %v841
      %v862 = vpop.xlane.xlu0 %861
      %863 = vmax.xlane.f32.xlu0 %v842
      %v864 = vpop.xlane.xlu0 %863
      %865 = vmax.xlane.f32.xlu0 %v843
      %v866 = vpop.xlane.xlu0 %865
      %867 = vmax.xlane.f32.xlu0 %v844
      %v868 = vpop.xlane.xlu0 %867
      %869 = vmax.xlane.f32.xlu0 %v845
      %v870 = vpop.xlane.xlu0 %869
      %871 = vmax.xlane.f32.xlu0 %v846
      %v872 = vpop.xlane.xlu0 %871
      %873 = vmax.xlane.f32.xlu0 %v847
      %v874 = vpop.xlane.xlu0 %873
      %875 = vmax.xlane.f32.xlu0 %v848
      %v876 = vpop.xlane.xlu0 %875
      %877 = vmax.xlane.f32.xlu0 %v849
      %v878 = vpop.xlane.xlu0 %877
      %879 = vmax.xlane.f32.xlu0 %v850
      %v880 = vpop.xlane.xlu0 %879
      %881 = vmax.xlane.f32.xlu0 %v851
      %v882 = vpop.xlane.xlu0 %881
      %883 = vmax.xlane.f32.xlu0 %v852
      %v884 = vpop.xlane.xlu0 %883
      %v885 = vsub.f32 %v837, %v854
      %v886 = vsub.f32 %v838, %v856
      %v887 = vsub.f32 %v839, %v858
      %v888 = vsub.f32 %v840, %v860
      %v889 = vsub.f32 %v841, %v862
      %v890 = vsub.f32 %v842, %v864
      %v891 = vsub.f32 %v843, %v866
      %v892 = vsub.f32 %v844, %v868
      %v893 = vsub.f32 %v845, %v870
      %v894 = vsub.f32 %v846, %v872
      %v895 = vsub.f32 %v847, %v874
      %v896 = vsub.f32 %v848, %v876
      %v897 = vsub.f32 %v849, %v878
      %v898 = vsub.f32 %v850, %v880
      %v899 = vsub.f32 %v851, %v882
      %v900 = vsub.f32 %v852, %v884
      %v901 = vmul.f32 %v885, 1.442695
      %v902 = vpow.pop %v901
      %v903 = vmul.f32 %v886, 1.442695
      %v904 = vpow.pop %v903
      %v905 = vmul.f32 %v887, 1.442695
      %v906 = vpow.pop %v905
      %v907 = vmul.f32 %v888, 1.442695
      %v908 = vpow.pop %v907
      %v909 = vmul.f32 %v889, 1.442695
      %v910 = vpow.pop %v909
      %v911 = vmul.f32 %v890, 1.442695
      %v912 = vpow.pop %v911
      %v913 = vmul.f32 %v891, 1.442695
      %v914 = vpow.pop %v913
      %v915 = vmul.f32 %v892, 1.442695
      %v916 = vpow.pop %v915
      %v917 = vmul.f32 %v893, 1.442695
      %v918 = vpow.pop %v917
      %v919 = vmul.f32 %v894, 1.442695
      %v920 = vpow.pop %v919
      %v921 = vmul.f32 %v895, 1.442695
      %v922 = vpow.pop %v921
      %v923 = vmul.f32 %v896, 1.442695
      %v924 = vpow.pop %v923
      %v925 = vmul.f32 %v897, 1.442695
      %v926 = vpow.pop %v925
      %v927 = vmul.f32 %v898, 1.442695
      %v928 = vpow.pop %v927
      %v929 = vmul.f32 %v899, 1.442695
      %v930 = vpow.pop %v929
      %v931 = vmul.f32 %v900, 1.442695
      %v932 = vpow.pop %v931
      %933 = vadd.xlane.f32.xlu0 %v902
      %v934 = vpop.xlane.xlu0 %933
      %935 = vadd.xlane.f32.xlu0 %v904
      %v936 = vpop.xlane.xlu0 %935
      %937 = vadd.xlane.f32.xlu0 %v906
      %v938 = vpop.xlane.xlu0 %937
      %939 = vadd.xlane.f32.xlu0 %v908
      %v940 = vpop.xlane.xlu0 %939
      %941 = vadd.xlane.f32.xlu0 %v910
      %v942 = vpop.xlane.xlu0 %941
      %943 = vadd.xlane.f32.xlu0 %v912
      %v944 = vpop.xlane.xlu0 %943
      %945 = vadd.xlane.f32.xlu0 %v914
      %v946 = vpop.xlane.xlu0 %945
      %947 = vadd.xlane.f32.xlu0 %v916
      %v948 = vpop.xlane.xlu0 %947
      %949 = vadd.xlane.f32.xlu0 %v918
      %v950 = vpop.xlane.xlu0 %949
      %951 = vadd.xlane.f32.xlu0 %v920
      %v952 = vpop.xlane.xlu0 %951
      %953 = vadd.xlane.f32.xlu0 %v922
      %v954 = vpop.xlane.xlu0 %953
      %955 = vadd.xlane.f32.xlu0 %v924
      %v956 = vpop.xlane.xlu0 %955
      %957 = vadd.xlane.f32.xlu0 %v926
      %v958 = vpop.xlane.xlu0 %957
      %959 = vadd.xlane.f32.xlu0 %v928
      %v960 = vpop.xlane.xlu0 %959
      %961 = vadd.xlane.f32.xlu0 %v930
      %v962 = vpop.xlane.xlu0 %961
      %963 = vadd.xlane.f32.xlu0 %v932
      %v964 = vpop.xlane.xlu0 %963
      %v965 = vrcp.pop %v934
      %v966 = vmul.f32 %v902, %v965
      %v967 = vrcp.pop %v936
      %v968 = vmul.f32 %v904, %v967
      %v969 = vrcp.pop %v938
      %v970 = vmul.f32 %v906, %v969
      %v971 = vrcp.pop %v940
      %v972 = vmul.f32 %v908, %v971
      %v973 = vrcp.pop %v942
      %v974 = vmul.f32 %v910, %v973
      %v975 = vrcp.pop %v944
      %v976 = vmul.f32 %v912, %v975
      %v977 = vrcp.pop %v946
      %v978 = vmul.f32 %v914, %v977
      %v979 = vrcp.pop %v948
      %v980 = vmul.f32 %v916, %v979
      %v981 = vrcp.pop %v950
      %v982 = vmul.f32 %v918, %v981
      %v983 = vrcp.pop %v952
      %v984 = vmul.f32 %v920, %v983
      %v985 = vrcp.pop %v954
      %v986 = vmul.f32 %v922, %v985
      %v987 = vrcp.pop %v956
      %v988 = vmul.f32 %v924, %v987
      %v989 = vrcp.pop %v958
      %v990 = vmul.f32 %v926, %v989
      %v991 = vrcp.pop %v960
      %v992 = vmul.f32 %v928, %v991
      %v993 = vrcp.pop %v962
      %v994 = vmul.f32 %v930, %v993
      %v995 = vrcp.pop %v964
      %v996 = vmul.f32 %v932, %v995
      %997 = vrot.lane.b32.xlu0 %v527, 64
      %v998 = vpop.permute.xlu0 %997
      %999 = vrot.lane.b32.xlu0 %v528, 64
      %v1000 = vpop.permute.xlu0 %999
      %1001 = vrot.lane.b32.xlu0 %v529, 64
      %v1002 = vpop.permute.xlu0 %1001
      %1003 = vrot.lane.b32.xlu0 %v530, 64
      %v1004 = vpop.permute.xlu0 %1003
      %1005 = vrot.lane.b32.xlu0 %v531, 64
      %v1006 = vpop.permute.xlu0 %1005
      %1007 = vrot.lane.b32.xlu0 %v532, 64
      %v1008 = vpop.permute.xlu0 %1007
      %1009 = vrot.lane.b32.xlu0 %v533, 64
      %v1010 = vpop.permute.xlu0 %1009
      %1011 = vrot.lane.b32.xlu0 %v534, 64
      %v1012 = vpop.permute.xlu0 %1011
      %1013 = vrot.lane.b32.xlu0 %v535, 64
      %v1014 = vpop.permute.xlu0 %1013
      %1015 = vrot.lane.b32.xlu0 %v536, 64
      %v1016 = vpop.permute.xlu0 %1015
      %1017 = vrot.lane.b32.xlu0 %v537, 64
      %v1018 = vpop.permute.xlu0 %1017
      %1019 = vrot.lane.b32.xlu0 %v538, 64
      %v1020 = vpop.permute.xlu0 %1019
      %1021 = vrot.lane.b32.xlu0 %v539, 64
      %v1022 = vpop.permute.xlu0 %1021
      %1023 = vrot.lane.b32.xlu0 %v540, 64
      %v1024 = vpop.permute.xlu0 %1023
      %1025 = vrot.lane.b32.xlu0 %v541, 64
      %v1026 = vpop.permute.xlu0 %1025
      %1027 = vrot.lane.b32.xlu0 %v542, 64
      %v1028 = vpop.permute.xlu0 %1027
      %1045 = vmatprep.subr.mxu0 0.0
      %1046 = vmatpush1.msra.mxu0 %v1028
      %1047 = vmatprep.subr.mxu0 0.0
      %1048 = vmatpush1.msra.mxu0 %v1026
      %1049 = vmatprep.subr.mxu0 0.0
      %1050 = vmatpush1.msra.mxu0 %v1024
      %1051 = vmatprep.subr.mxu0 0.0
      %1052 = vmatpush1.msra.mxu0 %v1022
      %1053 = vmatprep.subr.mxu0 0.0
      %1054 = vmatpush1.msra.mxu0 %v1020
      %1055 = vmatprep.subr.mxu0 0.0
      %1056 = vmatpush1.msra.mxu0 %v1018
      %1057 = vmatprep.subr.mxu0 0.0
      %1058 = vmatpush1.msra.mxu0 %v1016
      %1059 = vmatprep.subr.mxu0 0.0
      %1060 = vmatpush1.msra.mxu0 %v1014
      %1061 = vmatprep.subr.mxu0 0.0
      %1062 = vmatpush1.msra.mxu0 %v1012
      %1063 = vmatprep.subr.mxu0 0.0
      %1064 = vmatpush1.msra.mxu0 %v1010
      %1065 = vmatprep.subr.mxu0 0.0
      %1066 = vmatpush1.msra.mxu0 %v1008
      %1067 = vmatprep.subr.mxu0 0.0
      %1068 = vmatpush1.msra.mxu0 %v1006
      %1069 = vmatprep.subr.mxu0 0.0
      %1070 = vmatpush1.msra.mxu0 %v1004
      %1071 = vmatprep.subr.mxu0 0.0
      %1072 = vmatpush1.msra.mxu0 %v1002
      %1073 = vmatprep.subr.mxu0 0.0
      %1074 = vmatpush1.msra.mxu0 %v1000
      %1075 = vmatprep.subr.mxu0 0.0
      %1076 = vmatpush1.msra.mxu0 %v998
      %1077 = vmatprep.subr.mxu0 0.0
      %1078 = vmatpush2.msra.mxu0 0.0
      %1079 = vmatprep.subr.mxu0 0.0
      %1080 = vmatpush2.msra.mxu0 0.0
      %1081 = vmatprep.subr.mxu0 0.0
      %1082 = vmatpush2.msra.mxu0 0.0
      %1083 = vmatprep.subr.mxu0 0.0
      %1084 = vmatpush2.msra.mxu0 0.0
      %1085 = vmatprep.subr.mxu0 0.0
      %1086 = vmatpush2.msra.mxu0 0.0
      %1087 = vmatprep.subr.mxu0 0.0
      %1088 = vmatpush2.msra.mxu0 0.0
      %1089 = vmatprep.subr.mxu0 0.0
      %1090 = vmatpush2.msra.mxu0 0.0
      %1091 = vmatprep.subr.mxu0 0.0
      %1092 = vmatpush2.msra.mxu0 0.0
      %1093 = vmatprep.subr.mxu0 0.0
      %1094 = vmatpush2.msra.mxu0 0.0
      %1095 = vmatprep.subr.mxu0 0.0
      %1096 = vmatpush2.msra.mxu0 0.0
      %1097 = vmatprep.subr.mxu0 0.0
      %1098 = vmatpush2.msra.mxu0 0.0
      %1099 = vmatprep.subr.mxu0 0.0
      %1100 = vmatpush2.msra.mxu0 0.0
      %1101 = vmatprep.subr.mxu0 0.0
      %1102 = vmatpush2.msra.mxu0 0.0
      %1103 = vmatprep.subr.mxu0 0.0
      %1104 = vmatpush2.msra.mxu0 0.0
      %1105 = vmatprep.subr.mxu0 0.0
      %1106 = vmatpush2.msra.mxu0 0.0
      %1107 = vmatprep.subr.mxu0 0.0
      %1108 = vmatpush2.msra.mxu0 0.0
      %1109 = vmatprep.mubr.f32.mxu0 0.0
      %1110 = vmatmul.mubr.f32.gmra.mxu0 %v966
      %v1111 = vpop.f32.mrf.mxu0
      %v1112 = vadd.f32 0.0, %v1111
      %v1113 = vpop.f32.mrf.mxu0
      %1114 = vmatprep.mubr.f32.mxu0 0.0
      %1115 = vmatmul.mubr.f32.gmra.mxu0 %v968
      %v1116 = vpop.f32.mrf.mxu0
      %v1117 = vadd.f32 0.0, %v1116
      %v1118 = vpop.f32.mrf.mxu0
      %1119 = vmatprep.mubr.f32.mxu0 0.0
      %1120 = vmatmul.mubr.f32.gmra.mxu0 %v970
      %v1121 = vpop.f32.mrf.mxu0
      %v1122 = vadd.f32 0.0, %v1121
      %v1123 = vpop.f32.mrf.mxu0
      %1124 = vmatprep.mubr.f32.mxu0 0.0
      %1125 = vmatmul.mubr.f32.gmra.mxu0 %v972
      %v1126 = vpop.f32.mrf.mxu0
      %v1127 = vadd.f32 0.0, %v1126
      %v1128 = vpop.f32.mrf.mxu0
      %1129 = vmatprep.mubr.f32.mxu0 0.0
      %1130 = vmatmul.mubr.f32.gmra.mxu0 %v974
      %v1131 = vpop.f32.mrf.mxu0
      %v1132 = vadd.f32 0.0, %v1131
      %v1133 = vpop.f32.mrf.mxu0
      %1134 = vmatprep.mubr.f32.mxu0 0.0
      %1135 = vmatmul.mubr.f32.gmra.mxu0 %v976
      %v1136 = vpop.f32.mrf.mxu0
      %v1137 = vadd.f32 0.0, %v1136
      %v1138 = vpop.f32.mrf.mxu0
      %1139 = vmatprep.mubr.f32.mxu0 0.0
      %1140 = vmatmul.mubr.f32.gmra.mxu0 %v978
      %v1141 = vpop.f32.mrf.mxu0
      %v1142 = vadd.f32 0.0, %v1141
      %v1143 = vpop.f32.mrf.mxu0
      %1144 = vmatprep.mubr.f32.mxu0 0.0
      %1145 = vmatmul.mubr.f32.gmra.mxu0 %v980
      %v1146 = vpop.f32.mrf.mxu0
      %v1147 = vadd.f32 0.0, %v1146
      %v1148 = vpop.f32.mrf.mxu0
      %1149 = vmatprep.mubr.f32.mxu0 0.0
      %1150 = vmatmul.mubr.f32.gmra.mxu0 %v982
      %v1151 = vpop.f32.mrf.mxu0
      %v1152 = vadd.f32 0.0, %v1151
      %v1153 = vpop.f32.mrf.mxu0
      %1154 = vmatprep.mubr.f32.mxu0 0.0
      %1155 = vmatmul.mubr.f32.gmra.mxu0 %v984
      %v1156 = vpop.f32.mrf.mxu0
      %v1157 = vadd.f32 0.0, %v1156
      %v1158 = vpop.f32.mrf.mxu0
      %1159 = vmatprep.mubr.f32.mxu0 0.0
      %1160 = vmatmul.mubr.f32.gmra.mxu0 %v986
      %v1161 = vpop.f32.mrf.mxu0
      %v1162 = vadd.f32 0.0, %v1161
      %v1163 = vpop.f32.mrf.mxu0
      %1164 = vmatprep.mubr.f32.mxu0 0.0
      %1165 = vmatmul.mubr.f32.gmra.mxu0 %v988
      %v1166 = vpop.f32.mrf.mxu0
      %v1167 = vadd.f32 0.0, %v1166
      %v1168 = vpop.f32.mrf.mxu0
      %1169 = vmatprep.mubr.f32.mxu0 0.0
      %1170 = vmatmul.mubr.f32.gmra.mxu0 %v990
      %v1171 = vpop.f32.mrf.mxu0
      %v1172 = vadd.f32 0.0, %v1171
      %v1173 = vpop.f32.mrf.mxu0
      %1174 = vmatprep.mubr.f32.mxu0 0.0
      %1175 = vmatmul.mubr.f32.gmra.mxu0 %v992
      %v1176 = vpop.f32.mrf.mxu0
      %v1177 = vadd.f32 0.0, %v1176
      %v1178 = vpop.f32.mrf.mxu0
      %1179 = vmatprep.mubr.f32.mxu0 0.0
      %1180 = vmatmul.mubr.f32.gmra.mxu0 %v994
      %v1181 = vpop.f32.mrf.mxu0
      %v1182 = vadd.f32 0.0, %v1181
      %v1183 = vpop.f32.mrf.mxu0
      %1184 = vmatprep.mubr.f32.mxu0 0.0
      %1185 = vmatmul.mubr.f32.gmra.mxu0 %v996
      %v1186 = vpop.f32.mrf.mxu0
      %v1187 = vadd.f32 0.0, %v1186
      %v1188 = vpop.f32.mrf.mxu0
      %1189 = vdwg.mxu0
      %1190 = vrot.lane.b32.xlu0 %v527, 120
      %v1191 = vpop.permute.xlu0 %1190
      %1192 = vrot.lane.b32.xlu0 %v528, 120
      %v1193 = vpop.permute.xlu0 %1192
      %1194 = vrot.lane.b32.xlu0 %v529, 120
      %v1195 = vpop.permute.xlu0 %1194
      %1196 = vrot.lane.b32.xlu0 %v530, 120
      %v1197 = vpop.permute.xlu0 %1196
      %1198 = vrot.lane.b32.xlu0 %v531, 120
      %v1199 = vpop.permute.xlu0 %1198
      %1200 = vrot.lane.b32.xlu0 %v532, 120
      %v1201 = vpop.permute.xlu0 %1200
      %1202 = vrot.lane.b32.xlu0 %v533, 120
      %v1203 = vpop.permute.xlu0 %1202
      %1204 = vrot.lane.b32.xlu0 %v534, 120
      %v1205 = vpop.permute.xlu0 %1204
      %1206 = vrot.lane.b32.xlu0 %v535, 120
      %v1207 = vpop.permute.xlu0 %1206
      %1208 = vrot.lane.b32.xlu0 %v536, 120
      %v1209 = vpop.permute.xlu0 %1208
      %1210 = vrot.lane.b32.xlu0 %v537, 120
      %v1211 = vpop.permute.xlu0 %1210
      %1212 = vrot.lane.b32.xlu0 %v538, 120
      %v1213 = vpop.permute.xlu0 %1212
      %1214 = vrot.lane.b32.xlu0 %v539, 120
      %v1215 = vpop.permute.xlu0 %1214
      %1216 = vrot.lane.b32.xlu0 %v540, 120
      %v1217 = vpop.permute.xlu0 %1216
      %1218 = vrot.lane.b32.xlu0 %v541, 120
      %v1219 = vpop.permute.xlu0 %1218
      %1220 = vrot.lane.b32.xlu0 %v542, 120
      %v1221 = vpop.permute.xlu0 %1220
      %1222 = vrot.lane.b32.xlu0 %v527, 88
      %v1223 = vpop.permute.xlu0 %1222
      %1224 = vrot.lane.b32.xlu0 %v528, 88
      %v1225 = vpop.permute.xlu0 %1224
      %1226 = vrot.lane.b32.xlu0 %v529, 88
      %v1227 = vpop.permute.xlu0 %1226
      %1228 = vrot.lane.b32.xlu0 %v530, 88
      %v1229 = vpop.permute.xlu0 %1228
      %1230 = vrot.lane.b32.xlu0 %v531, 88
      %v1231 = vpop.permute.xlu0 %1230
      %1232 = vrot.lane.b32.xlu0 %v532, 88
      %v1233 = vpop.permute.xlu0 %1232
      %1234 = vrot.lane.b32.xlu0 %v533, 88
      %v1235 = vpop.permute.xlu0 %1234
      %1236 = vrot.lane.b32.xlu0 %v534, 88
      %v1237 = vpop.permute.xlu0 %1236
      %1238 = vrot.lane.b32.xlu0 %v535, 88
      %v1239 = vpop.permute.xlu0 %1238
      %1240 = vrot.lane.b32.xlu0 %v536, 88
      %v1241 = vpop.permute.xlu0 %1240
      %1242 = vrot.lane.b32.xlu0 %v537, 88
      %v1243 = vpop.permute.xlu0 %1242
      %1244 = vrot.lane.b32.xlu0 %v538, 88
      %v1245 = vpop.permute.xlu0 %1244
      %1246 = vrot.lane.b32.xlu0 %v539, 88
      %v1247 = vpop.permute.xlu0 %1246
      %1248 = vrot.lane.b32.xlu0 %v540, 88
      %v1249 = vpop.permute.xlu0 %1248
      %1250 = vrot.lane.b32.xlu0 %v541, 88
      %v1251 = vpop.permute.xlu0 %1250
      %1252 = vrot.lane.b32.xlu0 %v542, 88
      %v1253 = vpop.permute.xlu0 %1252
      %v1254 = vsel %vm611, %v1191, 0
      %v1256 = vsel %vm611, %v1193, 0
      %v1258 = vsel %vm611, %v1195, 0
      %v1260 = vsel %vm611, %v1197, 0
      %v1262 = vsel %vm611, %v1199, 0
      %v1264 = vsel %vm611, %v1201, 0
      %v1266 = vsel %vm611, %v1203, 0
      %v1268 = vsel %vm611, %v1205, 0
      %v1270 = vsel %vm611, %v1207, 0
      %v1272 = vsel %vm611, %v1209, 0
      %v1274 = vsel %vm611, %v1211, 0
      %v1276 = vsel %vm611, %v1213, 0
      %v1278 = vsel %vm611, %v1215, 0
      %v1280 = vsel %vm611, %v1217, 0
      %v1282 = vsel %vm611, %v1219, 0
      %v1284 = vsel %vm611, %v1221, 0
      %v1286 = vsel %vm611, %v1223, 0
      %v1288 = vsel %vm611, %v1225, 0
      %v1290 = vsel %vm611, %v1227, 0
      %v1292 = vsel %vm611, %v1229, 0
      %v1294 = vsel %vm611, %v1231, 0
      %v1296 = vsel %vm611, %v1233, 0
      %v1298 = vsel %vm611, %v1235, 0
      %v1300 = vsel %vm611, %v1237, 0
      %v1302 = vsel %vm611, %v1239, 0
      %v1304 = vsel %vm611, %v1241, 0
      %v1306 = vsel %vm611, %v1243, 0
      %v1308 = vsel %vm611, %v1245, 0
      %v1310 = vsel %vm611, %v1247, 0
      %v1312 = vsel %vm611, %v1249, 0
      %v1314 = vsel %vm611, %v1251, 0
      %v1316 = vsel %vm611, %v1253, 0
      %1318 = vmatprep.subr.mxu0 0.0
      %1319 = vmatpush1.xpose.msra.mxu0 %v1316
      %1320 = vmatprep.subr.mxu0 0.0
      %1321 = vmatpush1.xpose.msra.mxu0 %v1314
      %1322 = vmatprep.subr.mxu0 0.0
      %1323 = vmatpush1.xpose.msra.mxu0 %v1312
      %1324 = vmatprep.subr.mxu0 0.0
      %1325 = vmatpush1.xpose.msra.mxu0 %v1310
      %1326 = vmatprep.subr.mxu0 0.0
      %1327 = vmatpush1.xpose.msra.mxu0 %v1308
      %1328 = vmatprep.subr.mxu0 0.0
      %1329 = vmatpush1.xpose.msra.mxu0 %v1306
      %1330 = vmatprep.subr.mxu0 0.0
      %1331 = vmatpush1.xpose.msra.mxu0 %v1304
      %1332 = vmatprep.subr.mxu0 0.0
      %1333 = vmatpush1.xpose.msra.mxu0 %v1302
      %1334 = vmatprep.subr.mxu0 0.0
      %1335 = vmatpush1.xpose.msra.mxu0 %v1300
      %1336 = vmatprep.subr.mxu0 0.0
      %1337 = vmatpush1.xpose.msra.mxu0 %v1298
      %1338 = vmatprep.subr.mxu0 0.0
      %1339 = vmatpush1.xpose.msra.mxu0 %v1296
      %1340 = vmatprep.subr.mxu0 0.0
      %1341 = vmatpush1.xpose.msra.mxu0 %v1294
      %1342 = vmatprep.subr.mxu0 0.0
      %1343 = vmatpush1.xpose.msra.mxu0 %v1292
      %1344 = vmatprep.subr.mxu0 0.0
      %1345 = vmatpush1.xpose.msra.mxu0 %v1290
      %1346 = vmatprep.subr.mxu0 0.0
      %1347 = vmatpush1.xpose.msra.mxu0 %v1288
      %1348 = vmatprep.subr.mxu0 0.0
      %1349 = vmatpush1.xpose.msra.mxu0 %v1286
      %1350 = vmatprep.subr.mxu0 0.0
      %1351 = vmatpush2.xpose.msra.mxu0 0.0
      %1352 = vmatprep.subr.mxu0 0.0
      %1353 = vmatpush2.xpose.msra.mxu0 0.0
      %1354 = vmatprep.subr.mxu0 0.0
      %1355 = vmatpush2.xpose.msra.mxu0 0.0
      %1356 = vmatprep.subr.mxu0 0.0
      %1357 = vmatpush2.xpose.msra.mxu0 0.0
      %1358 = vmatprep.subr.mxu0 0.0
      %1359 = vmatpush2.xpose.msra.mxu0 0.0
      %1360 = vmatprep.subr.mxu0 0.0
      %1361 = vmatpush2.xpose.msra.mxu0 0.0
      %1362 = vmatprep.subr.mxu0 0.0
      %1363 = vmatpush2.xpose.msra.mxu0 0.0
      %1364 = vmatprep.subr.mxu0 0.0
      %1365 = vmatpush2.xpose.msra.mxu0 0.0
      %1366 = vmatprep.subr.mxu0 0.0
      %1367 = vmatpush2.xpose.msra.mxu0 0.0
      %1368 = vmatprep.subr.mxu0 0.0
      %1369 = vmatpush2.xpose.msra.mxu0 0.0
      %1370 = vmatprep.subr.mxu0 0.0
      %1371 = vmatpush2.xpose.msra.mxu0 0.0
      %1372 = vmatprep.subr.mxu0 0.0
      %1373 = vmatpush2.xpose.msra.mxu0 0.0
      %1374 = vmatprep.subr.mxu0 0.0
      %1375 = vmatpush2.xpose.msra.mxu0 0.0
      %1376 = vmatprep.subr.mxu0 0.0
      %1377 = vmatpush2.xpose.msra.mxu0 0.0
      %1378 = vmatprep.subr.mxu0 0.0
      %1379 = vmatpush2.xpose.msra.mxu0 0.0
      %1380 = vmatprep.subr.mxu0 0.0
      %1381 = vmatpush2.xpose.msra.mxu0 0.0
      %1382 = vmatprep.mubr.f32.mxu0 0.0
      %1383 = vmatmul.mubr.f32.gmra.mxu0 %v1254
      %v1384 = vpop.f32.mrf.mxu0
      %v1385 = vadd.f32 0.0, %v1384
      %v1386 = vpop.f32.mrf.mxu0
      %1387 = vmatprep.mubr.f32.mxu0 0.0
      %1388 = vmatmul.mubr.f32.gmra.mxu0 %v1256
      %v1389 = vpop.f32.mrf.mxu0
      %v1390 = vadd.f32 0.0, %v1389
      %v1391 = vpop.f32.mrf.mxu0
      %1392 = vmatprep.mubr.f32.mxu0 0.0
      %1393 = vmatmul.mubr.f32.gmra.mxu0 %v1258
      %v1394 = vpop.f32.mrf.mxu0
      %v1395 = vadd.f32 0.0, %v1394
      %v1396 = vpop.f32.mrf.mxu0
      %1397 = vmatprep.mubr.f32.mxu0 0.0
      %1398 = vmatmul.mubr.f32.gmra.mxu0 %v1260
      %v1399 = vpop.f32.mrf.mxu0
      %v1400 = vadd.f32 0.0, %v1399
      %v1401 = vpop.f32.mrf.mxu0
      %1402 = vmatprep.mubr.f32.mxu0 0.0
      %1403 = vmatmul.mubr.f32.gmra.mxu0 %v1262
      %v1404 = vpop.f32.mrf.mxu0
      %v1405 = vadd.f32 0.0, %v1404
      %v1406 = vpop.f32.mrf.mxu0
      %1407 = vmatprep.mubr.f32.mxu0 0.0
      %1408 = vmatmul.mubr.f32.gmra.mxu0 %v1264
      %v1409 = vpop.f32.mrf.mxu0
      %v1410 = vadd.f32 0.0, %v1409
      %v1411 = vpop.f32.mrf.mxu0
      %1412 = vmatprep.mubr.f32.mxu0 0.0
      %1413 = vmatmul.mubr.f32.gmra.mxu0 %v1266
      %v1414 = vpop.f32.mrf.mxu0
      %v1415 = vadd.f32 0.0, %v1414
      %v1416 = vpop.f32.mrf.mxu0
      %1417 = vmatprep.mubr.f32.mxu0 0.0
      %1418 = vmatmul.mubr.f32.gmra.mxu0 %v1268
      %v1419 = vpop.f32.mrf.mxu0
      %v1420 = vadd.f32 0.0, %v1419
      %v1421 = vpop.f32.mrf.mxu0
      %1422 = vmatprep.mubr.f32.mxu0 0.0
      %1423 = vmatmul.mubr.f32.gmra.mxu0 %v1270
      %v1424 = vpop.f32.mrf.mxu0
      %v1425 = vadd.f32 0.0, %v1424
      %v1426 = vpop.f32.mrf.mxu0
      %1427 = vmatprep.mubr.f32.mxu0 0.0
      %1428 = vmatmul.mubr.f32.gmra.mxu0 %v1272
      %v1429 = vpop.f32.mrf.mxu0
      %v1430 = vadd.f32 0.0, %v1429
      %v1431 = vpop.f32.mrf.mxu0
      %1432 = vmatprep.mubr.f32.mxu0 0.0
      %1433 = vmatmul.mubr.f32.gmra.mxu0 %v1274
      %v1434 = vpop.f32.mrf.mxu0
      %v1435 = vadd.f32 0.0, %v1434
      %v1436 = vpop.f32.mrf.mxu0
      %1437 = vmatprep.mubr.f32.mxu0 0.0
      %1438 = vmatmul.mubr.f32.gmra.mxu0 %v1276
      %v1439 = vpop.f32.mrf.mxu0
      %v1440 = vadd.f32 0.0, %v1439
      %v1441 = vpop.f32.mrf.mxu0
      %1442 = vmatprep.mubr.f32.mxu0 0.0
      %1443 = vmatmul.mubr.f32.gmra.mxu0 %v1278
      %v1444 = vpop.f32.mrf.mxu0
      %v1445 = vadd.f32 0.0, %v1444
      %v1446 = vpop.f32.mrf.mxu0
      %1447 = vmatprep.mubr.f32.mxu0 0.0
      %1448 = vmatmul.mubr.f32.gmra.mxu0 %v1280
      %v1449 = vpop.f32.mrf.mxu0
      %v1450 = vadd.f32 0.0, %v1449
      %v1451 = vpop.f32.mrf.mxu0
      %1452 = vmatprep.mubr.f32.mxu0 0.0
      %1453 = vmatmul.mubr.f32.gmra.mxu0 %v1282
      %v1454 = vpop.f32.mrf.mxu0
      %v1455 = vadd.f32 0.0, %v1454
      %v1456 = vpop.f32.mrf.mxu0
      %1457 = vmatprep.mubr.f32.mxu0 0.0
      %1458 = vmatmul.mubr.f32.gmra.mxu0 %v1284
      %v1459 = vpop.f32.mrf.mxu0
      %v1460 = vadd.f32 0.0, %v1459
      %v1461 = vpop.f32.mrf.mxu0
      %1462 = vdwg.mxu0
      %v1463 = vmul.f32 %v1385, 0.35355338
      %v1464 = vmul.f32 %v1390, 0.35355338
      %v1465 = vmul.f32 %v1395, 0.35355338
      %v1466 = vmul.f32 %v1400, 0.35355338
      %v1467 = vmul.f32 %v1405, 0.35355338
      %v1468 = vmul.f32 %v1410, 0.35355338
      %v1469 = vmul.f32 %v1415, 0.35355338
      %v1470 = vmul.f32 %v1420, 0.35355338
      %v1471 = vmul.f32 %v1425, 0.35355338
      %v1472 = vmul.f32 %v1430, 0.35355338
      %v1473 = vmul.f32 %v1435, 0.35355338
      %v1474 = vmul.f32 %v1440, 0.35355338
      %v1475 = vmul.f32 %v1445, 0.35355338
      %v1476 = vmul.f32 %v1450, 0.35355338
      %v1477 = vmul.f32 %v1455, 0.35355338
      %v1478 = vmul.f32 %v1460, 0.35355338
      %v1479 = vadd.f32 %v1463, %v543
      %v1480 = vadd.f32 %v1464, %v544
      %v1481 = vadd.f32 %v1465, %v545
      %v1482 = vadd.f32 %v1466, %v546
      %v1483 = vadd.f32 %v1467, %v547
      %v1484 = vadd.f32 %v1468, %v548
      %v1485 = vadd.f32 %v1469, %v549
      %v1486 = vadd.f32 %v1470, %v550
      %v1487 = vadd.f32 %v1471, %v551
      %v1488 = vadd.f32 %v1472, %v552
      %v1489 = vadd.f32 %v1473, %v553
      %v1490 = vadd.f32 %v1474, %v554
      %v1491 = vadd.f32 %v1475, %v555
      %v1492 = vadd.f32 %v1476, %v556
      %v1493 = vadd.f32 %v1477, %v557
      %v1494 = vadd.f32 %v1478, %v558
      %1495 = vmax.xlane.f32.xlu0 %v1479
      %v1496 = vpop.xlane.xlu0 %1495
      %1497 = vmax.xlane.f32.xlu0 %v1480
      %v1498 = vpop.xlane.xlu0 %1497
      %1499 = vmax.xlane.f32.xlu0 %v1481
      %v1500 = vpop.xlane.xlu0 %1499
      %1501 = vmax.xlane.f32.xlu0 %v1482
      %v1502 = vpop.xlane.xlu0 %1501
      %1503 = vmax.xlane.f32.xlu0 %v1483
      %v1504 = vpop.xlane.xlu0 %1503
      %1505 = vmax.xlane.f32.xlu0 %v1484
      %v1506 = vpop.xlane.xlu0 %1505
      %1507 = vmax.xlane.f32.xlu0 %v1485
      %v1508 = vpop.xlane.xlu0 %1507
      %1509 = vmax.xlane.f32.xlu0 %v1486
      %v1510 = vpop.xlane.xlu0 %1509
      %1511 = vmax.xlane.f32.xlu0 %v1487
      %v1512 = vpop.xlane.xlu0 %1511
      %1513 = vmax.xlane.f32.xlu0 %v1488
      %v1514 = vpop.xlane.xlu0 %1513
      %1515 = vmax.xlane.f32.xlu0 %v1489
      %v1516 = vpop.xlane.xlu0 %1515
      %1517 = vmax.xlane.f32.xlu0 %v1490
      %v1518 = vpop.xlane.xlu0 %1517
      %1519 = vmax.xlane.f32.xlu0 %v1491
      %v1520 = vpop.xlane.xlu0 %1519
      %1521 = vmax.xlane.f32.xlu0 %v1492
      %v1522 = vpop.xlane.xlu0 %1521
      %1523 = vmax.xlane.f32.xlu0 %v1493
      %v1524 = vpop.xlane.xlu0 %1523
      %1525 = vmax.xlane.f32.xlu0 %v1494
      %v1526 = vpop.xlane.xlu0 %1525
      %v1527 = vsub.f32 %v1479, %v1496
      %v1528 = vsub.f32 %v1480, %v1498
      %v1529 = vsub.f32 %v1481, %v1500
      %v1530 = vsub.f32 %v1482, %v1502
      %v1531 = vsub.f32 %v1483, %v1504
      %v1532 = vsub.f32 %v1484, %v1506
      %v1533 = vsub.f32 %v1485, %v1508
      %v1534 = vsub.f32 %v1486, %v1510
      %v1535 = vsub.f32 %v1487, %v1512
      %v1536 = vsub.f32 %v1488, %v1514
      %v1537 = vsub.f32 %v1489, %v1516
      %v1538 = vsub.f32 %v1490, %v1518
      %v1539 = vsub.f32 %v1491, %v1520
      %v1540 = vsub.f32 %v1492, %v1522
      %v1541 = vsub.f32 %v1493, %v1524
      %v1542 = vsub.f32 %v1494, %v1526
      %v1543 = vmul.f32 %v1527, 1.442695
      %v1544 = vpow.pop %v1543
      %v1545 = vmul.f32 %v1528, 1.442695
      %v1546 = vpow.pop %v1545
      %v1547 = vmul.f32 %v1529, 1.442695
      %v1548 = vpow.pop %v1547
      %v1549 = vmul.f32 %v1530, 1.442695
      %v1550 = vpow.pop %v1549
      %v1551 = vmul.f32 %v1531, 1.442695
      %v1552 = vpow.pop %v1551
      %v1553 = vmul.f32 %v1532, 1.442695
      %v1554 = vpow.pop %v1553
      %v1555 = vmul.f32 %v1533, 1.442695
      %v1556 = vpow.pop %v1555
      %v1557 = vmul.f32 %v1534, 1.442695
      %v1558 = vpow.pop %v1557
      %v1559 = vmul.f32 %v1535, 1.442695
      %v1560 = vpow.pop %v1559
      %v1561 = vmul.f32 %v1536, 1.442695
      %v1562 = vpow.pop %v1561
      %v1563 = vmul.f32 %v1537, 1.442695
      %v1564 = vpow.pop %v1563
      %v1565 = vmul.f32 %v1538, 1.442695
      %v1566 = vpow.pop %v1565
      %v1567 = vmul.f32 %v1539, 1.442695
      %v1568 = vpow.pop %v1567
      %v1569 = vmul.f32 %v1540, 1.442695
      %v1570 = vpow.pop %v1569
      %v1571 = vmul.f32 %v1541, 1.442695
      %v1572 = vpow.pop %v1571
      %v1573 = vmul.f32 %v1542, 1.442695
      %v1574 = vpow.pop %v1573
      %1575 = vadd.xlane.f32.xlu0 %v1544
      %v1576 = vpop.xlane.xlu0 %1575
      %1577 = vadd.xlane.f32.xlu0 %v1546
      %v1578 = vpop.xlane.xlu0 %1577
      %1579 = vadd.xlane.f32.xlu0 %v1548
      %v1580 = vpop.xlane.xlu0 %1579
      %1581 = vadd.xlane.f32.xlu0 %v1550
      %v1582 = vpop.xlane.xlu0 %1581
      %1583 = vadd.xlane.f32.xlu0 %v1552
      %v1584 = vpop.xlane.xlu0 %1583
      %1585 = vadd.xlane.f32.xlu0 %v1554
      %v1586 = vpop.xlane.xlu0 %1585
      %1587 = vadd.xlane.f32.xlu0 %v1556
      %v1588 = vpop.xlane.xlu0 %1587
      %1589 = vadd.xlane.f32.xlu0 %v1558
      %v1590 = vpop.xlane.xlu0 %1589
      %1591 = vadd.xlane.f32.xlu0 %v1560
      %v1592 = vpop.xlane.xlu0 %1591
      %1593 = vadd.xlane.f32.xlu0 %v1562
      %v1594 = vpop.xlane.xlu0 %1593
      %1595 = vadd.xlane.f32.xlu0 %v1564
      %v1596 = vpop.xlane.xlu0 %1595
      %1597 = vadd.xlane.f32.xlu0 %v1566
      %v1598 = vpop.xlane.xlu0 %1597
      %1599 = vadd.xlane.f32.xlu0 %v1568
      %v1600 = vpop.xlane.xlu0 %1599
      %1601 = vadd.xlane.f32.xlu0 %v1570
      %v1602 = vpop.xlane.xlu0 %1601
      %1603 = vadd.xlane.f32.xlu0 %v1572
      %v1604 = vpop.xlane.xlu0 %1603
      %1605 = vadd.xlane.f32.xlu0 %v1574
      %v1606 = vpop.xlane.xlu0 %1605
      %v1607 = vrcp.pop %v1576
      %v1608 = vmul.f32 %v1544, %v1607
      %v1609 = vrcp.pop %v1578
      %v1610 = vmul.f32 %v1546, %v1609
      %v1611 = vrcp.pop %v1580
      %v1612 = vmul.f32 %v1548, %v1611
      %v1613 = vrcp.pop %v1582
      %v1614 = vmul.f32 %v1550, %v1613
      %v1615 = vrcp.pop %v1584
      %v1616 = vmul.f32 %v1552, %v1615
      %v1617 = vrcp.pop %v1586
      %v1618 = vmul.f32 %v1554, %v1617
      %v1619 = vrcp.pop %v1588
      %v1620 = vmul.f32 %v1556, %v1619
      %v1621 = vrcp.pop %v1590
      %v1622 = vmul.f32 %v1558, %v1621
      %v1623 = vrcp.pop %v1592
      %v1624 = vmul.f32 %v1560, %v1623
      %v1625 = vrcp.pop %v1594
      %v1626 = vmul.f32 %v1562, %v1625
      %v1627 = vrcp.pop %v1596
      %v1628 = vmul.f32 %v1564, %v1627
      %v1629 = vrcp.pop %v1598
      %v1630 = vmul.f32 %v1566, %v1629
      %v1631 = vrcp.pop %v1600
      %v1632 = vmul.f32 %v1568, %v1631
      %v1633 = vrcp.pop %v1602
      %v1634 = vmul.f32 %v1570, %v1633
      %v1635 = vrcp.pop %v1604
      %v1636 = vmul.f32 %v1572, %v1635
      %v1637 = vrcp.pop %v1606
      %v1638 = vmul.f32 %v1574, %v1637
      %1639 = vrot.lane.b32.xlu0 %v527, 56
      %v1640 = vpop.permute.xlu0 %1639
      %1641 = vrot.lane.b32.xlu0 %v528, 56
      %v1642 = vpop.permute.xlu0 %1641
      %1643 = vrot.lane.b32.xlu0 %v529, 56
      %v1644 = vpop.permute.xlu0 %1643
      %1645 = vrot.lane.b32.xlu0 %v530, 56
      %v1646 = vpop.permute.xlu0 %1645
      %1647 = vrot.lane.b32.xlu0 %v531, 56
      %v1648 = vpop.permute.xlu0 %1647
      %1649 = vrot.lane.b32.xlu0 %v532, 56
      %v1650 = vpop.permute.xlu0 %1649
      %1651 = vrot.lane.b32.xlu0 %v533, 56
      %v1652 = vpop.permute.xlu0 %1651
      %1653 = vrot.lane.b32.xlu0 %v534, 56
      %v1654 = vpop.permute.xlu0 %1653
      %1655 = vrot.lane.b32.xlu0 %v535, 56
      %v1656 = vpop.permute.xlu0 %1655
      %1657 = vrot.lane.b32.xlu0 %v536, 56
      %v1658 = vpop.permute.xlu0 %1657
      %1659 = vrot.lane.b32.xlu0 %v537, 56
      %v1660 = vpop.permute.xlu0 %1659
      %1661 = vrot.lane.b32.xlu0 %v538, 56
      %v1662 = vpop.permute.xlu0 %1661
      %1663 = vrot.lane.b32.xlu0 %v539, 56
      %v1664 = vpop.permute.xlu0 %1663
      %1665 = vrot.lane.b32.xlu0 %v540, 56
      %v1666 = vpop.permute.xlu0 %1665
      %1667 = vrot.lane.b32.xlu0 %v541, 56
      %v1668 = vpop.permute.xlu0 %1667
      %1669 = vrot.lane.b32.xlu0 %v542, 56
      %v1670 = vpop.permute.xlu0 %1669
      %1687 = vmatprep.subr.mxu0 0.0
      %1688 = vmatpush1.msra.mxu0 %v1670
      %1689 = vmatprep.subr.mxu0 0.0
      %1690 = vmatpush1.msra.mxu0 %v1668
      %1691 = vmatprep.subr.mxu0 0.0
      %1692 = vmatpush1.msra.mxu0 %v1666
      %1693 = vmatprep.subr.mxu0 0.0
      %1694 = vmatpush1.msra.mxu0 %v1664
      %1695 = vmatprep.subr.mxu0 0.0
      %1696 = vmatpush1.msra.mxu0 %v1662
      %1697 = vmatprep.subr.mxu0 0.0
      %1698 = vmatpush1.msra.mxu0 %v1660
      %1699 = vmatprep.subr.mxu0 0.0
      %1700 = vmatpush1.msra.mxu0 %v1658
      %1701 = vmatprep.subr.mxu0 0.0
      %1702 = vmatpush1.msra.mxu0 %v1656
      %1703 = vmatprep.subr.mxu0 0.0
      %1704 = vmatpush1.msra.mxu0 %v1654
      %1705 = vmatprep.subr.mxu0 0.0
      %1706 = vmatpush1.msra.mxu0 %v1652
      %1707 = vmatprep.subr.mxu0 0.0
      %1708 = vmatpush1.msra.mxu0 %v1650
      %1709 = vmatprep.subr.mxu0 0.0
      %1710 = vmatpush1.msra.mxu0 %v1648
      %1711 = vmatprep.subr.mxu0 0.0
      %1712 = vmatpush1.msra.mxu0 %v1646
      %1713 = vmatprep.subr.mxu0 0.0
      %1714 = vmatpush1.msra.mxu0 %v1644
      %1715 = vmatprep.subr.mxu0 0.0
      %1716 = vmatpush1.msra.mxu0 %v1642
      %1717 = vmatprep.subr.mxu0 0.0
      %1718 = vmatpush1.msra.mxu0 %v1640
      %1719 = vmatprep.subr.mxu0 0.0
      %1720 = vmatpush2.msra.mxu0 0.0
      %1721 = vmatprep.subr.mxu0 0.0
      %1722 = vmatpush2.msra.mxu0 0.0
      %1723 = vmatprep.subr.mxu0 0.0
      %1724 = vmatpush2.msra.mxu0 0.0
      %1725 = vmatprep.subr.mxu0 0.0
      %1726 = vmatpush2.msra.mxu0 0.0
      %1727 = vmatprep.subr.mxu0 0.0
      %1728 = vmatpush2.msra.mxu0 0.0
      %1729 = vmatprep.subr.mxu0 0.0
      %1730 = vmatpush2.msra.mxu0 0.0
      %1731 = vmatprep.subr.mxu0 0.0
      %1732 = vmatpush2.msra.mxu0 0.0
      %1733 = vmatprep.subr.mxu0 0.0
      %1734 = vmatpush2.msra.mxu0 0.0
      %1735 = vmatprep.subr.mxu0 0.0
      %1736 = vmatpush2.msra.mxu0 0.0
      %1737 = vmatprep.subr.mxu0 0.0
      %1738 = vmatpush2.msra.mxu0 0.0
      %1739 = vmatprep.subr.mxu0 0.0
      %1740 = vmatpush2.msra.mxu0 0.0
      %1741 = vmatprep.subr.mxu0 0.0
      %1742 = vmatpush2.msra.mxu0 0.0
      %1743 = vmatprep.subr.mxu0 0.0
      %1744 = vmatpush2.msra.mxu0 0.0
      %1745 = vmatprep.subr.mxu0 0.0
      %1746 = vmatpush2.msra.mxu0 0.0
      %1747 = vmatprep.subr.mxu0 0.0
      %1748 = vmatpush2.msra.mxu0 0.0
      %1749 = vmatprep.subr.mxu0 0.0
      %1750 = vmatpush2.msra.mxu0 0.0
      %1751 = vmatprep.mubr.f32.mxu0 0.0
      %1752 = vmatmul.mubr.f32.gmra.mxu0 %v1608
      %v1753 = vpop.f32.mrf.mxu0
      %v1754 = vadd.f32 0.0, %v1753
      %v1755 = vpop.f32.mrf.mxu0
      %1756 = vmatprep.mubr.f32.mxu0 0.0
      %1757 = vmatmul.mubr.f32.gmra.mxu0 %v1610
      %v1758 = vpop.f32.mrf.mxu0
      %v1759 = vadd.f32 0.0, %v1758
      %v1760 = vpop.f32.mrf.mxu0
      %1761 = vmatprep.mubr.f32.mxu0 0.0
      %1762 = vmatmul.mubr.f32.gmra.mxu0 %v1612
      %v1763 = vpop.f32.mrf.mxu0
      %v1764 = vadd.f32 0.0, %v1763
      %v1765 = vpop.f32.mrf.mxu0
      %1766 = vmatprep.mubr.f32.mxu0 0.0
      %1767 = vmatmul.mubr.f32.gmra.mxu0 %v1614
      %v1768 = vpop.f32.mrf.mxu0
      %v1769 = vadd.f32 0.0, %v1768
      %v1770 = vpop.f32.mrf.mxu0
      %1771 = vmatprep.mubr.f32.mxu0 0.0
      %1772 = vmatmul.mubr.f32.gmra.mxu0 %v1616
      %v1773 = vpop.f32.mrf.mxu0
      %v1774 = vadd.f32 0.0, %v1773
      %v1775 = vpop.f32.mrf.mxu0
      %1776 = vmatprep.mubr.f32.mxu0 0.0
      %1777 = vmatmul.mubr.f32.gmra.mxu0 %v1618
      %v1778 = vpop.f32.mrf.mxu0
      %v1779 = vadd.f32 0.0, %v1778
      %v1780 = vpop.f32.mrf.mxu0
      %1781 = vmatprep.mubr.f32.mxu0 0.0
      %1782 = vmatmul.mubr.f32.gmra.mxu0 %v1620
      %v1783 = vpop.f32.mrf.mxu0
      %v1784 = vadd.f32 0.0, %v1783
      %v1785 = vpop.f32.mrf.mxu0
      %1786 = vmatprep.mubr.f32.mxu0 0.0
      %1787 = vmatmul.mubr.f32.gmra.mxu0 %v1622
      %v1788 = vpop.f32.mrf.mxu0
      %v1789 = vadd.f32 0.0, %v1788
      %v1790 = vpop.f32.mrf.mxu0
      %1791 = vmatprep.mubr.f32.mxu0 0.0
      %1792 = vmatmul.mubr.f32.gmra.mxu0 %v1624
      %v1793 = vpop.f32.mrf.mxu0
      %v1794 = vadd.f32 0.0, %v1793
      %v1795 = vpop.f32.mrf.mxu0
      %1796 = vmatprep.mubr.f32.mxu0 0.0
      %1797 = vmatmul.mubr.f32.gmra.mxu0 %v1626
      %v1798 = vpop.f32.mrf.mxu0
      %v1799 = vadd.f32 0.0, %v1798
      %v1800 = vpop.f32.mrf.mxu0
      %1801 = vmatprep.mubr.f32.mxu0 0.0
      %1802 = vmatmul.mubr.f32.gmra.mxu0 %v1628
      %v1803 = vpop.f32.mrf.mxu0
      %v1804 = vadd.f32 0.0, %v1803
      %v1805 = vpop.f32.mrf.mxu0
      %1806 = vmatprep.mubr.f32.mxu0 0.0
      %1807 = vmatmul.mubr.f32.gmra.mxu0 %v1630
      %v1808 = vpop.f32.mrf.mxu0
      %v1809 = vadd.f32 0.0, %v1808
      %v1810 = vpop.f32.mrf.mxu0
      %1811 = vmatprep.mubr.f32.mxu0 0.0
      %1812 = vmatmul.mubr.f32.gmra.mxu0 %v1632
      %v1813 = vpop.f32.mrf.mxu0
      %v1814 = vadd.f32 0.0, %v1813
      %v1815 = vpop.f32.mrf.mxu0
      %1816 = vmatprep.mubr.f32.mxu0 0.0
      %1817 = vmatmul.mubr.f32.gmra.mxu0 %v1634
      %v1818 = vpop.f32.mrf.mxu0
      %v1819 = vadd.f32 0.0, %v1818
      %v1820 = vpop.f32.mrf.mxu0
      %1821 = vmatprep.mubr.f32.mxu0 0.0
      %1822 = vmatmul.mubr.f32.gmra.mxu0 %v1636
      %v1823 = vpop.f32.mrf.mxu0
      %v1824 = vadd.f32 0.0, %v1823
      %v1825 = vpop.f32.mrf.mxu0
      %1826 = vmatprep.mubr.f32.mxu0 0.0
      %1827 = vmatmul.mubr.f32.gmra.mxu0 %v1638
      %v1828 = vpop.f32.mrf.mxu0
      %v1829 = vadd.f32 0.0, %v1828
      %v1830 = vpop.f32.mrf.mxu0
      %1831 = vdwg.mxu0
      %v1833 = vsel %vm611, %v1754, 0
      %v1836 = vsel %vm611, %v1759, 0
      %v1839 = vsel %vm611, %v1764, 0
      %v1842 = vsel %vm611, %v1769, 0
      %v1845 = vsel %vm611, %v1774, 0
      %v1848 = vsel %vm611, %v1779, 0
      %v1851 = vsel %vm611, %v1784, 0
      %v1854 = vsel %vm611, %v1789, 0
      %v1857 = vsel %vm611, %v1794, 0
      %v1860 = vsel %vm611, %v1799, 0
      %v1863 = vsel %vm611, %v1804, 0
      %v1866 = vsel %vm611, %v1809, 0
      %v1869 = vsel %vm611, %v1814, 0
      %v1872 = vsel %vm611, %v1819, 0
      %v1875 = vsel %vm611, %v1824, 0
      %v1878 = vsel %vm611, %v1829, 0
      %1880 = vmatprep.subr.mxu0 0.0
      %1881 = vmatpush1.msra.mxu0 0.0
      %1882 = vmatprep.subr.mxu0 0.0
      %1883 = vmatpush1.msra.mxu0 0.0
      %1884 = vmatprep.subr.mxu0 0.0
      %1885 = vmatpush1.msra.mxu0 0.0
      %1886 = vmatprep.subr.mxu0 0.0
      %1887 = vmatpush1.msra.mxu0 0.0
      %1888 = vmatprep.subr.mxu0 0.0
      %1889 = vmatpush1.msra.mxu0 0.0
      %1890 = vmatprep.subr.mxu0 0.0
      %1891 = vmatpush1.msra.mxu0 0.0
      %1892 = vmatprep.subr.mxu0 0.0
      %1893 = vmatpush1.msra.mxu0 0.0
      %1894 = vmatprep.subr.mxu0 0.0
      %1895 = vmatpush1.msra.mxu0 0.0
      %1896 = vmatprep.subr.mxu0 0.0
      %1897 = vmatpush1.msra.mxu0 0.0
      %1898 = vmatprep.subr.mxu0 0.0
      %1899 = vmatpush1.msra.mxu0 0.0
      %1900 = vmatprep.subr.mxu0 0.0
      %1901 = vmatpush1.msra.mxu0 0.0
      %1902 = vmatprep.subr.mxu0 0.0
      %1903 = vmatpush1.msra.mxu0 0.0
      %1904 = vmatprep.subr.mxu0 0.0
      %1905 = vmatpush1.msra.mxu0 0.0
      %1906 = vmatprep.subr.mxu0 0.0
      %1907 = vmatpush1.msra.mxu0 0.0
      %1908 = vmatprep.subr.mxu0 0.0
      %1909 = vmatpush1.msra.mxu0 0.0
      %1910 = vmatprep.subr.mxu0 0.0
      %1911 = vmatpush1.msra.mxu0 %v560
      %1912 = vmatprep.subr.mxu0 0.0
      %1913 = vmatpush2.msra.mxu0 0.0
      %1914 = vmatprep.subr.mxu0 0.0
      %1915 = vmatpush2.msra.mxu0 0.0
      %1916 = vmatprep.subr.mxu0 0.0
      %1917 = vmatpush2.msra.mxu0 0.0
      %1918 = vmatprep.subr.mxu0 0.0
      %1919 = vmatpush2.msra.mxu0 0.0
      %1920 = vmatprep.subr.mxu0 0.0
      %1921 = vmatpush2.msra.mxu0 0.0
      %1922 = vmatprep.subr.mxu0 0.0
      %1923 = vmatpush2.msra.mxu0 0.0
      %1924 = vmatprep.subr.mxu0 0.0
      %1925 = vmatpush2.msra.mxu0 0.0
      %1926 = vmatprep.subr.mxu0 0.0
      %1927 = vmatpush2.msra.mxu0 0.0
      %1928 = vmatprep.subr.mxu0 0.0
      %1929 = vmatpush2.msra.mxu0 0.0
      %1930 = vmatprep.subr.mxu0 0.0
      %1931 = vmatpush2.msra.mxu0 0.0
      %1932 = vmatprep.subr.mxu0 0.0
      %1933 = vmatpush2.msra.mxu0 0.0
      %1934 = vmatprep.subr.mxu0 0.0
      %1935 = vmatpush2.msra.mxu0 0.0
      %1936 = vmatprep.subr.mxu0 0.0
      %1937 = vmatpush2.msra.mxu0 0.0
      %1938 = vmatprep.subr.mxu0 0.0
      %1939 = vmatpush2.msra.mxu0 0.0
      %1940 = vmatprep.subr.mxu0 0.0
      %1941 = vmatpush2.msra.mxu0 0.0
      %1942 = vmatprep.subr.mxu0 0.0
      %1943 = vmatpush2.msra.mxu0 0.0
      %1944 = vmatprep.mubr.f32.mxu0 0.0
      %1945 = vmatmul.mubr.f32.gmra.mxu0 %v1833
      %v1946 = vpop.f32.mrf.mxu0
      %v1947 = vadd.f32 0.0, %v1946
      %v1948 = vpop.f32.mrf.mxu0
      %1949 = vmatprep.mubr.f32.mxu0 0.0
      %1950 = vmatmul.mubr.f32.gmra.mxu0 %v1836
      %v1951 = vpop.f32.mrf.mxu0
      %v1952 = vadd.f32 0.0, %v1951
      %v1953 = vpop.f32.mrf.mxu0
      %1954 = vmatprep.mubr.f32.mxu0 0.0
      %1955 = vmatmul.mubr.f32.gmra.mxu0 %v1839
      %v1956 = vpop.f32.mrf.mxu0
      %v1957 = vadd.f32 0.0, %v1956
      %v1958 = vpop.f32.mrf.mxu0
      %1959 = vmatprep.mubr.f32.mxu0 0.0
      %1960 = vmatmul.mubr.f32.gmra.mxu0 %v1842
      %v1961 = vpop.f32.mrf.mxu0
      %v1962 = vadd.f32 0.0, %v1961
      %v1963 = vpop.f32.mrf.mxu0
      %1964 = vmatprep.mubr.f32.mxu0 0.0
      %1965 = vmatmul.mubr.f32.gmra.mxu0 %v1845
      %v1966 = vpop.f32.mrf.mxu0
      %v1967 = vadd.f32 0.0, %v1966
      %v1968 = vpop.f32.mrf.mxu0
      %1969 = vmatprep.mubr.f32.mxu0 0.0
      %1970 = vmatmul.mubr.f32.gmra.mxu0 %v1848
      %v1971 = vpop.f32.mrf.mxu0
      %v1972 = vadd.f32 0.0, %v1971
      %v1973 = vpop.f32.mrf.mxu0
      %1974 = vmatprep.mubr.f32.mxu0 0.0
      %1975 = vmatmul.mubr.f32.gmra.mxu0 %v1851
      %v1976 = vpop.f32.mrf.mxu0
      %v1977 = vadd.f32 0.0, %v1976
      %v1978 = vpop.f32.mrf.mxu0
      %1979 = vmatprep.mubr.f32.mxu0 0.0
      %1980 = vmatmul.mubr.f32.gmra.mxu0 %v1854
      %v1981 = vpop.f32.mrf.mxu0
      %v1982 = vadd.f32 0.0, %v1981
      %v1983 = vpop.f32.mrf.mxu0
      %1984 = vmatprep.mubr.f32.mxu0 0.0
      %1985 = vmatmul.mubr.f32.gmra.mxu0 %v1857
      %v1986 = vpop.f32.mrf.mxu0
      %v1987 = vadd.f32 0.0, %v1986
      %v1988 = vpop.f32.mrf.mxu0
      %1989 = vmatprep.mubr.f32.mxu0 0.0
      %1990 = vmatmul.mubr.f32.gmra.mxu0 %v1860
      %v1991 = vpop.f32.mrf.mxu0
      %v1992 = vadd.f32 0.0, %v1991
      %v1993 = vpop.f32.mrf.mxu0
      %1994 = vmatprep.mubr.f32.mxu0 0.0
      %1995 = vmatmul.mubr.f32.gmra.mxu0 %v1863
      %v1996 = vpop.f32.mrf.mxu0
      %v1997 = vadd.f32 0.0, %v1996
      %v1998 = vpop.f32.mrf.mxu0
      %1999 = vmatprep.mubr.f32.mxu0 0.0
      %2000 = vmatmul.mubr.f32.gmra.mxu0 %v1866
      %v2001 = vpop.f32.mrf.mxu0
      %v2002 = vadd.f32 0.0, %v2001
      %v2003 = vpop.f32.mrf.mxu0
      %2004 = vmatprep.mubr.f32.mxu0 0.0
      %2005 = vmatmul.mubr.f32.gmra.mxu0 %v1869
      %v2006 = vpop.f32.mrf.mxu0
      %v2007 = vadd.f32 0.0, %v2006
      %v2008 = vpop.f32.mrf.mxu0
      %2009 = vmatprep.mubr.f32.mxu0 0.0
      %2010 = vmatmul.mubr.f32.gmra.mxu0 %v1872
      %v2011 = vpop.f32.mrf.mxu0
      %v2012 = vadd.f32 0.0, %v2011
      %v2013 = vpop.f32.mrf.mxu0
      %2014 = vmatprep.mubr.f32.mxu0 0.0
      %2015 = vmatmul.mubr.f32.gmra.mxu0 %v1875
      %v2016 = vpop.f32.mrf.mxu0
      %v2017 = vadd.f32 0.0, %v2016
      %v2018 = vpop.f32.mrf.mxu0
      %2019 = vmatprep.mubr.f32.mxu0 0.0
      %2020 = vmatmul.mubr.f32.gmra.mxu0 %v1878
      %v2021 = vpop.f32.mrf.mxu0
      %v2022 = vadd.f32 0.0, %v2021
      %v2023 = vpop.f32.mrf.mxu0
      %2024 = vdwg.mxu0
      %v2026 = vsel %vm611, %v1112, 0
      %v2029 = vsel %vm611, %v1117, 0
      %v2032 = vsel %vm611, %v1122, 0
      %v2035 = vsel %vm611, %v1127, 0
      %v2038 = vsel %vm611, %v1132, 0
      %v2041 = vsel %vm611, %v1137, 0
      %v2044 = vsel %vm611, %v1142, 0
      %v2047 = vsel %vm611, %v1147, 0
      %v2050 = vsel %vm611, %v1152, 0
      %v2053 = vsel %vm611, %v1157, 0
      %v2056 = vsel %vm611, %v1162, 0
      %v2059 = vsel %vm611, %v1167, 0
      %v2062 = vsel %vm611, %v1172, 0
      %v2065 = vsel %vm611, %v1177, 0
      %v2068 = vsel %vm611, %v1182, 0
      %v2071 = vsel %vm611, %v1187, 0
      %2073 = vmatprep.subr.mxu0 0.0
      %2074 = vmatpush1.msra.mxu0 0.0
      %2075 = vmatprep.subr.mxu0 0.0
      %2076 = vmatpush1.msra.mxu0 0.0
      %2077 = vmatprep.subr.mxu0 0.0
      %2078 = vmatpush1.msra.mxu0 0.0
      %2079 = vmatprep.subr.mxu0 0.0
      %2080 = vmatpush1.msra.mxu0 0.0
      %2081 = vmatprep.subr.mxu0 0.0
      %2082 = vmatpush1.msra.mxu0 0.0
      %2083 = vmatprep.subr.mxu0 0.0
      %2084 = vmatpush1.msra.mxu0 0.0
      %2085 = vmatprep.subr.mxu0 0.0
      %2086 = vmatpush1.msra.mxu0 0.0
      %2087 = vmatprep.subr.mxu0 0.0
      %2088 = vmatpush1.msra.mxu0 0.0
      %2089 = vmatprep.subr.mxu0 0.0
      %2090 = vmatpush1.msra.mxu0 0.0
      %2091 = vmatprep.subr.mxu0 0.0
      %2092 = vmatpush1.msra.mxu0 0.0
      %2093 = vmatprep.subr.mxu0 0.0
      %2094 = vmatpush1.msra.mxu0 0.0
      %2095 = vmatprep.subr.mxu0 0.0
      %2096 = vmatpush1.msra.mxu0 0.0
      %2097 = vmatprep.subr.mxu0 0.0
      %2098 = vmatpush1.msra.mxu0 0.0
      %2099 = vmatprep.subr.mxu0 0.0
      %2100 = vmatpush1.msra.mxu0 0.0
      %2101 = vmatprep.subr.mxu0 0.0
      %2102 = vmatpush1.msra.mxu0 0.0
      %2103 = vmatprep.subr.mxu0 0.0
      %2104 = vmatpush1.msra.mxu0 %v559
      %2105 = vmatprep.subr.mxu0 0.0
      %2106 = vmatpush2.msra.mxu0 0.0
      %2107 = vmatprep.subr.mxu0 0.0
      %2108 = vmatpush2.msra.mxu0 0.0
      %2109 = vmatprep.subr.mxu0 0.0
      %2110 = vmatpush2.msra.mxu0 0.0
      %2111 = vmatprep.subr.mxu0 0.0
      %2112 = vmatpush2.msra.mxu0 0.0
      %2113 = vmatprep.subr.mxu0 0.0
      %2114 = vmatpush2.msra.mxu0 0.0
      %2115 = vmatprep.subr.mxu0 0.0
      %2116 = vmatpush2.msra.mxu0 0.0
      %2117 = vmatprep.subr.mxu0 0.0
      %2118 = vmatpush2.msra.mxu0 0.0
      %2119 = vmatprep.subr.mxu0 0.0
      %2120 = vmatpush2.msra.mxu0 0.0
      %2121 = vmatprep.subr.mxu0 0.0
      %2122 = vmatpush2.msra.mxu0 0.0
      %2123 = vmatprep.subr.mxu0 0.0
      %2124 = vmatpush2.msra.mxu0 0.0
      %2125 = vmatprep.subr.mxu0 0.0
      %2126 = vmatpush2.msra.mxu0 0.0
      %2127 = vmatprep.subr.mxu0 0.0
      %2128 = vmatpush2.msra.mxu0 0.0
      %2129 = vmatprep.subr.mxu0 0.0
      %2130 = vmatpush2.msra.mxu0 0.0
      %2131 = vmatprep.subr.mxu0 0.0
      %2132 = vmatpush2.msra.mxu0 0.0
      %2133 = vmatprep.subr.mxu0 0.0
      %2134 = vmatpush2.msra.mxu0 0.0
      %2135 = vmatprep.subr.mxu0 0.0
      %2136 = vmatpush2.msra.mxu0 0.0
      %2137 = vmatprep.mubr.f32.mxu0 0.0
      %2138 = vmatmul.mubr.f32.gmra.mxu0 %v2026
      %v2139 = vpop.f32.mrf.mxu0
      %v2140 = vadd.f32 %v1947, %v2139
      %v2141 = vpop.f32.mrf.mxu0
      %2142 = vmatprep.mubr.f32.mxu0 0.0
      %2143 = vmatmul.mubr.f32.gmra.mxu0 %v2029
      %v2144 = vpop.f32.mrf.mxu0
      %v2145 = vadd.f32 %v1952, %v2144
      %v2146 = vpop.f32.mrf.mxu0
      %2147 = vmatprep.mubr.f32.mxu0 0.0
      %2148 = vmatmul.mubr.f32.gmra.mxu0 %v2032
      %v2149 = vpop.f32.mrf.mxu0
      %v2150 = vadd.f32 %v1957, %v2149
      %v2151 = vpop.f32.mrf.mxu0
      %2152 = vmatprep.mubr.f32.mxu0 0.0
      %2153 = vmatmul.mubr.f32.gmra.mxu0 %v2035
      %v2154 = vpop.f32.mrf.mxu0
      %v2155 = vadd.f32 %v1962, %v2154
      %v2156 = vpop.f32.mrf.mxu0
      %2157 = vmatprep.mubr.f32.mxu0 0.0
      %2158 = vmatmul.mubr.f32.gmra.mxu0 %v2038
      %v2159 = vpop.f32.mrf.mxu0
      %v2160 = vadd.f32 %v1967, %v2159
      %v2161 = vpop.f32.mrf.mxu0
      %2162 = vmatprep.mubr.f32.mxu0 0.0
      %2163 = vmatmul.mubr.f32.gmra.mxu0 %v2041
      %v2164 = vpop.f32.mrf.mxu0
      %v2165 = vadd.f32 %v1972, %v2164
      %v2166 = vpop.f32.mrf.mxu0
      %2167 = vmatprep.mubr.f32.mxu0 0.0
      %2168 = vmatmul.mubr.f32.gmra.mxu0 %v2044
      %v2169 = vpop.f32.mrf.mxu0
      %v2170 = vadd.f32 %v1977, %v2169
      %v2171 = vpop.f32.mrf.mxu0
      %2172 = vmatprep.mubr.f32.mxu0 0.0
      %2173 = vmatmul.mubr.f32.gmra.mxu0 %v2047
      %v2174 = vpop.f32.mrf.mxu0
      %v2175 = vadd.f32 %v1982, %v2174
      %v2176 = vpop.f32.mrf.mxu0
      %2177 = vmatprep.mubr.f32.mxu0 0.0
      %2178 = vmatmul.mubr.f32.gmra.mxu0 %v2050
      %v2179 = vpop.f32.mrf.mxu0
      %v2180 = vadd.f32 %v1987, %v2179
      %v2181 = vpop.f32.mrf.mxu0
      %2182 = vmatprep.mubr.f32.mxu0 0.0
      %2183 = vmatmul.mubr.f32.gmra.mxu0 %v2053
      %v2184 = vpop.f32.mrf.mxu0
      %v2185 = vadd.f32 %v1992, %v2184
      %v2186 = vpop.f32.mrf.mxu0
      %2187 = vmatprep.mubr.f32.mxu0 0.0
      %2188 = vmatmul.mubr.f32.gmra.mxu0 %v2056
      %v2189 = vpop.f32.mrf.mxu0
      %v2190 = vadd.f32 %v1997, %v2189
      %v2191 = vpop.f32.mrf.mxu0
      %2192 = vmatprep.mubr.f32.mxu0 0.0
      %2193 = vmatmul.mubr.f32.gmra.mxu0 %v2059
      %v2194 = vpop.f32.mrf.mxu0
      %v2195 = vadd.f32 %v2002, %v2194
      %v2196 = vpop.f32.mrf.mxu0
      %2197 = vmatprep.mubr.f32.mxu0 0.0
      %2198 = vmatmul.mubr.f32.gmra.mxu0 %v2062
      %v2199 = vpop.f32.mrf.mxu0
      %v2200 = vadd.f32 %v2007, %v2199
      %v2201 = vpop.f32.mrf.mxu0
      %2202 = vmatprep.mubr.f32.mxu0 0.0
      %2203 = vmatmul.mubr.f32.gmra.mxu0 %v2065
      %v2204 = vpop.f32.mrf.mxu0
      %v2205 = vadd.f32 %v2012, %v2204
      %v2206 = vpop.f32.mrf.mxu0
      %2207 = vmatprep.mubr.f32.mxu0 0.0
      %2208 = vmatmul.mubr.f32.gmra.mxu0 %v2068
      %v2209 = vpop.f32.mrf.mxu0
      %v2210 = vadd.f32 %v2017, %v2209
      %v2211 = vpop.f32.mrf.mxu0
      %2212 = vmatprep.mubr.f32.mxu0 0.0
      %2213 = vmatmul.mubr.f32.gmra.mxu0 %v2071
      %v2214 = vpop.f32.mrf.mxu0
      %v2215 = vadd.f32 %v2022, %v2214
      %v2216 = vpop.f32.mrf.mxu0
      %2217 = vdwg.mxu0
      %2218 = vrot.lane.b32.xlu0 %v527, 112
      %v2219 = vpop.permute.xlu0 %2218
      %2220 = vrot.lane.b32.xlu0 %v528, 112
      %v2221 = vpop.permute.xlu0 %2220
      %2222 = vrot.lane.b32.xlu0 %v529, 112
      %v2223 = vpop.permute.xlu0 %2222
      %2224 = vrot.lane.b32.xlu0 %v530, 112
      %v2225 = vpop.permute.xlu0 %2224
      %2226 = vrot.lane.b32.xlu0 %v531, 112
      %v2227 = vpop.permute.xlu0 %2226
      %2228 = vrot.lane.b32.xlu0 %v532, 112
      %v2229 = vpop.permute.xlu0 %2228
      %2230 = vrot.lane.b32.xlu0 %v533, 112
      %v2231 = vpop.permute.xlu0 %2230
      %2232 = vrot.lane.b32.xlu0 %v534, 112
      %v2233 = vpop.permute.xlu0 %2232
      %2234 = vrot.lane.b32.xlu0 %v535, 112
      %v2235 = vpop.permute.xlu0 %2234
      %2236 = vrot.lane.b32.xlu0 %v536, 112
      %v2237 = vpop.permute.xlu0 %2236
      %2238 = vrot.lane.b32.xlu0 %v537, 112
      %v2239 = vpop.permute.xlu0 %2238
      %2240 = vrot.lane.b32.xlu0 %v538, 112
      %v2241 = vpop.permute.xlu0 %2240
      %2242 = vrot.lane.b32.xlu0 %v539, 112
      %v2243 = vpop.permute.xlu0 %2242
      %2244 = vrot.lane.b32.xlu0 %v540, 112
      %v2245 = vpop.permute.xlu0 %2244
      %2246 = vrot.lane.b32.xlu0 %v541, 112
      %v2247 = vpop.permute.xlu0 %2246
      %2248 = vrot.lane.b32.xlu0 %v542, 112
      %v2249 = vpop.permute.xlu0 %2248
      %2250 = vrot.lane.b32.xlu0 %v527, 80
      %v2251 = vpop.permute.xlu0 %2250
      %2252 = vrot.lane.b32.xlu0 %v528, 80
      %v2253 = vpop.permute.xlu0 %2252
      %2254 = vrot.lane.b32.xlu0 %v529, 80
      %v2255 = vpop.permute.xlu0 %2254
      %2256 = vrot.lane.b32.xlu0 %v530, 80
      %v2257 = vpop.permute.xlu0 %2256
      %2258 = vrot.lane.b32.xlu0 %v531, 80
      %v2259 = vpop.permute.xlu0 %2258
      %2260 = vrot.lane.b32.xlu0 %v532, 80
      %v2261 = vpop.permute.xlu0 %2260
      %2262 = vrot.lane.b32.xlu0 %v533, 80
      %v2263 = vpop.permute.xlu0 %2262
      %2264 = vrot.lane.b32.xlu0 %v534, 80
      %v2265 = vpop.permute.xlu0 %2264
      %2266 = vrot.lane.b32.xlu0 %v535, 80
      %v2267 = vpop.permute.xlu0 %2266
      %2268 = vrot.lane.b32.xlu0 %v536, 80
      %v2269 = vpop.permute.xlu0 %2268
      %2270 = vrot.lane.b32.xlu0 %v537, 80
      %v2271 = vpop.permute.xlu0 %2270
      %2272 = vrot.lane.b32.xlu0 %v538, 80
      %v2273 = vpop.permute.xlu0 %2272
      %2274 = vrot.lane.b32.xlu0 %v539, 80
      %v2275 = vpop.permute.xlu0 %2274
      %2276 = vrot.lane.b32.xlu0 %v540, 80
      %v2277 = vpop.permute.xlu0 %2276
      %2278 = vrot.lane.b32.xlu0 %v541, 80
      %v2279 = vpop.permute.xlu0 %2278
      %2280 = vrot.lane.b32.xlu0 %v542, 80
      %v2281 = vpop.permute.xlu0 %2280
      %v2282 = vsel %vm611, %v2219, 0
      %v2284 = vsel %vm611, %v2221, 0
      %v2286 = vsel %vm611, %v2223, 0
      %v2288 = vsel %vm611, %v2225, 0
      %v2290 = vsel %vm611, %v2227, 0
      %v2292 = vsel %vm611, %v2229, 0
      %v2294 = vsel %vm611, %v2231, 0
      %v2296 = vsel %vm611, %v2233, 0
      %v2298 = vsel %vm611, %v2235, 0
      %v2300 = vsel %vm611, %v2237, 0
      %v2302 = vsel %vm611, %v2239, 0
      %v2304 = vsel %vm611, %v2241, 0
      %v2306 = vsel %vm611, %v2243, 0
      %v2308 = vsel %vm611, %v2245, 0
      %v2310 = vsel %vm611, %v2247, 0
      %v2312 = vsel %vm611, %v2249, 0
      %v2314 = vsel %vm611, %v2251, 0
      %v2316 = vsel %vm611, %v2253, 0
      %v2318 = vsel %vm611, %v2255, 0
      %v2320 = vsel %vm611, %v2257, 0
      %v2322 = vsel %vm611, %v2259, 0
      %v2324 = vsel %vm611, %v2261, 0
      %v2326 = vsel %vm611, %v2263, 0
      %v2328 = vsel %vm611, %v2265, 0
      %v2330 = vsel %vm611, %v2267, 0
      %v2332 = vsel %vm611, %v2269, 0
      %v2334 = vsel %vm611, %v2271, 0
      %v2336 = vsel %vm611, %v2273, 0
      %v2338 = vsel %vm611, %v2275, 0
      %v2340 = vsel %vm611, %v2277, 0
      %v2342 = vsel %vm611, %v2279, 0
      %v2344 = vsel %vm611, %v2281, 0
      %2346 = vmatprep.subr.mxu0 0.0
      %2347 = vmatpush1.xpose.msra.mxu0 %v2344
      %2348 = vmatprep.subr.mxu0 0.0
      %2349 = vmatpush1.xpose.msra.mxu0 %v2342
      %2350 = vmatprep.subr.mxu0 0.0
      %2351 = vmatpush1.xpose.msra.mxu0 %v2340
      %2352 = vmatprep.subr.mxu0 0.0
      %2353 = vmatpush1.xpose.msra.mxu0 %v2338
      %2354 = vmatprep.subr.mxu0 0.0
      %2355 = vmatpush1.xpose.msra.mxu0 %v2336
      %2356 = vmatprep.subr.mxu0 0.0
      %2357 = vmatpush1.xpose.msra.mxu0 %v2334
      %2358 = vmatprep.subr.mxu0 0.0
      %2359 = vmatpush1.xpose.msra.mxu0 %v2332
      %2360 = vmatprep.subr.mxu0 0.0
      %2361 = vmatpush1.xpose.msra.mxu0 %v2330
      %2362 = vmatprep.subr.mxu0 0.0
      %2363 = vmatpush1.xpose.msra.mxu0 %v2328
      %2364 = vmatprep.subr.mxu0 0.0
      %2365 = vmatpush1.xpose.msra.mxu0 %v2326
      %2366 = vmatprep.subr.mxu0 0.0
      %2367 = vmatpush1.xpose.msra.mxu0 %v2324
      %2368 = vmatprep.subr.mxu0 0.0
      %2369 = vmatpush1.xpose.msra.mxu0 %v2322
      %2370 = vmatprep.subr.mxu0 0.0
      %2371 = vmatpush1.xpose.msra.mxu0 %v2320
      %2372 = vmatprep.subr.mxu0 0.0
      %2373 = vmatpush1.xpose.msra.mxu0 %v2318
      %2374 = vmatprep.subr.mxu0 0.0
      %2375 = vmatpush1.xpose.msra.mxu0 %v2316
      %2376 = vmatprep.subr.mxu0 0.0
      %2377 = vmatpush1.xpose.msra.mxu0 %v2314
      %2378 = vmatprep.subr.mxu0 0.0
      %2379 = vmatpush2.xpose.msra.mxu0 0.0
      %2380 = vmatprep.subr.mxu0 0.0
      %2381 = vmatpush2.xpose.msra.mxu0 0.0
      %2382 = vmatprep.subr.mxu0 0.0
      %2383 = vmatpush2.xpose.msra.mxu0 0.0
      %2384 = vmatprep.subr.mxu0 0.0
      %2385 = vmatpush2.xpose.msra.mxu0 0.0
      %2386 = vmatprep.subr.mxu0 0.0
      %2387 = vmatpush2.xpose.msra.mxu0 0.0
      %2388 = vmatprep.subr.mxu0 0.0
      %2389 = vmatpush2.xpose.msra.mxu0 0.0
      %2390 = vmatprep.subr.mxu0 0.0
      %2391 = vmatpush2.xpose.msra.mxu0 0.0
      %2392 = vmatprep.subr.mxu0 0.0
      %2393 = vmatpush2.xpose.msra.mxu0 0.0
      %2394 = vmatprep.subr.mxu0 0.0
      %2395 = vmatpush2.xpose.msra.mxu0 0.0
      %2396 = vmatprep.subr.mxu0 0.0
      %2397 = vmatpush2.xpose.msra.mxu0 0.0
      %2398 = vmatprep.subr.mxu0 0.0
      %2399 = vmatpush2.xpose.msra.mxu0 0.0
      %2400 = vmatprep.subr.mxu0 0.0
      %2401 = vmatpush2.xpose.msra.mxu0 0.0
      %2402 = vmatprep.subr.mxu0 0.0
      %2403 = vmatpush2.xpose.msra.mxu0 0.0
      %2404 = vmatprep.subr.mxu0 0.0
      %2405 = vmatpush2.xpose.msra.mxu0 0.0
      %2406 = vmatprep.subr.mxu0 0.0
      %2407 = vmatpush2.xpose.msra.mxu0 0.0
      %2408 = vmatprep.subr.mxu0 0.0
      %2409 = vmatpush2.xpose.msra.mxu0 0.0
      %2410 = vmatprep.mubr.f32.mxu0 0.0
      %2411 = vmatmul.mubr.f32.gmra.mxu0 %v2282
      %v2412 = vpop.f32.mrf.mxu0
      %v2413 = vadd.f32 0.0, %v2412
      %v2414 = vpop.f32.mrf.mxu0
      %2415 = vmatprep.mubr.f32.mxu0 0.0
      %2416 = vmatmul.mubr.f32.gmra.mxu0 %v2284
      %v2417 = vpop.f32.mrf.mxu0
      %v2418 = vadd.f32 0.0, %v2417
      %v2419 = vpop.f32.mrf.mxu0
      %2420 = vmatprep.mubr.f32.mxu0 0.0
      %2421 = vmatmul.mubr.f32.gmra.mxu0 %v2286
      %v2422 = vpop.f32.mrf.mxu0
      %v2423 = vadd.f32 0.0, %v2422
      %v2424 = vpop.f32.mrf.mxu0
      %2425 = vmatprep.mubr.f32.mxu0 0.0
      %2426 = vmatmul.mubr.f32.gmra.mxu0 %v2288
      %v2427 = vpop.f32.mrf.mxu0
      %v2428 = vadd.f32 0.0, %v2427
      %v2429 = vpop.f32.mrf.mxu0
      %2430 = vmatprep.mubr.f32.mxu0 0.0
      %2431 = vmatmul.mubr.f32.gmra.mxu0 %v2290
      %v2432 = vpop.f32.mrf.mxu0
      %v2433 = vadd.f32 0.0, %v2432
      %v2434 = vpop.f32.mrf.mxu0
      %2435 = vmatprep.mubr.f32.mxu0 0.0
      %2436 = vmatmul.mubr.f32.gmra.mxu0 %v2292
      %v2437 = vpop.f32.mrf.mxu0
      %v2438 = vadd.f32 0.0, %v2437
      %v2439 = vpop.f32.mrf.mxu0
      %2440 = vmatprep.mubr.f32.mxu0 0.0
      %2441 = vmatmul.mubr.f32.gmra.mxu0 %v2294
      %v2442 = vpop.f32.mrf.mxu0
      %v2443 = vadd.f32 0.0, %v2442
      %v2444 = vpop.f32.mrf.mxu0
      %2445 = vmatprep.mubr.f32.mxu0 0.0
      %2446 = vmatmul.mubr.f32.gmra.mxu0 %v2296
      %v2447 = vpop.f32.mrf.mxu0
      %v2448 = vadd.f32 0.0, %v2447
      %v2449 = vpop.f32.mrf.mxu0
      %2450 = vmatprep.mubr.f32.mxu0 0.0
      %2451 = vmatmul.mubr.f32.gmra.mxu0 %v2298
      %v2452 = vpop.f32.mrf.mxu0
      %v2453 = vadd.f32 0.0, %v2452
      %v2454 = vpop.f32.mrf.mxu0
      %2455 = vmatprep.mubr.f32.mxu0 0.0
      %2456 = vmatmul.mubr.f32.gmra.mxu0 %v2300
      %v2457 = vpop.f32.mrf.mxu0
      %v2458 = vadd.f32 0.0, %v2457
      %v2459 = vpop.f32.mrf.mxu0
      %2460 = vmatprep.mubr.f32.mxu0 0.0
      %2461 = vmatmul.mubr.f32.gmra.mxu0 %v2302
      %v2462 = vpop.f32.mrf.mxu0
      %v2463 = vadd.f32 0.0, %v2462
      %v2464 = vpop.f32.mrf.mxu0
      %2465 = vmatprep.mubr.f32.mxu0 0.0
      %2466 = vmatmul.mubr.f32.gmra.mxu0 %v2304
      %v2467 = vpop.f32.mrf.mxu0
      %v2468 = vadd.f32 0.0, %v2467
      %v2469 = vpop.f32.mrf.mxu0
      %2470 = vmatprep.mubr.f32.mxu0 0.0
      %2471 = vmatmul.mubr.f32.gmra.mxu0 %v2306
      %v2472 = vpop.f32.mrf.mxu0
      %v2473 = vadd.f32 0.0, %v2472
      %v2474 = vpop.f32.mrf.mxu0
      %2475 = vmatprep.mubr.f32.mxu0 0.0
      %2476 = vmatmul.mubr.f32.gmra.mxu0 %v2308
      %v2477 = vpop.f32.mrf.mxu0
      %v2478 = vadd.f32 0.0, %v2477
      %v2479 = vpop.f32.mrf.mxu0
      %2480 = vmatprep.mubr.f32.mxu0 0.0
      %2481 = vmatmul.mubr.f32.gmra.mxu0 %v2310
      %v2482 = vpop.f32.mrf.mxu0
      %v2483 = vadd.f32 0.0, %v2482
      %v2484 = vpop.f32.mrf.mxu0
      %2485 = vmatprep.mubr.f32.mxu0 0.0
      %2486 = vmatmul.mubr.f32.gmra.mxu0 %v2312
      %v2487 = vpop.f32.mrf.mxu0
      %v2488 = vadd.f32 0.0, %v2487
      %v2489 = vpop.f32.mrf.mxu0
      %2490 = vdwg.mxu0
      %v2491 = vmul.f32 %v2413, 0.35355338
      %v2492 = vmul.f32 %v2418, 0.35355338
      %v2493 = vmul.f32 %v2423, 0.35355338
      %v2494 = vmul.f32 %v2428, 0.35355338
      %v2495 = vmul.f32 %v2433, 0.35355338
      %v2496 = vmul.f32 %v2438, 0.35355338
      %v2497 = vmul.f32 %v2443, 0.35355338
      %v2498 = vmul.f32 %v2448, 0.35355338
      %v2499 = vmul.f32 %v2453, 0.35355338
      %v2500 = vmul.f32 %v2458, 0.35355338
      %v2501 = vmul.f32 %v2463, 0.35355338
      %v2502 = vmul.f32 %v2468, 0.35355338
      %v2503 = vmul.f32 %v2473, 0.35355338
      %v2504 = vmul.f32 %v2478, 0.35355338
      %v2505 = vmul.f32 %v2483, 0.35355338
      %v2506 = vmul.f32 %v2488, 0.35355338
      %v2507 = vadd.f32 %v2491, %v543
      %v2508 = vadd.f32 %v2492, %v544
      %v2509 = vadd.f32 %v2493, %v545
      %v2510 = vadd.f32 %v2494, %v546
      %v2511 = vadd.f32 %v2495, %v547
      %v2512 = vadd.f32 %v2496, %v548
      %v2513 = vadd.f32 %v2497, %v549
      %v2514 = vadd.f32 %v2498, %v550
      %v2515 = vadd.f32 %v2499, %v551
      %v2516 = vadd.f32 %v2500, %v552
      %v2517 = vadd.f32 %v2501, %v553
      %v2518 = vadd.f32 %v2502, %v554
      %v2519 = vadd.f32 %v2503, %v555
      %v2520 = vadd.f32 %v2504, %v556
      %v2521 = vadd.f32 %v2505, %v557
      %v2522 = vadd.f32 %v2506, %v558
      %2523 = vmax.xlane.f32.xlu0 %v2507
      %v2524 = vpop.xlane.xlu0 %2523
      %2525 = vmax.xlane.f32.xlu0 %v2508
      %v2526 = vpop.xlane.xlu0 %2525
      %2527 = vmax.xlane.f32.xlu0 %v2509
      %v2528 = vpop.xlane.xlu0 %2527
      %2529 = vmax.xlane.f32.xlu0 %v2510
      %v2530 = vpop.xlane.xlu0 %2529
      %2531 = vmax.xlane.f32.xlu0 %v2511
      %v2532 = vpop.xlane.xlu0 %2531
      %2533 = vmax.xlane.f32.xlu0 %v2512
      %v2534 = vpop.xlane.xlu0 %2533
      %2535 = vmax.xlane.f32.xlu0 %v2513
      %v2536 = vpop.xlane.xlu0 %2535
      %2537 = vmax.xlane.f32.xlu0 %v2514
      %v2538 = vpop.xlane.xlu0 %2537
      %2539 = vmax.xlane.f32.xlu0 %v2515
      %v2540 = vpop.xlane.xlu0 %2539
      %2541 = vmax.xlane.f32.xlu0 %v2516
      %v2542 = vpop.xlane.xlu0 %2541
      %2543 = vmax.xlane.f32.xlu0 %v2517
      %v2544 = vpop.xlane.xlu0 %2543
      %2545 = vmax.xlane.f32.xlu0 %v2518
      %v2546 = vpop.xlane.xlu0 %2545
      %2547 = vmax.xlane.f32.xlu0 %v2519
      %v2548 = vpop.xlane.xlu0 %2547
      %2549 = vmax.xlane.f32.xlu0 %v2520
      %v2550 = vpop.xlane.xlu0 %2549
      %2551 = vmax.xlane.f32.xlu0 %v2521
      %v2552 = vpop.xlane.xlu0 %2551
      %2553 = vmax.xlane.f32.xlu0 %v2522
      %v2554 = vpop.xlane.xlu0 %2553
      %v2555 = vsub.f32 %v2507, %v2524
      %v2556 = vsub.f32 %v2508, %v2526
      %v2557 = vsub.f32 %v2509, %v2528
      %v2558 = vsub.f32 %v2510, %v2530
      %v2559 = vsub.f32 %v2511, %v2532
      %v2560 = vsub.f32 %v2512, %v2534
      %v2561 = vsub.f32 %v2513, %v2536
      %v2562 = vsub.f32 %v2514, %v2538
      %v2563 = vsub.f32 %v2515, %v2540
      %v2564 = vsub.f32 %v2516, %v2542
      %v2565 = vsub.f32 %v2517, %v2544
      %v2566 = vsub.f32 %v2518, %v2546
      %v2567 = vsub.f32 %v2519, %v2548
      %v2568 = vsub.f32 %v2520, %v2550
      %v2569 = vsub.f32 %v2521, %v2552
      %v2570 = vsub.f32 %v2522, %v2554
      %v2571 = vmul.f32 %v2555, 1.442695
      %v2572 = vpow.pop %v2571
      %v2573 = vmul.f32 %v2556, 1.442695
      %v2574 = vpow.pop %v2573
      %v2575 = vmul.f32 %v2557, 1.442695
      %v2576 = vpow.pop %v2575
      %v2577 = vmul.f32 %v2558, 1.442695
      %v2578 = vpow.pop %v2577
      %v2579 = vmul.f32 %v2559, 1.442695
      %v2580 = vpow.pop %v2579
      %v2581 = vmul.f32 %v2560, 1.442695
      %v2582 = vpow.pop %v2581
      %v2583 = vmul.f32 %v2561, 1.442695
      %v2584 = vpow.pop %v2583
      %v2585 = vmul.f32 %v2562, 1.442695
      %v2586 = vpow.pop %v2585
      %v2587 = vmul.f32 %v2563, 1.442695
      %v2588 = vpow.pop %v2587
      %v2589 = vmul.f32 %v2564, 1.442695
      %v2590 = vpow.pop %v2589
      %v2591 = vmul.f32 %v2565, 1.442695
      %v2592 = vpow.pop %v2591
      %v2593 = vmul.f32 %v2566, 1.442695
      %v2594 = vpow.pop %v2593
      %v2595 = vmul.f32 %v2567, 1.442695
      %v2596 = vpow.pop %v2595
      %v2597 = vmul.f32 %v2568, 1.442695
      %v2598 = vpow.pop %v2597
      %v2599 = vmul.f32 %v2569, 1.442695
      %v2600 = vpow.pop %v2599
      %v2601 = vmul.f32 %v2570, 1.442695
      %v2602 = vpow.pop %v2601
      %2603 = vadd.xlane.f32.xlu0 %v2572
      %v2604 = vpop.xlane.xlu0 %2603
      %2605 = vadd.xlane.f32.xlu0 %v2574
      %v2606 = vpop.xlane.xlu0 %2605
      %2607 = vadd.xlane.f32.xlu0 %v2576
      %v2608 = vpop.xlane.xlu0 %2607
      %2609 = vadd.xlane.f32.xlu0 %v2578
      %v2610 = vpop.xlane.xlu0 %2609
      %2611 = vadd.xlane.f32.xlu0 %v2580
      %v2612 = vpop.xlane.xlu0 %2611
      %2613 = vadd.xlane.f32.xlu0 %v2582
      %v2614 = vpop.xlane.xlu0 %2613
      %2615 = vadd.xlane.f32.xlu0 %v2584
      %v2616 = vpop.xlane.xlu0 %2615
      %2617 = vadd.xlane.f32.xlu0 %v2586
      %v2618 = vpop.xlane.xlu0 %2617
      %2619 = vadd.xlane.f32.xlu0 %v2588
      %v2620 = vpop.xlane.xlu0 %2619
      %2621 = vadd.xlane.f32.xlu0 %v2590
      %v2622 = vpop.xlane.xlu0 %2621
      %2623 = vadd.xlane.f32.xlu0 %v2592
      %v2624 = vpop.xlane.xlu0 %2623
      %2625 = vadd.xlane.f32.xlu0 %v2594
      %v2626 = vpop.xlane.xlu0 %2625
      %2627 = vadd.xlane.f32.xlu0 %v2596
      %v2628 = vpop.xlane.xlu0 %2627
      %2629 = vadd.xlane.f32.xlu0 %v2598
      %v2630 = vpop.xlane.xlu0 %2629
      %2631 = vadd.xlane.f32.xlu0 %v2600
      %v2632 = vpop.xlane.xlu0 %2631
      %2633 = vadd.xlane.f32.xlu0 %v2602
      %v2634 = vpop.xlane.xlu0 %2633
      %v2635 = vrcp.pop %v2604
      %v2636 = vmul.f32 %v2572, %v2635
      %v2637 = vrcp.pop %v2606
      %v2638 = vmul.f32 %v2574, %v2637
      %v2639 = vrcp.pop %v2608
      %v2640 = vmul.f32 %v2576, %v2639
      %v2641 = vrcp.pop %v2610
      %v2642 = vmul.f32 %v2578, %v2641
      %v2643 = vrcp.pop %v2612
      %v2644 = vmul.f32 %v2580, %v2643
      %v2645 = vrcp.pop %v2614
      %v2646 = vmul.f32 %v2582, %v2645
      %v2647 = vrcp.pop %v2616
      %v2648 = vmul.f32 %v2584, %v2647
      %v2649 = vrcp.pop %v2618
      %v2650 = vmul.f32 %v2586, %v2649
      %v2651 = vrcp.pop %v2620
      %v2652 = vmul.f32 %v2588, %v2651
      %v2653 = vrcp.pop %v2622
      %v2654 = vmul.f32 %v2590, %v2653
      %v2655 = vrcp.pop %v2624
      %v2656 = vmul.f32 %v2592, %v2655
      %v2657 = vrcp.pop %v2626
      %v2658 = vmul.f32 %v2594, %v2657
      %v2659 = vrcp.pop %v2628
      %v2660 = vmul.f32 %v2596, %v2659
      %v2661 = vrcp.pop %v2630
      %v2662 = vmul.f32 %v2598, %v2661
      %v2663 = vrcp.pop %v2632
      %v2664 = vmul.f32 %v2600, %v2663
      %v2665 = vrcp.pop %v2634
      %v2666 = vmul.f32 %v2602, %v2665
      %2667 = vrot.lane.b32.xlu0 %v527, 48
      %v2668 = vpop.permute.xlu0 %2667
      %2669 = vrot.lane.b32.xlu0 %v528, 48
      %v2670 = vpop.permute.xlu0 %2669
      %2671 = vrot.lane.b32.xlu0 %v529, 48
      %v2672 = vpop.permute.xlu0 %2671
      %2673 = vrot.lane.b32.xlu0 %v530, 48
      %v2674 = vpop.permute.xlu0 %2673
      %2675 = vrot.lane.b32.xlu0 %v531, 48
      %v2676 = vpop.permute.xlu0 %2675
      %2677 = vrot.lane.b32.xlu0 %v532, 48
      %v2678 = vpop.permute.xlu0 %2677
      %2679 = vrot.lane.b32.xlu0 %v533, 48
      %v2680 = vpop.permute.xlu0 %2679
      %2681 = vrot.lane.b32.xlu0 %v534, 48
      %v2682 = vpop.permute.xlu0 %2681
      %2683 = vrot.lane.b32.xlu0 %v535, 48
      %v2684 = vpop.permute.xlu0 %2683
      %2685 = vrot.lane.b32.xlu0 %v536, 48
      %v2686 = vpop.permute.xlu0 %2685
      %2687 = vrot.lane.b32.xlu0 %v537, 48
      %v2688 = vpop.permute.xlu0 %2687
      %2689 = vrot.lane.b32.xlu0 %v538, 48
      %v2690 = vpop.permute.xlu0 %2689
      %2691 = vrot.lane.b32.xlu0 %v539, 48
      %v2692 = vpop.permute.xlu0 %2691
      %2693 = vrot.lane.b32.xlu0 %v540, 48
      %v2694 = vpop.permute.xlu0 %2693
      %2695 = vrot.lane.b32.xlu0 %v541, 48
      %v2696 = vpop.permute.xlu0 %2695
      %2697 = vrot.lane.b32.xlu0 %v542, 48
      %v2698 = vpop.permute.xlu0 %2697
      %2715 = vmatprep.subr.mxu0 0.0
      %2716 = vmatpush1.msra.mxu0 %v2698
      %2717 = vmatprep.subr.mxu0 0.0
      %2718 = vmatpush1.msra.mxu0 %v2696
      %2719 = vmatprep.subr.mxu0 0.0
      %2720 = vmatpush1.msra.mxu0 %v2694
      %2721 = vmatprep.subr.mxu0 0.0
      %2722 = vmatpush1.msra.mxu0 %v2692
      %2723 = vmatprep.subr.mxu0 0.0
      %2724 = vmatpush1.msra.mxu0 %v2690
      %2725 = vmatprep.subr.mxu0 0.0
      %2726 = vmatpush1.msra.mxu0 %v2688
      %2727 = vmatprep.subr.mxu0 0.0
      %2728 = vmatpush1.msra.mxu0 %v2686
      %2729 = vmatprep.subr.mxu0 0.0
      %2730 = vmatpush1.msra.mxu0 %v2684
      %2731 = vmatprep.subr.mxu0 0.0
      %2732 = vmatpush1.msra.mxu0 %v2682
      %2733 = vmatprep.subr.mxu0 0.0
      %2734 = vmatpush1.msra.mxu0 %v2680
      %2735 = vmatprep.subr.mxu0 0.0
      %2736 = vmatpush1.msra.mxu0 %v2678
      %2737 = vmatprep.subr.mxu0 0.0
      %2738 = vmatpush1.msra.mxu0 %v2676
      %2739 = vmatprep.subr.mxu0 0.0
      %2740 = vmatpush1.msra.mxu0 %v2674
      %2741 = vmatprep.subr.mxu0 0.0
      %2742 = vmatpush1.msra.mxu0 %v2672
      %2743 = vmatprep.subr.mxu0 0.0
      %2744 = vmatpush1.msra.mxu0 %v2670
      %2745 = vmatprep.subr.mxu0 0.0
      %2746 = vmatpush1.msra.mxu0 %v2668
      %2747 = vmatprep.subr.mxu0 0.0
      %2748 = vmatpush2.msra.mxu0 0.0
      %2749 = vmatprep.subr.mxu0 0.0
      %2750 = vmatpush2.msra.mxu0 0.0
      %2751 = vmatprep.subr.mxu0 0.0
      %2752 = vmatpush2.msra.mxu0 0.0
      %2753 = vmatprep.subr.mxu0 0.0
      %2754 = vmatpush2.msra.mxu0 0.0
      %2755 = vmatprep.subr.mxu0 0.0
      %2756 = vmatpush2.msra.mxu0 0.0
      %2757 = vmatprep.subr.mxu0 0.0
      %2758 = vmatpush2.msra.mxu0 0.0
      %2759 = vmatprep.subr.mxu0 0.0
      %2760 = vmatpush2.msra.mxu0 0.0
      %2761 = vmatprep.subr.mxu0 0.0
      %2762 = vmatpush2.msra.mxu0 0.0
      %2763 = vmatprep.subr.mxu0 0.0
      %2764 = vmatpush2.msra.mxu0 0.0
      %2765 = vmatprep.subr.mxu0 0.0
      %2766 = vmatpush2.msra.mxu0 0.0
      %2767 = vmatprep.subr.mxu0 0.0
      %2768 = vmatpush2.msra.mxu0 0.0
      %2769 = vmatprep.subr.mxu0 0.0
      %2770 = vmatpush2.msra.mxu0 0.0
      %2771 = vmatprep.subr.mxu0 0.0
      %2772 = vmatpush2.msra.mxu0 0.0
      %2773 = vmatprep.subr.mxu0 0.0
      %2774 = vmatpush2.msra.mxu0 0.0
      %2775 = vmatprep.subr.mxu0 0.0
      %2776 = vmatpush2.msra.mxu0 0.0
      %2777 = vmatprep.subr.mxu0 0.0
      %2778 = vmatpush2.msra.mxu0 0.0
      %2779 = vmatprep.mubr.f32.mxu0 0.0
      %2780 = vmatmul.mubr.f32.gmra.mxu0 %v2636
      %v2781 = vpop.f32.mrf.mxu0
      %v2782 = vadd.f32 0.0, %v2781
      %v2783 = vpop.f32.mrf.mxu0
      %2784 = vmatprep.mubr.f32.mxu0 0.0
      %2785 = vmatmul.mubr.f32.gmra.mxu0 %v2638
      %v2786 = vpop.f32.mrf.mxu0
      %v2787 = vadd.f32 0.0, %v2786
      %v2788 = vpop.f32.mrf.mxu0
      %2789 = vmatprep.mubr.f32.mxu0 0.0
      %2790 = vmatmul.mubr.f32.gmra.mxu0 %v2640
      %v2791 = vpop.f32.mrf.mxu0
      %v2792 = vadd.f32 0.0, %v2791
      %v2793 = vpop.f32.mrf.mxu0
      %2794 = vmatprep.mubr.f32.mxu0 0.0
      %2795 = vmatmul.mubr.f32.gmra.mxu0 %v2642
      %v2796 = vpop.f32.mrf.mxu0
      %v2797 = vadd.f32 0.0, %v2796
      %v2798 = vpop.f32.mrf.mxu0
      %2799 = vmatprep.mubr.f32.mxu0 0.0
      %2800 = vmatmul.mubr.f32.gmra.mxu0 %v2644
      %v2801 = vpop.f32.mrf.mxu0
      %v2802 = vadd.f32 0.0, %v2801
      %v2803 = vpop.f32.mrf.mxu0
      %2804 = vmatprep.mubr.f32.mxu0 0.0
      %2805 = vmatmul.mubr.f32.gmra.mxu0 %v2646
      %v2806 = vpop.f32.mrf.mxu0
      %v2807 = vadd.f32 0.0, %v2806
      %v2808 = vpop.f32.mrf.mxu0
      %2809 = vmatprep.mubr.f32.mxu0 0.0
      %2810 = vmatmul.mubr.f32.gmra.mxu0 %v2648
      %v2811 = vpop.f32.mrf.mxu0
      %v2812 = vadd.f32 0.0, %v2811
      %v2813 = vpop.f32.mrf.mxu0
      %2814 = vmatprep.mubr.f32.mxu0 0.0
      %2815 = vmatmul.mubr.f32.gmra.mxu0 %v2650
      %v2816 = vpop.f32.mrf.mxu0
      %v2817 = vadd.f32 0.0, %v2816
      %v2818 = vpop.f32.mrf.mxu0
      %2819 = vmatprep.mubr.f32.mxu0 0.0
      %2820 = vmatmul.mubr.f32.gmra.mxu0 %v2652
      %v2821 = vpop.f32.mrf.mxu0
      %v2822 = vadd.f32 0.0, %v2821
      %v2823 = vpop.f32.mrf.mxu0
      %2824 = vmatprep.mubr.f32.mxu0 0.0
      %2825 = vmatmul.mubr.f32.gmra.mxu0 %v2654
      %v2826 = vpop.f32.mrf.mxu0
      %v2827 = vadd.f32 0.0, %v2826
      %v2828 = vpop.f32.mrf.mxu0
      %2829 = vmatprep.mubr.f32.mxu0 0.0
      %2830 = vmatmul.mubr.f32.gmra.mxu0 %v2656
      %v2831 = vpop.f32.mrf.mxu0
      %v2832 = vadd.f32 0.0, %v2831
      %v2833 = vpop.f32.mrf.mxu0
      %2834 = vmatprep.mubr.f32.mxu0 0.0
      %2835 = vmatmul.mubr.f32.gmra.mxu0 %v2658
      %v2836 = vpop.f32.mrf.mxu0
      %v2837 = vadd.f32 0.0, %v2836
      %v2838 = vpop.f32.mrf.mxu0
      %2839 = vmatprep.mubr.f32.mxu0 0.0
      %2840 = vmatmul.mubr.f32.gmra.mxu0 %v2660
      %v2841 = vpop.f32.mrf.mxu0
      %v2842 = vadd.f32 0.0, %v2841
      %v2843 = vpop.f32.mrf.mxu0
      %2844 = vmatprep.mubr.f32.mxu0 0.0
      %2845 = vmatmul.mubr.f32.gmra.mxu0 %v2662
      %v2846 = vpop.f32.mrf.mxu0
      %v2847 = vadd.f32 0.0, %v2846
      %v2848 = vpop.f32.mrf.mxu0
      %2849 = vmatprep.mubr.f32.mxu0 0.0
      %2850 = vmatmul.mubr.f32.gmra.mxu0 %v2664
      %v2851 = vpop.f32.mrf.mxu0
      %v2852 = vadd.f32 0.0, %v2851
      %v2853 = vpop.f32.mrf.mxu0
      %2854 = vmatprep.mubr.f32.mxu0 0.0
      %2855 = vmatmul.mubr.f32.gmra.mxu0 %v2666
      %v2856 = vpop.f32.mrf.mxu0
      %v2857 = vadd.f32 0.0, %v2856
      %v2858 = vpop.f32.mrf.mxu0
      %2859 = vdwg.mxu0
      %v2861 = vsel %vm611, %v2782, 0
      %v2864 = vsel %vm611, %v2787, 0
      %v2867 = vsel %vm611, %v2792, 0
      %v2870 = vsel %vm611, %v2797, 0
      %v2873 = vsel %vm611, %v2802, 0
      %v2876 = vsel %vm611, %v2807, 0
      %v2879 = vsel %vm611, %v2812, 0
      %v2882 = vsel %vm611, %v2817, 0
      %v2885 = vsel %vm611, %v2822, 0
      %v2888 = vsel %vm611, %v2827, 0
      %v2891 = vsel %vm611, %v2832, 0
      %v2894 = vsel %vm611, %v2837, 0
      %v2897 = vsel %vm611, %v2842, 0
      %v2900 = vsel %vm611, %v2847, 0
      %v2903 = vsel %vm611, %v2852, 0
      %v2906 = vsel %vm611, %v2857, 0
      %2908 = vmatprep.subr.mxu0 0.0
      %2909 = vmatpush1.msra.mxu0 0.0
      %2910 = vmatprep.subr.mxu0 0.0
      %2911 = vmatpush1.msra.mxu0 0.0
      %2912 = vmatprep.subr.mxu0 0.0
      %2913 = vmatpush1.msra.mxu0 0.0
      %2914 = vmatprep.subr.mxu0 0.0
      %2915 = vmatpush1.msra.mxu0 0.0
      %2916 = vmatprep.subr.mxu0 0.0
      %2917 = vmatpush1.msra.mxu0 0.0
      %2918 = vmatprep.subr.mxu0 0.0
      %2919 = vmatpush1.msra.mxu0 0.0
      %2920 = vmatprep.subr.mxu0 0.0
      %2921 = vmatpush1.msra.mxu0 0.0
      %2922 = vmatprep.subr.mxu0 0.0
      %2923 = vmatpush1.msra.mxu0 0.0
      %2924 = vmatprep.subr.mxu0 0.0
      %2925 = vmatpush1.msra.mxu0 0.0
      %2926 = vmatprep.subr.mxu0 0.0
      %2927 = vmatpush1.msra.mxu0 0.0
      %2928 = vmatprep.subr.mxu0 0.0
      %2929 = vmatpush1.msra.mxu0 0.0
      %2930 = vmatprep.subr.mxu0 0.0
      %2931 = vmatpush1.msra.mxu0 0.0
      %2932 = vmatprep.subr.mxu0 0.0
      %2933 = vmatpush1.msra.mxu0 0.0
      %2934 = vmatprep.subr.mxu0 0.0
      %2935 = vmatpush1.msra.mxu0 0.0
      %2936 = vmatprep.subr.mxu0 0.0
      %2937 = vmatpush1.msra.mxu0 0.0
      %2938 = vmatprep.subr.mxu0 0.0
      %2939 = vmatpush1.msra.mxu0 %v561
      %2940 = vmatprep.subr.mxu0 0.0
      %2941 = vmatpush2.msra.mxu0 0.0
      %2942 = vmatprep.subr.mxu0 0.0
      %2943 = vmatpush2.msra.mxu0 0.0
      %2944 = vmatprep.subr.mxu0 0.0
      %2945 = vmatpush2.msra.mxu0 0.0
      %2946 = vmatprep.subr.mxu0 0.0
      %2947 = vmatpush2.msra.mxu0 0.0
      %2948 = vmatprep.subr.mxu0 0.0
      %2949 = vmatpush2.msra.mxu0 0.0
      %2950 = vmatprep.subr.mxu0 0.0
      %2951 = vmatpush2.msra.mxu0 0.0
      %2952 = vmatprep.subr.mxu0 0.0
      %2953 = vmatpush2.msra.mxu0 0.0
      %2954 = vmatprep.subr.mxu0 0.0
      %2955 = vmatpush2.msra.mxu0 0.0
      %2956 = vmatprep.subr.mxu0 0.0
      %2957 = vmatpush2.msra.mxu0 0.0
      %2958 = vmatprep.subr.mxu0 0.0
      %2959 = vmatpush2.msra.mxu0 0.0
      %2960 = vmatprep.subr.mxu0 0.0
      %2961 = vmatpush2.msra.mxu0 0.0
      %2962 = vmatprep.subr.mxu0 0.0
      %2963 = vmatpush2.msra.mxu0 0.0
      %2964 = vmatprep.subr.mxu0 0.0
      %2965 = vmatpush2.msra.mxu0 0.0
      %2966 = vmatprep.subr.mxu0 0.0
      %2967 = vmatpush2.msra.mxu0 0.0
      %2968 = vmatprep.subr.mxu0 0.0
      %2969 = vmatpush2.msra.mxu0 0.0
      %2970 = vmatprep.subr.mxu0 0.0
      %2971 = vmatpush2.msra.mxu0 0.0
      %2972 = vmatprep.mubr.f32.mxu0 0.0
      %2973 = vmatmul.mubr.f32.gmra.mxu0 %v2861
      %v2974 = vpop.f32.mrf.mxu0
      %v2975 = vadd.f32 0.0, %v2974
      %v2976 = vpop.f32.mrf.mxu0
      %2977 = vmatprep.mubr.f32.mxu0 0.0
      %2978 = vmatmul.mubr.f32.gmra.mxu0 %v2864
      %v2979 = vpop.f32.mrf.mxu0
      %v2980 = vadd.f32 0.0, %v2979
      %v2981 = vpop.f32.mrf.mxu0
      %2982 = vmatprep.mubr.f32.mxu0 0.0
      %2983 = vmatmul.mubr.f32.gmra.mxu0 %v2867
      %v2984 = vpop.f32.mrf.mxu0
      %v2985 = vadd.f32 0.0, %v2984
      %v2986 = vpop.f32.mrf.mxu0
      %2987 = vmatprep.mubr.f32.mxu0 0.0
      %2988 = vmatmul.mubr.f32.gmra.mxu0 %v2870
      %v2989 = vpop.f32.mrf.mxu0
      %v2990 = vadd.f32 0.0, %v2989
      %v2991 = vpop.f32.mrf.mxu0
      %2992 = vmatprep.mubr.f32.mxu0 0.0
      %2993 = vmatmul.mubr.f32.gmra.mxu0 %v2873
      %v2994 = vpop.f32.mrf.mxu0
      %v2995 = vadd.f32 0.0, %v2994
      %v2996 = vpop.f32.mrf.mxu0
      %2997 = vmatprep.mubr.f32.mxu0 0.0
      %2998 = vmatmul.mubr.f32.gmra.mxu0 %v2876
      %v2999 = vpop.f32.mrf.mxu0
      %v3000 = vadd.f32 0.0, %v2999
      %v3001 = vpop.f32.mrf.mxu0
      %3002 = vmatprep.mubr.f32.mxu0 0.0
      %3003 = vmatmul.mubr.f32.gmra.mxu0 %v2879
      %v3004 = vpop.f32.mrf.mxu0
      %v3005 = vadd.f32 0.0, %v3004
      %v3006 = vpop.f32.mrf.mxu0
      %3007 = vmatprep.mubr.f32.mxu0 0.0
      %3008 = vmatmul.mubr.f32.gmra.mxu0 %v2882
      %v3009 = vpop.f32.mrf.mxu0
      %v3010 = vadd.f32 0.0, %v3009
      %v3011 = vpop.f32.mrf.mxu0
      %3012 = vmatprep.mubr.f32.mxu0 0.0
      %3013 = vmatmul.mubr.f32.gmra.mxu0 %v2885
      %v3014 = vpop.f32.mrf.mxu0
      %v3015 = vadd.f32 0.0, %v3014
      %v3016 = vpop.f32.mrf.mxu0
      %3017 = vmatprep.mubr.f32.mxu0 0.0
      %3018 = vmatmul.mubr.f32.gmra.mxu0 %v2888
      %v3019 = vpop.f32.mrf.mxu0
      %v3020 = vadd.f32 0.0, %v3019
      %v3021 = vpop.f32.mrf.mxu0
      %3022 = vmatprep.mubr.f32.mxu0 0.0
      %3023 = vmatmul.mubr.f32.gmra.mxu0 %v2891
      %v3024 = vpop.f32.mrf.mxu0
      %v3025 = vadd.f32 0.0, %v3024
      %v3026 = vpop.f32.mrf.mxu0
      %3027 = vmatprep.mubr.f32.mxu0 0.0
      %3028 = vmatmul.mubr.f32.gmra.mxu0 %v2894
      %v3029 = vpop.f32.mrf.mxu0
      %v3030 = vadd.f32 0.0, %v3029
      %v3031 = vpop.f32.mrf.mxu0
      %3032 = vmatprep.mubr.f32.mxu0 0.0
      %3033 = vmatmul.mubr.f32.gmra.mxu0 %v2897
      %v3034 = vpop.f32.mrf.mxu0
      %v3035 = vadd.f32 0.0, %v3034
      %v3036 = vpop.f32.mrf.mxu0
      %3037 = vmatprep.mubr.f32.mxu0 0.0
      %3038 = vmatmul.mubr.f32.gmra.mxu0 %v2900
      %v3039 = vpop.f32.mrf.mxu0
      %v3040 = vadd.f32 0.0, %v3039
      %v3041 = vpop.f32.mrf.mxu0
      %3042 = vmatprep.mubr.f32.mxu0 0.0
      %3043 = vmatmul.mubr.f32.gmra.mxu0 %v2903
      %v3044 = vpop.f32.mrf.mxu0
      %v3045 = vadd.f32 0.0, %v3044
      %v3046 = vpop.f32.mrf.mxu0
      %3047 = vmatprep.mubr.f32.mxu0 0.0
      %3048 = vmatmul.mubr.f32.gmra.mxu0 %v2906
      %v3049 = vpop.f32.mrf.mxu0
      %v3050 = vadd.f32 0.0, %v3049
      %v3051 = vpop.f32.mrf.mxu0
      %3052 = vdwg.mxu0
      %v3053 = vadd.f32 %v2140, %v2975
      %v3054 = vadd.f32 %v2145, %v2980
      %v3055 = vadd.f32 %v2150, %v2985
      %v3056 = vadd.f32 %v2155, %v2990
      %v3057 = vadd.f32 %v2160, %v2995
      %v3058 = vadd.f32 %v2165, %v3000
      %v3059 = vadd.f32 %v2170, %v3005
      %v3060 = vadd.f32 %v2175, %v3010
      %v3061 = vadd.f32 %v2180, %v3015
      %v3062 = vadd.f32 %v2185, %v3020
      %v3063 = vadd.f32 %v2190, %v3025
      %v3064 = vadd.f32 %v2195, %v3030
      %v3065 = vadd.f32 %v2200, %v3035
      %v3066 = vadd.f32 %v2205, %v3040
      %v3067 = vadd.f32 %v2210, %v3045
      %v3068 = vadd.f32 %v2215, %v3050
      %3069 = vrot.lane.b32.xlu0 %v527, 104
      %v3070 = vpop.permute.xlu0 %3069
      %3071 = vrot.lane.b32.xlu0 %v528, 104
      %v3072 = vpop.permute.xlu0 %3071
      %3073 = vrot.lane.b32.xlu0 %v529, 104
      %v3074 = vpop.permute.xlu0 %3073
      %3075 = vrot.lane.b32.xlu0 %v530, 104
      %v3076 = vpop.permute.xlu0 %3075
      %3077 = vrot.lane.b32.xlu0 %v531, 104
      %v3078 = vpop.permute.xlu0 %3077
      %3079 = vrot.lane.b32.xlu0 %v532, 104
      %v3080 = vpop.permute.xlu0 %3079
      %3081 = vrot.lane.b32.xlu0 %v533, 104
      %v3082 = vpop.permute.xlu0 %3081
      %3083 = vrot.lane.b32.xlu0 %v534, 104
      %v3084 = vpop.permute.xlu0 %3083
      %3085 = vrot.lane.b32.xlu0 %v535, 104
      %v3086 = vpop.permute.xlu0 %3085
      %3087 = vrot.lane.b32.xlu0 %v536, 104
      %v3088 = vpop.permute.xlu0 %3087
      %3089 = vrot.lane.b32.xlu0 %v537, 104
      %v3090 = vpop.permute.xlu0 %3089
      %3091 = vrot.lane.b32.xlu0 %v538, 104
      %v3092 = vpop.permute.xlu0 %3091
      %3093 = vrot.lane.b32.xlu0 %v539, 104
      %v3094 = vpop.permute.xlu0 %3093
      %3095 = vrot.lane.b32.xlu0 %v540, 104
      %v3096 = vpop.permute.xlu0 %3095
      %3097 = vrot.lane.b32.xlu0 %v541, 104
      %v3098 = vpop.permute.xlu0 %3097
      %3099 = vrot.lane.b32.xlu0 %v542, 104
      %v3100 = vpop.permute.xlu0 %3099
      %3101 = vrot.lane.b32.xlu0 %v527, 72
      %v3102 = vpop.permute.xlu0 %3101
      %3103 = vrot.lane.b32.xlu0 %v528, 72
      %v3104 = vpop.permute.xlu0 %3103
      %3105 = vrot.lane.b32.xlu0 %v529, 72
      %v3106 = vpop.permute.xlu0 %3105
      %3107 = vrot.lane.b32.xlu0 %v530, 72
      %v3108 = vpop.permute.xlu0 %3107
      %3109 = vrot.lane.b32.xlu0 %v531, 72
      %v3110 = vpop.permute.xlu0 %3109
      %3111 = vrot.lane.b32.xlu0 %v532, 72
      %v3112 = vpop.permute.xlu0 %3111
      %3113 = vrot.lane.b32.xlu0 %v533, 72
      %v3114 = vpop.permute.xlu0 %3113
      %3115 = vrot.lane.b32.xlu0 %v534, 72
      %v3116 = vpop.permute.xlu0 %3115
      %3117 = vrot.lane.b32.xlu0 %v535, 72
      %v3118 = vpop.permute.xlu0 %3117
      %3119 = vrot.lane.b32.xlu0 %v536, 72
      %v3120 = vpop.permute.xlu0 %3119
      %3121 = vrot.lane.b32.xlu0 %v537, 72
      %v3122 = vpop.permute.xlu0 %3121
      %3123 = vrot.lane.b32.xlu0 %v538, 72
      %v3124 = vpop.permute.xlu0 %3123
      %3125 = vrot.lane.b32.xlu0 %v539, 72
      %v3126 = vpop.permute.xlu0 %3125
      %3127 = vrot.lane.b32.xlu0 %v540, 72
      %v3128 = vpop.permute.xlu0 %3127
      %3129 = vrot.lane.b32.xlu0 %v541, 72
      %v3130 = vpop.permute.xlu0 %3129
      %3131 = vrot.lane.b32.xlu0 %v542, 72
      %v3132 = vpop.permute.xlu0 %3131
      %v3133 = vsel %vm611, %v3070, 0
      %v3135 = vsel %vm611, %v3072, 0
      %v3137 = vsel %vm611, %v3074, 0
      %v3139 = vsel %vm611, %v3076, 0
      %v3141 = vsel %vm611, %v3078, 0
      %v3143 = vsel %vm611, %v3080, 0
      %v3145 = vsel %vm611, %v3082, 0
      %v3147 = vsel %vm611, %v3084, 0
      %v3149 = vsel %vm611, %v3086, 0
      %v3151 = vsel %vm611, %v3088, 0
      %v3153 = vsel %vm611, %v3090, 0
      %v3155 = vsel %vm611, %v3092, 0
      %v3157 = vsel %vm611, %v3094, 0
      %v3159 = vsel %vm611, %v3096, 0
      %v3161 = vsel %vm611, %v3098, 0
      %v3163 = vsel %vm611, %v3100, 0
      %v3165 = vsel %vm611, %v3102, 0
      %v3167 = vsel %vm611, %v3104, 0
      %v3169 = vsel %vm611, %v3106, 0
      %v3171 = vsel %vm611, %v3108, 0
      %v3173 = vsel %vm611, %v3110, 0
      %v3175 = vsel %vm611, %v3112, 0
      %v3177 = vsel %vm611, %v3114, 0
      %v3179 = vsel %vm611, %v3116, 0
      %v3181 = vsel %vm611, %v3118, 0
      %v3183 = vsel %vm611, %v3120, 0
      %v3185 = vsel %vm611, %v3122, 0
      %v3187 = vsel %vm611, %v3124, 0
      %v3189 = vsel %vm611, %v3126, 0
      %v3191 = vsel %vm611, %v3128, 0
      %v3193 = vsel %vm611, %v3130, 0
      %v3195 = vsel %vm611, %v3132, 0
      %3197 = vmatprep.subr.mxu0 0.0
      %3198 = vmatpush1.xpose.msra.mxu0 %v3195
      %3199 = vmatprep.subr.mxu0 0.0
      %3200 = vmatpush1.xpose.msra.mxu0 %v3193
      %3201 = vmatprep.subr.mxu0 0.0
      %3202 = vmatpush1.xpose.msra.mxu0 %v3191
      %3203 = vmatprep.subr.mxu0 0.0
      %3204 = vmatpush1.xpose.msra.mxu0 %v3189
      %3205 = vmatprep.subr.mxu0 0.0
      %3206 = vmatpush1.xpose.msra.mxu0 %v3187
      %3207 = vmatprep.subr.mxu0 0.0
      %3208 = vmatpush1.xpose.msra.mxu0 %v3185
      %3209 = vmatprep.subr.mxu0 0.0
      %3210 = vmatpush1.xpose.msra.mxu0 %v3183
      %3211 = vmatprep.subr.mxu0 0.0
      %3212 = vmatpush1.xpose.msra.mxu0 %v3181
      %3213 = vmatprep.subr.mxu0 0.0
      %3214 = vmatpush1.xpose.msra.mxu0 %v3179
      %3215 = vmatprep.subr.mxu0 0.0
      %3216 = vmatpush1.xpose.msra.mxu0 %v3177
      %3217 = vmatprep.subr.mxu0 0.0
      %3218 = vmatpush1.xpose.msra.mxu0 %v3175
      %3219 = vmatprep.subr.mxu0 0.0
      %3220 = vmatpush1.xpose.msra.mxu0 %v3173
      %3221 = vmatprep.subr.mxu0 0.0
      %3222 = vmatpush1.xpose.msra.mxu0 %v3171
      %3223 = vmatprep.subr.mxu0 0.0
      %3224 = vmatpush1.xpose.msra.mxu0 %v3169
      %3225 = vmatprep.subr.mxu0 0.0
      %3226 = vmatpush1.xpose.msra.mxu0 %v3167
      %3227 = vmatprep.subr.mxu0 0.0
      %3228 = vmatpush1.xpose.msra.mxu0 %v3165
      %3229 = vmatprep.subr.mxu0 0.0
      %3230 = vmatpush2.xpose.msra.mxu0 0.0
      %3231 = vmatprep.subr.mxu0 0.0
      %3232 = vmatpush2.xpose.msra.mxu0 0.0
      %3233 = vmatprep.subr.mxu0 0.0
      %3234 = vmatpush2.xpose.msra.mxu0 0.0
      %3235 = vmatprep.subr.mxu0 0.0
      %3236 = vmatpush2.xpose.msra.mxu0 0.0
      %3237 = vmatprep.subr.mxu0 0.0
      %3238 = vmatpush2.xpose.msra.mxu0 0.0
      %3239 = vmatprep.subr.mxu0 0.0
      %3240 = vmatpush2.xpose.msra.mxu0 0.0
      %3241 = vmatprep.subr.mxu0 0.0
      %3242 = vmatpush2.xpose.msra.mxu0 0.0
      %3243 = vmatprep.subr.mxu0 0.0
      %3244 = vmatpush2.xpose.msra.mxu0 0.0
      %3245 = vmatprep.subr.mxu0 0.0
      %3246 = vmatpush2.xpose.msra.mxu0 0.0
      %3247 = vmatprep.subr.mxu0 0.0
      %3248 = vmatpush2.xpose.msra.mxu0 0.0
      %3249 = vmatprep.subr.mxu0 0.0
      %3250 = vmatpush2.xpose.msra.mxu0 0.0
      %3251 = vmatprep.subr.mxu0 0.0
      %3252 = vmatpush2.xpose.msra.mxu0 0.0
      %3253 = vmatprep.subr.mxu0 0.0
      %3254 = vmatpush2.xpose.msra.mxu0 0.0
      %3255 = vmatprep.subr.mxu0 0.0
      %3256 = vmatpush2.xpose.msra.mxu0 0.0
      %3257 = vmatprep.subr.mxu0 0.0
      %3258 = vmatpush2.xpose.msra.mxu0 0.0
      %3259 = vmatprep.subr.mxu0 0.0
      %3260 = vmatpush2.xpose.msra.mxu0 0.0
      %3261 = vmatprep.mubr.f32.mxu0 0.0
      %3262 = vmatmul.mubr.f32.gmra.mxu0 %v3133
      %v3263 = vpop.f32.mrf.mxu0
      %v3264 = vadd.f32 0.0, %v3263
      %v3265 = vpop.f32.mrf.mxu0
      %3266 = vmatprep.mubr.f32.mxu0 0.0
      %3267 = vmatmul.mubr.f32.gmra.mxu0 %v3135
      %v3268 = vpop.f32.mrf.mxu0
      %v3269 = vadd.f32 0.0, %v3268
      %v3270 = vpop.f32.mrf.mxu0
      %3271 = vmatprep.mubr.f32.mxu0 0.0
      %3272 = vmatmul.mubr.f32.gmra.mxu0 %v3137
      %v3273 = vpop.f32.mrf.mxu0
      %v3274 = vadd.f32 0.0, %v3273
      %v3275 = vpop.f32.mrf.mxu0
      %3276 = vmatprep.mubr.f32.mxu0 0.0
      %3277 = vmatmul.mubr.f32.gmra.mxu0 %v3139
      %v3278 = vpop.f32.mrf.mxu0
      %v3279 = vadd.f32 0.0, %v3278
      %v3280 = vpop.f32.mrf.mxu0
      %3281 = vmatprep.mubr.f32.mxu0 0.0
      %3282 = vmatmul.mubr.f32.gmra.mxu0 %v3141
      %v3283 = vpop.f32.mrf.mxu0
      %v3284 = vadd.f32 0.0, %v3283
      %v3285 = vpop.f32.mrf.mxu0
      %3286 = vmatprep.mubr.f32.mxu0 0.0
      %3287 = vmatmul.mubr.f32.gmra.mxu0 %v3143
      %v3288 = vpop.f32.mrf.mxu0
      %v3289 = vadd.f32 0.0, %v3288
      %v3290 = vpop.f32.mrf.mxu0
      %3291 = vmatprep.mubr.f32.mxu0 0.0
      %3292 = vmatmul.mubr.f32.gmra.mxu0 %v3145
      %v3293 = vpop.f32.mrf.mxu0
      %v3294 = vadd.f32 0.0, %v3293
      %v3295 = vpop.f32.mrf.mxu0
      %3296 = vmatprep.mubr.f32.mxu0 0.0
      %3297 = vmatmul.mubr.f32.gmra.mxu0 %v3147
      %v3298 = vpop.f32.mrf.mxu0
      %v3299 = vadd.f32 0.0, %v3298
      %v3300 = vpop.f32.mrf.mxu0
      %3301 = vmatprep.mubr.f32.mxu0 0.0
      %3302 = vmatmul.mubr.f32.gmra.mxu0 %v3149
      %v3303 = vpop.f32.mrf.mxu0
      %v3304 = vadd.f32 0.0, %v3303
      %v3305 = vpop.f32.mrf.mxu0
      %3306 = vmatprep.mubr.f32.mxu0 0.0
      %3307 = vmatmul.mubr.f32.gmra.mxu0 %v3151
      %v3308 = vpop.f32.mrf.mxu0
      %v3309 = vadd.f32 0.0, %v3308
      %v3310 = vpop.f32.mrf.mxu0
      %3311 = vmatprep.mubr.f32.mxu0 0.0
      %3312 = vmatmul.mubr.f32.gmra.mxu0 %v3153
      %v3313 = vpop.f32.mrf.mxu0
      %v3314 = vadd.f32 0.0, %v3313
      %v3315 = vpop.f32.mrf.mxu0
      %3316 = vmatprep.mubr.f32.mxu0 0.0
      %3317 = vmatmul.mubr.f32.gmra.mxu0 %v3155
      %v3318 = vpop.f32.mrf.mxu0
      %v3319 = vadd.f32 0.0, %v3318
      %v3320 = vpop.f32.mrf.mxu0
      %3321 = vmatprep.mubr.f32.mxu0 0.0
      %3322 = vmatmul.mubr.f32.gmra.mxu0 %v3157
      %v3323 = vpop.f32.mrf.mxu0
      %v3324 = vadd.f32 0.0, %v3323
      %v3325 = vpop.f32.mrf.mxu0
      %3326 = vmatprep.mubr.f32.mxu0 0.0
      %3327 = vmatmul.mubr.f32.gmra.mxu0 %v3159
      %v3328 = vpop.f32.mrf.mxu0
      %v3329 = vadd.f32 0.0, %v3328
      %v3330 = vpop.f32.mrf.mxu0
      %3331 = vmatprep.mubr.f32.mxu0 0.0
      %3332 = vmatmul.mubr.f32.gmra.mxu0 %v3161
      %v3333 = vpop.f32.mrf.mxu0
      %v3334 = vadd.f32 0.0, %v3333
      %v3335 = vpop.f32.mrf.mxu0
      %3336 = vmatprep.mubr.f32.mxu0 0.0
      %3337 = vmatmul.mubr.f32.gmra.mxu0 %v3163
      %v3338 = vpop.f32.mrf.mxu0
      %v3339 = vadd.f32 0.0, %v3338
      %v3340 = vpop.f32.mrf.mxu0
      %3341 = vdwg.mxu0
      %v3342 = vmul.f32 %v3264, 0.35355338
      %v3343 = vmul.f32 %v3269, 0.35355338
      %v3344 = vmul.f32 %v3274, 0.35355338
      %v3345 = vmul.f32 %v3279, 0.35355338
      %v3346 = vmul.f32 %v3284, 0.35355338
      %v3347 = vmul.f32 %v3289, 0.35355338
      %v3348 = vmul.f32 %v3294, 0.35355338
      %v3349 = vmul.f32 %v3299, 0.35355338
      %v3350 = vmul.f32 %v3304, 0.35355338
      %v3351 = vmul.f32 %v3309, 0.35355338
      %v3352 = vmul.f32 %v3314, 0.35355338
      %v3353 = vmul.f32 %v3319, 0.35355338
      %v3354 = vmul.f32 %v3324, 0.35355338
      %v3355 = vmul.f32 %v3329, 0.35355338
      %v3356 = vmul.f32 %v3334, 0.35355338
      %v3357 = vmul.f32 %v3339, 0.35355338
      %v3358 = vadd.f32 %v3342, %v543
      %v3359 = vadd.f32 %v3343, %v544
      %v3360 = vadd.f32 %v3344, %v545
      %v3361 = vadd.f32 %v3345, %v546
      %v3362 = vadd.f32 %v3346, %v547
      %v3363 = vadd.f32 %v3347, %v548
      %v3364 = vadd.f32 %v3348, %v549
      %v3365 = vadd.f32 %v3349, %v550
      %v3366 = vadd.f32 %v3350, %v551
      %v3367 = vadd.f32 %v3351, %v552
      %v3368 = vadd.f32 %v3352, %v553
      %v3369 = vadd.f32 %v3353, %v554
      %v3370 = vadd.f32 %v3354, %v555
      %v3371 = vadd.f32 %v3355, %v556
      %v3372 = vadd.f32 %v3356, %v557
      %v3373 = vadd.f32 %v3357, %v558
      %3374 = vmax.xlane.f32.xlu0 %v3358
      %v3375 = vpop.xlane.xlu0 %3374
      %3376 = vmax.xlane.f32.xlu0 %v3359
      %v3377 = vpop.xlane.xlu0 %3376
      %3378 = vmax.xlane.f32.xlu0 %v3360
      %v3379 = vpop.xlane.xlu0 %3378
      %3380 = vmax.xlane.f32.xlu0 %v3361
      %v3381 = vpop.xlane.xlu0 %3380
      %3382 = vmax.xlane.f32.xlu0 %v3362
      %v3383 = vpop.xlane.xlu0 %3382
      %3384 = vmax.xlane.f32.xlu0 %v3363
      %v3385 = vpop.xlane.xlu0 %3384
      %3386 = vmax.xlane.f32.xlu0 %v3364
      %v3387 = vpop.xlane.xlu0 %3386
      %3388 = vmax.xlane.f32.xlu0 %v3365
      %v3389 = vpop.xlane.xlu0 %3388
      %3390 = vmax.xlane.f32.xlu0 %v3366
      %v3391 = vpop.xlane.xlu0 %3390
      %3392 = vmax.xlane.f32.xlu0 %v3367
      %v3393 = vpop.xlane.xlu0 %3392
      %3394 = vmax.xlane.f32.xlu0 %v3368
      %v3395 = vpop.xlane.xlu0 %3394
      %3396 = vmax.xlane.f32.xlu0 %v3369
      %v3397 = vpop.xlane.xlu0 %3396
      %3398 = vmax.xlane.f32.xlu0 %v3370
      %v3399 = vpop.xlane.xlu0 %3398
      %3400 = vmax.xlane.f32.xlu0 %v3371
      %v3401 = vpop.xlane.xlu0 %3400
      %3402 = vmax.xlane.f32.xlu0 %v3372
      %v3403 = vpop.xlane.xlu0 %3402
      %3404 = vmax.xlane.f32.xlu0 %v3373
      %v3405 = vpop.xlane.xlu0 %3404
      %v3406 = vsub.f32 %v3358, %v3375
      %v3407 = vsub.f32 %v3359, %v3377
      %v3408 = vsub.f32 %v3360, %v3379
      %v3409 = vsub.f32 %v3361, %v3381
      %v3410 = vsub.f32 %v3362, %v3383
      %v3411 = vsub.f32 %v3363, %v3385
      %v3412 = vsub.f32 %v3364, %v3387
      %v3413 = vsub.f32 %v3365, %v3389
      %v3414 = vsub.f32 %v3366, %v3391
      %v3415 = vsub.f32 %v3367, %v3393
      %v3416 = vsub.f32 %v3368, %v3395
      %v3417 = vsub.f32 %v3369, %v3397
      %v3418 = vsub.f32 %v3370, %v3399
      %v3419 = vsub.f32 %v3371, %v3401
      %v3420 = vsub.f32 %v3372, %v3403
      %v3421 = vsub.f32 %v3373, %v3405
      %v3422 = vmul.f32 %v3406, 1.442695
      %v3423 = vpow.pop %v3422
      %v3424 = vmul.f32 %v3407, 1.442695
      %v3425 = vpow.pop %v3424
      %v3426 = vmul.f32 %v3408, 1.442695
      %v3427 = vpow.pop %v3426
      %v3428 = vmul.f32 %v3409, 1.442695
      %v3429 = vpow.pop %v3428
      %v3430 = vmul.f32 %v3410, 1.442695
      %v3431 = vpow.pop %v3430
      %v3432 = vmul.f32 %v3411, 1.442695
      %v3433 = vpow.pop %v3432
      %v3434 = vmul.f32 %v3412, 1.442695
      %v3435 = vpow.pop %v3434
      %v3436 = vmul.f32 %v3413, 1.442695
      %v3437 = vpow.pop %v3436
      %v3438 = vmul.f32 %v3414, 1.442695
      %v3439 = vpow.pop %v3438
      %v3440 = vmul.f32 %v3415, 1.442695
      %v3441 = vpow.pop %v3440
      %v3442 = vmul.f32 %v3416, 1.442695
      %v3443 = vpow.pop %v3442
      %v3444 = vmul.f32 %v3417, 1.442695
      %v3445 = vpow.pop %v3444
      %v3446 = vmul.f32 %v3418, 1.442695
      %v3447 = vpow.pop %v3446
      %v3448 = vmul.f32 %v3419, 1.442695
      %v3449 = vpow.pop %v3448
      %v3450 = vmul.f32 %v3420, 1.442695
      %v3451 = vpow.pop %v3450
      %v3452 = vmul.f32 %v3421, 1.442695
      %v3453 = vpow.pop %v3452
      %3454 = vadd.xlane.f32.xlu0 %v3423
      %v3455 = vpop.xlane.xlu0 %3454
      %3456 = vadd.xlane.f32.xlu0 %v3425
      %v3457 = vpop.xlane.xlu0 %3456
      %3458 = vadd.xlane.f32.xlu0 %v3427
      %v3459 = vpop.xlane.xlu0 %3458
      %3460 = vadd.xlane.f32.xlu0 %v3429
      %v3461 = vpop.xlane.xlu0 %3460
      %3462 = vadd.xlane.f32.xlu0 %v3431
      %v3463 = vpop.xlane.xlu0 %3462
      %3464 = vadd.xlane.f32.xlu0 %v3433
      %v3465 = vpop.xlane.xlu0 %3464
      %3466 = vadd.xlane.f32.xlu0 %v3435
      %v3467 = vpop.xlane.xlu0 %3466
      %3468 = vadd.xlane.f32.xlu0 %v3437
      %v3469 = vpop.xlane.xlu0 %3468
      %3470 = vadd.xlane.f32.xlu0 %v3439
      %v3471 = vpop.xlane.xlu0 %3470
      %3472 = vadd.xlane.f32.xlu0 %v3441
      %v3473 = vpop.xlane.xlu0 %3472
      %3474 = vadd.xlane.f32.xlu0 %v3443
      %v3475 = vpop.xlane.xlu0 %3474
      %3476 = vadd.xlane.f32.xlu0 %v3445
      %v3477 = vpop.xlane.xlu0 %3476
      %3478 = vadd.xlane.f32.xlu0 %v3447
      %v3479 = vpop.xlane.xlu0 %3478
      %3480 = vadd.xlane.f32.xlu0 %v3449
      %v3481 = vpop.xlane.xlu0 %3480
      %3482 = vadd.xlane.f32.xlu0 %v3451
      %v3483 = vpop.xlane.xlu0 %3482
      %3484 = vadd.xlane.f32.xlu0 %v3453
      %v3485 = vpop.xlane.xlu0 %3484
      %v3486 = vrcp.pop %v3455
      %v3487 = vmul.f32 %v3423, %v3486
      %v3488 = vrcp.pop %v3457
      %v3489 = vmul.f32 %v3425, %v3488
      %v3490 = vrcp.pop %v3459
      %v3491 = vmul.f32 %v3427, %v3490
      %v3492 = vrcp.pop %v3461
      %v3493 = vmul.f32 %v3429, %v3492
      %v3494 = vrcp.pop %v3463
      %v3495 = vmul.f32 %v3431, %v3494
      %v3496 = vrcp.pop %v3465
      %v3497 = vmul.f32 %v3433, %v3496
      %v3498 = vrcp.pop %v3467
      %v3499 = vmul.f32 %v3435, %v3498
      %v3500 = vrcp.pop %v3469
      %v3501 = vmul.f32 %v3437, %v3500
      %v3502 = vrcp.pop %v3471
      %v3503 = vmul.f32 %v3439, %v3502
      %v3504 = vrcp.pop %v3473
      %v3505 = vmul.f32 %v3441, %v3504
      %v3506 = vrcp.pop %v3475
      %v3507 = vmul.f32 %v3443, %v3506
      %v3508 = vrcp.pop %v3477
      %v3509 = vmul.f32 %v3445, %v3508
      %v3510 = vrcp.pop %v3479
      %v3511 = vmul.f32 %v3447, %v3510
      %v3512 = vrcp.pop %v3481
      %v3513 = vmul.f32 %v3449, %v3512
      %v3514 = vrcp.pop %v3483
      %v3515 = vmul.f32 %v3451, %v3514
      %v3516 = vrcp.pop %v3485
      %v3517 = vmul.f32 %v3453, %v3516
      %3518 = vrot.lane.b32.xlu0 %v527, 40
      %v3519 = vpop.permute.xlu0 %3518
      %3520 = vrot.lane.b32.xlu0 %v528, 40
      %v3521 = vpop.permute.xlu0 %3520
      %3522 = vrot.lane.b32.xlu0 %v529, 40
      %v3523 = vpop.permute.xlu0 %3522
      %3524 = vrot.lane.b32.xlu0 %v530, 40
      %v3525 = vpop.permute.xlu0 %3524
      %3526 = vrot.lane.b32.xlu0 %v531, 40
      %v3527 = vpop.permute.xlu0 %3526
      %3528 = vrot.lane.b32.xlu0 %v532, 40
      %v3529 = vpop.permute.xlu0 %3528
      %3530 = vrot.lane.b32.xlu0 %v533, 40
      %v3531 = vpop.permute.xlu0 %3530
      %3532 = vrot.lane.b32.xlu0 %v534, 40
      %v3533 = vpop.permute.xlu0 %3532
      %3534 = vrot.lane.b32.xlu0 %v535, 40
      %v3535 = vpop.permute.xlu0 %3534
      %3536 = vrot.lane.b32.xlu0 %v536, 40
      %v3537 = vpop.permute.xlu0 %3536
      %3538 = vrot.lane.b32.xlu0 %v537, 40
      %v3539 = vpop.permute.xlu0 %3538
      %3540 = vrot.lane.b32.xlu0 %v538, 40
      %v3541 = vpop.permute.xlu0 %3540
      %3542 = vrot.lane.b32.xlu0 %v539, 40
      %v3543 = vpop.permute.xlu0 %3542
      %3544 = vrot.lane.b32.xlu0 %v540, 40
      %v3545 = vpop.permute.xlu0 %3544
      %3546 = vrot.lane.b32.xlu0 %v541, 40
      %v3547 = vpop.permute.xlu0 %3546
      %3548 = vrot.lane.b32.xlu0 %v542, 40
      %v3549 = vpop.permute.xlu0 %3548
      %3566 = vmatprep.subr.mxu0 0.0
      %3567 = vmatpush1.msra.mxu0 %v3549
      %3568 = vmatprep.subr.mxu0 0.0
      %3569 = vmatpush1.msra.mxu0 %v3547
      %3570 = vmatprep.subr.mxu0 0.0
      %3571 = vmatpush1.msra.mxu0 %v3545
      %3572 = vmatprep.subr.mxu0 0.0
      %3573 = vmatpush1.msra.mxu0 %v3543
      %3574 = vmatprep.subr.mxu0 0.0
      %3575 = vmatpush1.msra.mxu0 %v3541
      %3576 = vmatprep.subr.mxu0 0.0
      %3577 = vmatpush1.msra.mxu0 %v3539
      %3578 = vmatprep.subr.mxu0 0.0
      %3579 = vmatpush1.msra.mxu0 %v3537
      %3580 = vmatprep.subr.mxu0 0.0
      %3581 = vmatpush1.msra.mxu0 %v3535
      %3582 = vmatprep.subr.mxu0 0.0
      %3583 = vmatpush1.msra.mxu0 %v3533
      %3584 = vmatprep.subr.mxu0 0.0
      %3585 = vmatpush1.msra.mxu0 %v3531
      %3586 = vmatprep.subr.mxu0 0.0
      %3587 = vmatpush1.msra.mxu0 %v3529
      %3588 = vmatprep.subr.mxu0 0.0
      %3589 = vmatpush1.msra.mxu0 %v3527
      %3590 = vmatprep.subr.mxu0 0.0
      %3591 = vmatpush1.msra.mxu0 %v3525
      %3592 = vmatprep.subr.mxu0 0.0
      %3593 = vmatpush1.msra.mxu0 %v3523
      %3594 = vmatprep.subr.mxu0 0.0
      %3595 = vmatpush1.msra.mxu0 %v3521
      %3596 = vmatprep.subr.mxu0 0.0
      %3597 = vmatpush1.msra.mxu0 %v3519
      %3598 = vmatprep.subr.mxu0 0.0
      %3599 = vmatpush2.msra.mxu0 0.0
      %3600 = vmatprep.subr.mxu0 0.0
      %3601 = vmatpush2.msra.mxu0 0.0
      %3602 = vmatprep.subr.mxu0 0.0
      %3603 = vmatpush2.msra.mxu0 0.0
      %3604 = vmatprep.subr.mxu0 0.0
      %3605 = vmatpush2.msra.mxu0 0.0
      %3606 = vmatprep.subr.mxu0 0.0
      %3607 = vmatpush2.msra.mxu0 0.0
      %3608 = vmatprep.subr.mxu0 0.0
      %3609 = vmatpush2.msra.mxu0 0.0
      %3610 = vmatprep.subr.mxu0 0.0
      %3611 = vmatpush2.msra.mxu0 0.0
      %3612 = vmatprep.subr.mxu0 0.0
      %3613 = vmatpush2.msra.mxu0 0.0
      %3614 = vmatprep.subr.mxu0 0.0
      %3615 = vmatpush2.msra.mxu0 0.0
      %3616 = vmatprep.subr.mxu0 0.0
      %3617 = vmatpush2.msra.mxu0 0.0
      %3618 = vmatprep.subr.mxu0 0.0
      %3619 = vmatpush2.msra.mxu0 0.0
      %3620 = vmatprep.subr.mxu0 0.0
      %3621 = vmatpush2.msra.mxu0 0.0
      %3622 = vmatprep.subr.mxu0 0.0
      %3623 = vmatpush2.msra.mxu0 0.0
      %3624 = vmatprep.subr.mxu0 0.0
      %3625 = vmatpush2.msra.mxu0 0.0
      %3626 = vmatprep.subr.mxu0 0.0
      %3627 = vmatpush2.msra.mxu0 0.0
      %3628 = vmatprep.subr.mxu0 0.0
      %3629 = vmatpush2.msra.mxu0 0.0
      %3630 = vmatprep.mubr.f32.mxu0 0.0
      %3631 = vmatmul.mubr.f32.gmra.mxu0 %v3487
      %v3632 = vpop.f32.mrf.mxu0
      %v3633 = vadd.f32 0.0, %v3632
      %v3634 = vpop.f32.mrf.mxu0
      %3635 = vmatprep.mubr.f32.mxu0 0.0
      %3636 = vmatmul.mubr.f32.gmra.mxu0 %v3489
      %v3637 = vpop.f32.mrf.mxu0
      %v3638 = vadd.f32 0.0, %v3637
      %v3639 = vpop.f32.mrf.mxu0
      %3640 = vmatprep.mubr.f32.mxu0 0.0
      %3641 = vmatmul.mubr.f32.gmra.mxu0 %v3491
      %v3642 = vpop.f32.mrf.mxu0
      %v3643 = vadd.f32 0.0, %v3642
      %v3644 = vpop.f32.mrf.mxu0
      %3645 = vmatprep.mubr.f32.mxu0 0.0
      %3646 = vmatmul.mubr.f32.gmra.mxu0 %v3493
      %v3647 = vpop.f32.mrf.mxu0
      %v3648 = vadd.f32 0.0, %v3647
      %v3649 = vpop.f32.mrf.mxu0
      %3650 = vmatprep.mubr.f32.mxu0 0.0
      %3651 = vmatmul.mubr.f32.gmra.mxu0 %v3495
      %v3652 = vpop.f32.mrf.mxu0
      %v3653 = vadd.f32 0.0, %v3652
      %v3654 = vpop.f32.mrf.mxu0
      %3655 = vmatprep.mubr.f32.mxu0 0.0
      %3656 = vmatmul.mubr.f32.gmra.mxu0 %v3497
      %v3657 = vpop.f32.mrf.mxu0
      %v3658 = vadd.f32 0.0, %v3657
      %v3659 = vpop.f32.mrf.mxu0
      %3660 = vmatprep.mubr.f32.mxu0 0.0
      %3661 = vmatmul.mubr.f32.gmra.mxu0 %v3499
      %v3662 = vpop.f32.mrf.mxu0
      %v3663 = vadd.f32 0.0, %v3662
      %v3664 = vpop.f32.mrf.mxu0
      %3665 = vmatprep.mubr.f32.mxu0 0.0
      %3666 = vmatmul.mubr.f32.gmra.mxu0 %v3501
      %v3667 = vpop.f32.mrf.mxu0
      %v3668 = vadd.f32 0.0, %v3667
      %v3669 = vpop.f32.mrf.mxu0
      %3670 = vmatprep.mubr.f32.mxu0 0.0
      %3671 = vmatmul.mubr.f32.gmra.mxu0 %v3503
      %v3672 = vpop.f32.mrf.mxu0
      %v3673 = vadd.f32 0.0, %v3672
      %v3674 = vpop.f32.mrf.mxu0
      %3675 = vmatprep.mubr.f32.mxu0 0.0
      %3676 = vmatmul.mubr.f32.gmra.mxu0 %v3505
      %v3677 = vpop.f32.mrf.mxu0
      %v3678 = vadd.f32 0.0, %v3677
      %v3679 = vpop.f32.mrf.mxu0
      %3680 = vmatprep.mubr.f32.mxu0 0.0
      %3681 = vmatmul.mubr.f32.gmra.mxu0 %v3507
      %v3682 = vpop.f32.mrf.mxu0
      %v3683 = vadd.f32 0.0, %v3682
      %v3684 = vpop.f32.mrf.mxu0
      %3685 = vmatprep.mubr.f32.mxu0 0.0
      %3686 = vmatmul.mubr.f32.gmra.mxu0 %v3509
      %v3687 = vpop.f32.mrf.mxu0
      %v3688 = vadd.f32 0.0, %v3687
      %v3689 = vpop.f32.mrf.mxu0
      %3690 = vmatprep.mubr.f32.mxu0 0.0
      %3691 = vmatmul.mubr.f32.gmra.mxu0 %v3511
      %v3692 = vpop.f32.mrf.mxu0
      %v3693 = vadd.f32 0.0, %v3692
      %v3694 = vpop.f32.mrf.mxu0
      %3695 = vmatprep.mubr.f32.mxu0 0.0
      %3696 = vmatmul.mubr.f32.gmra.mxu0 %v3513
      %v3697 = vpop.f32.mrf.mxu0
      %v3698 = vadd.f32 0.0, %v3697
      %v3699 = vpop.f32.mrf.mxu0
      %3700 = vmatprep.mubr.f32.mxu0 0.0
      %3701 = vmatmul.mubr.f32.gmra.mxu0 %v3515
      %v3702 = vpop.f32.mrf.mxu0
      %v3703 = vadd.f32 0.0, %v3702
      %v3704 = vpop.f32.mrf.mxu0
      %3705 = vmatprep.mubr.f32.mxu0 0.0
      %3706 = vmatmul.mubr.f32.gmra.mxu0 %v3517
      %v3707 = vpop.f32.mrf.mxu0
      %v3708 = vadd.f32 0.0, %v3707
      %v3709 = vpop.f32.mrf.mxu0
      %3710 = vdwg.mxu0
      %v3712 = vsel %vm611, %v3633, 0
      %v3715 = vsel %vm611, %v3638, 0
      %v3718 = vsel %vm611, %v3643, 0
      %v3721 = vsel %vm611, %v3648, 0
      %v3724 = vsel %vm611, %v3653, 0
      %v3727 = vsel %vm611, %v3658, 0
      %v3730 = vsel %vm611, %v3663, 0
      %v3733 = vsel %vm611, %v3668, 0
      %v3736 = vsel %vm611, %v3673, 0
      %v3739 = vsel %vm611, %v3678, 0
      %v3742 = vsel %vm611, %v3683, 0
      %v3745 = vsel %vm611, %v3688, 0
      %v3748 = vsel %vm611, %v3693, 0
      %v3751 = vsel %vm611, %v3698, 0
      %v3754 = vsel %vm611, %v3703, 0
      %v3757 = vsel %vm611, %v3708, 0
      %3759 = vmatprep.subr.mxu0 0.0
      %3760 = vmatpush1.msra.mxu0 0.0
      %3761 = vmatprep.subr.mxu0 0.0
      %3762 = vmatpush1.msra.mxu0 0.0
      %3763 = vmatprep.subr.mxu0 0.0
      %3764 = vmatpush1.msra.mxu0 0.0
      %3765 = vmatprep.subr.mxu0 0.0
      %3766 = vmatpush1.msra.mxu0 0.0
      %3767 = vmatprep.subr.mxu0 0.0
      %3768 = vmatpush1.msra.mxu0 0.0
      %3769 = vmatprep.subr.mxu0 0.0
      %3770 = vmatpush1.msra.mxu0 0.0
      %3771 = vmatprep.subr.mxu0 0.0
      %3772 = vmatpush1.msra.mxu0 0.0
      %3773 = vmatprep.subr.mxu0 0.0
      %3774 = vmatpush1.msra.mxu0 0.0
      %3775 = vmatprep.subr.mxu0 0.0
      %3776 = vmatpush1.msra.mxu0 0.0
      %3777 = vmatprep.subr.mxu0 0.0
      %3778 = vmatpush1.msra.mxu0 0.0
      %3779 = vmatprep.subr.mxu0 0.0
      %3780 = vmatpush1.msra.mxu0 0.0
      %3781 = vmatprep.subr.mxu0 0.0
      %3782 = vmatpush1.msra.mxu0 0.0
      %3783 = vmatprep.subr.mxu0 0.0
      %3784 = vmatpush1.msra.mxu0 0.0
      %3785 = vmatprep.subr.mxu0 0.0
      %3786 = vmatpush1.msra.mxu0 0.0
      %3787 = vmatprep.subr.mxu0 0.0
      %3788 = vmatpush1.msra.mxu0 0.0
      %3789 = vmatprep.subr.mxu0 0.0
      %3790 = vmatpush1.msra.mxu0 %v562
      %3791 = vmatprep.subr.mxu0 0.0
      %3792 = vmatpush2.msra.mxu0 0.0
      %3793 = vmatprep.subr.mxu0 0.0
      %3794 = vmatpush2.msra.mxu0 0.0
      %3795 = vmatprep.subr.mxu0 0.0
      %3796 = vmatpush2.msra.mxu0 0.0
      %3797 = vmatprep.subr.mxu0 0.0
      %3798 = vmatpush2.msra.mxu0 0.0
      %3799 = vmatprep.subr.mxu0 0.0
      %3800 = vmatpush2.msra.mxu0 0.0
      %3801 = vmatprep.subr.mxu0 0.0
      %3802 = vmatpush2.msra.mxu0 0.0
      %3803 = vmatprep.subr.mxu0 0.0
      %3804 = vmatpush2.msra.mxu0 0.0
      %3805 = vmatprep.subr.mxu0 0.0
      %3806 = vmatpush2.msra.mxu0 0.0
      %3807 = vmatprep.subr.mxu0 0.0
      %3808 = vmatpush2.msra.mxu0 0.0
      %3809 = vmatprep.subr.mxu0 0.0
      %3810 = vmatpush2.msra.mxu0 0.0
      %3811 = vmatprep.subr.mxu0 0.0
      %3812 = vmatpush2.msra.mxu0 0.0
      %3813 = vmatprep.subr.mxu0 0.0
      %3814 = vmatpush2.msra.mxu0 0.0
      %3815 = vmatprep.subr.mxu0 0.0
      %3816 = vmatpush2.msra.mxu0 0.0
      %3817 = vmatprep.subr.mxu0 0.0
      %3818 = vmatpush2.msra.mxu0 0.0
      %3819 = vmatprep.subr.mxu0 0.0
      %3820 = vmatpush2.msra.mxu0 0.0
      %3821 = vmatprep.subr.mxu0 0.0
      %3822 = vmatpush2.msra.mxu0 0.0
      %3823 = vmatprep.mubr.f32.mxu0 0.0
      %3824 = vmatmul.mubr.f32.gmra.mxu0 %v3712
      %v3825 = vpop.f32.mrf.mxu0
      %v3826 = vadd.f32 0.0, %v3825
      %v3827 = vpop.f32.mrf.mxu0
      %3828 = vmatprep.mubr.f32.mxu0 0.0
      %3829 = vmatmul.mubr.f32.gmra.mxu0 %v3715
      %v3830 = vpop.f32.mrf.mxu0
      %v3831 = vadd.f32 0.0, %v3830
      %v3832 = vpop.f32.mrf.mxu0
      %3833 = vmatprep.mubr.f32.mxu0 0.0
      %3834 = vmatmul.mubr.f32.gmra.mxu0 %v3718
      %v3835 = vpop.f32.mrf.mxu0
      %v3836 = vadd.f32 0.0, %v3835
      %v3837 = vpop.f32.mrf.mxu0
      %3838 = vmatprep.mubr.f32.mxu0 0.0
      %3839 = vmatmul.mubr.f32.gmra.mxu0 %v3721
      %v3840 = vpop.f32.mrf.mxu0
      %v3841 = vadd.f32 0.0, %v3840
      %v3842 = vpop.f32.mrf.mxu0
      %3843 = vmatprep.mubr.f32.mxu0 0.0
      %3844 = vmatmul.mubr.f32.gmra.mxu0 %v3724
      %v3845 = vpop.f32.mrf.mxu0
      %v3846 = vadd.f32 0.0, %v3845
      %v3847 = vpop.f32.mrf.mxu0
      %3848 = vmatprep.mubr.f32.mxu0 0.0
      %3849 = vmatmul.mubr.f32.gmra.mxu0 %v3727
      %v3850 = vpop.f32.mrf.mxu0
      %v3851 = vadd.f32 0.0, %v3850
      %v3852 = vpop.f32.mrf.mxu0
      %3853 = vmatprep.mubr.f32.mxu0 0.0
      %3854 = vmatmul.mubr.f32.gmra.mxu0 %v3730
      %v3855 = vpop.f32.mrf.mxu0
      %v3856 = vadd.f32 0.0, %v3855
      %v3857 = vpop.f32.mrf.mxu0
      %3858 = vmatprep.mubr.f32.mxu0 0.0
      %3859 = vmatmul.mubr.f32.gmra.mxu0 %v3733
      %v3860 = vpop.f32.mrf.mxu0
      %v3861 = vadd.f32 0.0, %v3860
      %v3862 = vpop.f32.mrf.mxu0
      %3863 = vmatprep.mubr.f32.mxu0 0.0
      %3864 = vmatmul.mubr.f32.gmra.mxu0 %v3736
      %v3865 = vpop.f32.mrf.mxu0
      %v3866 = vadd.f32 0.0, %v3865
      %v3867 = vpop.f32.mrf.mxu0
      %3868 = vmatprep.mubr.f32.mxu0 0.0
      %3869 = vmatmul.mubr.f32.gmra.mxu0 %v3739
      %v3870 = vpop.f32.mrf.mxu0
      %v3871 = vadd.f32 0.0, %v3870
      %v3872 = vpop.f32.mrf.mxu0
      %3873 = vmatprep.mubr.f32.mxu0 0.0
      %3874 = vmatmul.mubr.f32.gmra.mxu0 %v3742
      %v3875 = vpop.f32.mrf.mxu0
      %v3876 = vadd.f32 0.0, %v3875
      %v3877 = vpop.f32.mrf.mxu0
      %3878 = vmatprep.mubr.f32.mxu0 0.0
      %3879 = vmatmul.mubr.f32.gmra.mxu0 %v3745
      %v3880 = vpop.f32.mrf.mxu0
      %v3881 = vadd.f32 0.0, %v3880
      %v3882 = vpop.f32.mrf.mxu0
      %3883 = vmatprep.mubr.f32.mxu0 0.0
      %3884 = vmatmul.mubr.f32.gmra.mxu0 %v3748
      %v3885 = vpop.f32.mrf.mxu0
      %v3886 = vadd.f32 0.0, %v3885
      %v3887 = vpop.f32.mrf.mxu0
      %3888 = vmatprep.mubr.f32.mxu0 0.0
      %3889 = vmatmul.mubr.f32.gmra.mxu0 %v3751
      %v3890 = vpop.f32.mrf.mxu0
      %v3891 = vadd.f32 0.0, %v3890
      %v3892 = vpop.f32.mrf.mxu0
      %3893 = vmatprep.mubr.f32.mxu0 0.0
      %3894 = vmatmul.mubr.f32.gmra.mxu0 %v3754
      %v3895 = vpop.f32.mrf.mxu0
      %v3896 = vadd.f32 0.0, %v3895
      %v3897 = vpop.f32.mrf.mxu0
      %3898 = vmatprep.mubr.f32.mxu0 0.0
      %3899 = vmatmul.mubr.f32.gmra.mxu0 %v3757
      %v3900 = vpop.f32.mrf.mxu0
      %v3901 = vadd.f32 0.0, %v3900
      %v3902 = vpop.f32.mrf.mxu0
      %3903 = vdwg.mxu0
      %v3904 = vadd.f32 %v3053, %v3826
      %v3905 = vadd.f32 %v3054, %v3831
      %v3906 = vadd.f32 %v3055, %v3836
      %v3907 = vadd.f32 %v3056, %v3841
      %v3908 = vadd.f32 %v3057, %v3846
      %v3909 = vadd.f32 %v3058, %v3851
      %v3910 = vadd.f32 %v3059, %v3856
      %v3911 = vadd.f32 %v3060, %v3861
      %v3912 = vadd.f32 %v3061, %v3866
      %v3913 = vadd.f32 %v3062, %v3871
      %v3914 = vadd.f32 %v3063, %v3876
      %v3915 = vadd.f32 %v3064, %v3881
      %v3916 = vadd.f32 %v3065, %v3886
      %v3917 = vadd.f32 %v3066, %v3891
      %v3918 = vadd.f32 %v3067, %v3896
      %v3919 = vadd.f32 %v3068, %v3901
      %v3920 = vld [vmem:[%s5] sm:$0x1]
      %v3922 = vlaneseq
      %v3923 = vshrl.u32 %v3922, 7
      %v3924 = vsub.s32 0, %v3923
      %v3925 = vrot.slane %v3920, %v3924
      %v3927 = vadd.f32 %v3904, %v3925
      %v3928 = vadd.f32 %v3905, %v3925
      %v3929 = vadd.f32 %v3906, %v3925
      %v3930 = vadd.f32 %v3907, %v3925
      %v3931 = vadd.f32 %v3908, %v3925
      %v3932 = vadd.f32 %v3909, %v3925
      %v3933 = vadd.f32 %v3910, %v3925
      %v3934 = vadd.f32 %v3911, %v3925
      %v3935 = vadd.f32 %v3912, %v3925
      %v3936 = vadd.f32 %v3913, %v3925
      %v3937 = vadd.f32 %v3914, %v3925
      %v3938 = vadd.f32 %v3915, %v3925
      %v3939 = vadd.f32 %v3916, %v3925
      %v3940 = vadd.f32 %v3917, %v3925
      %v3941 = vadd.f32 %v3918, %v3925
      %v3942 = vadd.f32 %v3919, %v3925
      %v3943 = vmax.f32 %v3927, 0.0
      %v3944 = vmax.f32 %v3928, 0.0
      %v3945 = vmax.f32 %v3929, 0.0
      %v3946 = vmax.f32 %v3930, 0.0
      %v3947 = vmax.f32 %v3931, 0.0
      %v3948 = vmax.f32 %v3932, 0.0
      %v3949 = vmax.f32 %v3933, 0.0
      %v3950 = vmax.f32 %v3934, 0.0
      %v3951 = vmax.f32 %v3935, 0.0
      %v3952 = vmax.f32 %v3936, 0.0
      %v3953 = vmax.f32 %v3937, 0.0
      %v3954 = vmax.f32 %v3938, 0.0
      %v3955 = vmax.f32 %v3939, 0.0
      %v3956 = vmax.f32 %v3940, 0.0
      %v3957 = vmax.f32 %v3941, 0.0
      %v3958 = vmax.f32 %v3942, 0.0
      %v3959 = vld [vmem:[%s6] sm:$0xff]
      %v3960 = vld [vmem:[%s6 + $0x8] sm:$0xff]
      %v3961 = vld [vmem:[%s6 + $0x10] sm:$0xff]
      %v3962 = vld [vmem:[%s6 + $0x18] sm:$0xff]
      %v3963 = vld [vmem:[%s7] sm:$0x1]
      %v3965 = vlaneseq
      %v3966 = vshrl.u32 %v3965, 7
      %v3967 = vsub.s32 0, %v3966
      %v3968 = vrot.slane %v3963, %v3967
      %v3971 = vsel %vm333, %v3943, 0
      %v3974 = vsel %vm333, %v3944, 0
      %v3977 = vsel %vm333, %v3945, 0
      %v3980 = vsel %vm333, %v3946, 0
      %v3983 = vsel %vm333, %v3947, 0
      %v3986 = vsel %vm333, %v3948, 0
      %v3989 = vsel %vm333, %v3949, 0
      %v3992 = vsel %vm333, %v3950, 0
      %v3995 = vsel %vm333, %v3951, 0
      %v3998 = vsel %vm333, %v3952, 0
      %v4001 = vsel %vm333, %v3953, 0
      %v4004 = vsel %vm333, %v3954, 0
      %v4007 = vsel %vm333, %v3955, 0
      %v4010 = vsel %vm333, %v3956, 0
      %v4013 = vsel %vm333, %v3957, 0
      %v4016 = vsel %vm333, %v3958, 0
      %4018 = vmatprep.subr.mxu0 0.0
      %4019 = vmatpush1.msra.mxu0 0.0
      %4020 = vmatprep.subr.mxu0 0.0
      %4021 = vmatpush1.msra.mxu0 0.0
      %4022 = vmatprep.subr.mxu0 0.0
      %4023 = vmatpush1.msra.mxu0 0.0
      %4024 = vmatprep.subr.mxu0 0.0
      %4025 = vmatpush1.msra.mxu0 0.0
      %4026 = vmatprep.subr.mxu0 0.0
      %4027 = vmatpush1.msra.mxu0 0.0
      %4028 = vmatprep.subr.mxu0 0.0
      %4029 = vmatpush1.msra.mxu0 0.0
      %4030 = vmatprep.subr.mxu0 0.0
      %4031 = vmatpush1.msra.mxu0 0.0
      %4032 = vmatprep.subr.mxu0 0.0
      %4033 = vmatpush1.msra.mxu0 0.0
      %4034 = vmatprep.subr.mxu0 0.0
      %4035 = vmatpush1.msra.mxu0 0.0
      %4036 = vmatprep.subr.mxu0 0.0
      %4037 = vmatpush1.msra.mxu0 0.0
      %4038 = vmatprep.subr.mxu0 0.0
      %4039 = vmatpush1.msra.mxu0 0.0
      %4040 = vmatprep.subr.mxu0 0.0
      %4041 = vmatpush1.msra.mxu0 0.0
      %4042 = vmatprep.subr.mxu0 0.0
      %4043 = vmatpush1.msra.mxu0 %v3962
      %4044 = vmatprep.subr.mxu0 0.0
      %4045 = vmatpush1.msra.mxu0 %v3961
      %4046 = vmatprep.subr.mxu0 0.0
      %4047 = vmatpush1.msra.mxu0 %v3960
      %4048 = vmatprep.subr.mxu0 0.0
      %4049 = vmatpush1.msra.mxu0 %v3959
      %4050 = vmatprep.subr.mxu0 0.0
      %4051 = vmatpush2.msra.mxu0 0.0
      %4052 = vmatprep.subr.mxu0 0.0
      %4053 = vmatpush2.msra.mxu0 0.0
      %4054 = vmatprep.subr.mxu0 0.0
      %4055 = vmatpush2.msra.mxu0 0.0
      %4056 = vmatprep.subr.mxu0 0.0
      %4057 = vmatpush2.msra.mxu0 0.0
      %4058 = vmatprep.subr.mxu0 0.0
      %4059 = vmatpush2.msra.mxu0 0.0
      %4060 = vmatprep.subr.mxu0 0.0
      %4061 = vmatpush2.msra.mxu0 0.0
      %4062 = vmatprep.subr.mxu0 0.0
      %4063 = vmatpush2.msra.mxu0 0.0
      %4064 = vmatprep.subr.mxu0 0.0
      %4065 = vmatpush2.msra.mxu0 0.0
      %4066 = vmatprep.subr.mxu0 0.0
      %4067 = vmatpush2.msra.mxu0 0.0
      %4068 = vmatprep.subr.mxu0 0.0
      %4069 = vmatpush2.msra.mxu0 0.0
      %4070 = vmatprep.subr.mxu0 0.0
      %4071 = vmatpush2.msra.mxu0 0.0
      %4072 = vmatprep.subr.mxu0 0.0
      %4073 = vmatpush2.msra.mxu0 0.0
      %4074 = vmatprep.subr.mxu0 0.0
      %4075 = vmatpush2.msra.mxu0 0.0
      %4076 = vmatprep.subr.mxu0 0.0
      %4077 = vmatpush2.msra.mxu0 0.0
      %4078 = vmatprep.subr.mxu0 0.0
      %4079 = vmatpush2.msra.mxu0 0.0
      %4080 = vmatprep.subr.mxu0 0.0
      %4081 = vmatpush2.msra.mxu0 0.0
      %4082 = vmatprep.mubr.f32.mxu0 0.0
      %4083 = vmatmul.mubr.f32.gmra.mxu0 %v3971
      %v4084 = vpop.f32.mrf.mxu0
      %v4085 = vadd.f32 %v3968, %v4084
      %v4086 = vpop.f32.mrf.mxu0
      %4087 = vmatprep.mubr.f32.mxu0 0.0
      %4088 = vmatmul.mubr.f32.gmra.mxu0 %v3974
      %v4089 = vpop.f32.mrf.mxu0
      %v4090 = vadd.f32 %v3968, %v4089
      %v4091 = vpop.f32.mrf.mxu0
      %4092 = vmatprep.mubr.f32.mxu0 0.0
      %4093 = vmatmul.mubr.f32.gmra.mxu0 %v3977
      %v4094 = vpop.f32.mrf.mxu0
      %v4095 = vadd.f32 %v3968, %v4094
      %v4096 = vpop.f32.mrf.mxu0
      %4097 = vmatprep.mubr.f32.mxu0 0.0
      %4098 = vmatmul.mubr.f32.gmra.mxu0 %v3980
      %v4099 = vpop.f32.mrf.mxu0
      %v4100 = vadd.f32 %v3968, %v4099
      %v4101 = vpop.f32.mrf.mxu0
      %4102 = vmatprep.mubr.f32.mxu0 0.0
      %4103 = vmatmul.mubr.f32.gmra.mxu0 %v3983
      %v4104 = vpop.f32.mrf.mxu0
      %v4105 = vadd.f32 %v3968, %v4104
      %v4106 = vpop.f32.mrf.mxu0
      %4107 = vmatprep.mubr.f32.mxu0 0.0
      %4108 = vmatmul.mubr.f32.gmra.mxu0 %v3986
      %v4109 = vpop.f32.mrf.mxu0
      %v4110 = vadd.f32 %v3968, %v4109
      %v4111 = vpop.f32.mrf.mxu0
      %4112 = vmatprep.mubr.f32.mxu0 0.0
      %4113 = vmatmul.mubr.f32.gmra.mxu0 %v3989
      %v4114 = vpop.f32.mrf.mxu0
      %v4115 = vadd.f32 %v3968, %v4114
      %v4116 = vpop.f32.mrf.mxu0
      %4117 = vmatprep.mubr.f32.mxu0 0.0
      %4118 = vmatmul.mubr.f32.gmra.mxu0 %v3992
      %v4119 = vpop.f32.mrf.mxu0
      %v4120 = vadd.f32 %v3968, %v4119
      %v4121 = vpop.f32.mrf.mxu0
      %4122 = vmatprep.mubr.f32.mxu0 0.0
      %4123 = vmatmul.mubr.f32.gmra.mxu0 %v3995
      %v4124 = vpop.f32.mrf.mxu0
      %v4125 = vadd.f32 %v3968, %v4124
      %v4126 = vpop.f32.mrf.mxu0
      %4127 = vmatprep.mubr.f32.mxu0 0.0
      %4128 = vmatmul.mubr.f32.gmra.mxu0 %v3998
      %v4129 = vpop.f32.mrf.mxu0
      %v4130 = vadd.f32 %v3968, %v4129
      %v4131 = vpop.f32.mrf.mxu0
      %4132 = vmatprep.mubr.f32.mxu0 0.0
      %4133 = vmatmul.mubr.f32.gmra.mxu0 %v4001
      %v4134 = vpop.f32.mrf.mxu0
      %v4135 = vadd.f32 %v3968, %v4134
      %v4136 = vpop.f32.mrf.mxu0
      %4137 = vmatprep.mubr.f32.mxu0 0.0
      %4138 = vmatmul.mubr.f32.gmra.mxu0 %v4004
      %v4139 = vpop.f32.mrf.mxu0
      %v4140 = vadd.f32 %v3968, %v4139
      %v4141 = vpop.f32.mrf.mxu0
      %4142 = vmatprep.mubr.f32.mxu0 0.0
      %4143 = vmatmul.mubr.f32.gmra.mxu0 %v4007
      %v4144 = vpop.f32.mrf.mxu0
      %v4145 = vadd.f32 %v3968, %v4144
      %v4146 = vpop.f32.mrf.mxu0
      %4147 = vmatprep.mubr.f32.mxu0 0.0
      %4148 = vmatmul.mubr.f32.gmra.mxu0 %v4010
      %v4149 = vpop.f32.mrf.mxu0
      %v4150 = vadd.f32 %v3968, %v4149
      %v4151 = vpop.f32.mrf.mxu0
      %4152 = vmatprep.mubr.f32.mxu0 0.0
      %4153 = vmatmul.mubr.f32.gmra.mxu0 %v4013
      %v4154 = vpop.f32.mrf.mxu0
      %v4155 = vadd.f32 %v3968, %v4154
      %v4156 = vpop.f32.mrf.mxu0
      %4157 = vmatprep.mubr.f32.mxu0 0.0
      %4158 = vmatmul.mubr.f32.gmra.mxu0 %v4016
      %v4159 = vpop.f32.mrf.mxu0
      %v4160 = vadd.f32 %v3968, %v4159
      %v4161 = vpop.f32.mrf.mxu0
      %4162 = vdwg.mxu0
      %4163 = vst.msk [vmem:[%s305] sm:$0xff] %vm333, %v4085
      %4164 = vst.msk [vmem:[%s305 + $0x8] sm:$0xff] %vm333, %v4090
      %4165 = vst.msk [vmem:[%s305 + $0x10] sm:$0xff] %vm333, %v4095
      %4166 = vst.msk [vmem:[%s305 + $0x18] sm:$0xff] %vm333, %v4100
      %4167 = vst.msk [vmem:[%s305 + $0x20] sm:$0xff] %vm333, %v4105
      %4168 = vst.msk [vmem:[%s305 + $0x28] sm:$0xff] %vm333, %v4110
      %4169 = vst.msk [vmem:[%s305 + $0x30] sm:$0xff] %vm333, %v4115
      %4170 = vst.msk [vmem:[%s305 + $0x38] sm:$0xff] %vm333, %v4120
      %4171 = vst.msk [vmem:[%s305 + $0x40] sm:$0xff] %vm333, %v4125
      %4172 = vst.msk [vmem:[%s305 + $0x48] sm:$0xff] %vm333, %v4130
      %4173 = vst.msk [vmem:[%s305 + $0x50] sm:$0xff] %vm333, %v4135
      %4174 = vst.msk [vmem:[%s305 + $0x58] sm:$0xff] %vm333, %v4140
      %4175 = vst.msk [vmem:[%s305 + $0x60] sm:$0xff] %vm333, %v4145
      %4176 = vst.msk [vmem:[%s305 + $0x68] sm:$0xff] %vm333, %v4150
      %4177 = vst.msk [vmem:[%s305 + $0x70] sm:$0xff] %vm333, %v4155
      %4178 = vst.msk [vmem:[%s305 + $0x78] sm:$0xff] %vm333, %v4160
      %p4179 = scmp.lt.s32.totalorder %s19, 1
      %s4180 = scalar_select %p4179, %s19, 1
      %s4181 = smul.addr %s4180, 16
      %s4182 = smul.addr %s4181, 8
      %s4183 = scalar_lea.vmem %s8, %s4182
      // Predicated region
      $region53: #{tpu_custom_call.1} parent=51 // pred_check
        %p4184 = pneg %p210
      $region54: #{tpu_custom_call.1} parent=51 // pred_check_branch
        %4186 = sbr.rel (%p4184) target = $region56
      $region55: #{tpu_custom_call.1} parent=51 // pred_region
        _
      $region56: #{tpu_custom_call.1} parent=51 // pred_fallthru
        _
    $region52: #{tpu_custom_call.1} parent=5 // pred_fallthru
      _
    %p4187 = scmp.le.s32.totalorder 2, %s14
    // Predicated region
    $region57: #{tpu_custom_call.1} parent=5 // pred_check
      %p4188 = pneg %p4187
    $region58: #{tpu_custom_call.1} parent=5 // pred_check_branch
      %4190 = sbr.rel (%p4188) target = $region60
    $region59: #{tpu_custom_call.1} parent=5 // pred_region
      %s4191 = ssub.s32 %s14, 2
      // Predicated region
      $region61: #{tpu_custom_call.1} parent=59 // pred_check
        %p4192 = pneg %p216
      $region62: #{tpu_custom_call.1} parent=59 // pred_check_branch
        %4194 = sbr.rel (%p4192) target = $region64
      $region63: #{tpu_custom_call.1} parent=59 // pred_region
        %p4195 = scmp.lt.s32.totalorder %s20, 1
        %s4196 = scalar_select %p4195, %s20, 1
        %s4197 = smul.addr %s4196, 16
        %s4198 = smul.addr %s4197, 8
        %s4199 = scalar_lea.vmem %s8, %s4198
      $region64: #{tpu_custom_call.1} parent=59 // pred_fallthru
        _
    $region60: #{tpu_custom_call.1} parent=5 // pred_fallthru
      _
  $region6: #{tpu_custom_call.1} parent=0 // loop_footer
    %s18 = sadd.s32 1, %s14
  $region7: #{tpu_custom_call.1} parent=0 // loop_footer_branch
    %13 = sbr.rel target = $region3
  $region8: #{tpu_custom_call.1} parent=0 // loop_exit
    _

</llo_original>
